<compile_context>
chip_gen: v6e
topology: v6e:2x2x1
jax: 0.10.0
libtpu: 0.0.40
codegen_flags: <defaults>
</compile_context>

<pallas_src>
import math
import numpy as np
import jax
import jax.numpy as jnp
from jax import lax
from jax.experimental import pallas as pl
from jax.experimental.pallas import tpu as pltpu

LN_EPS = 1e-5  # torch.nn.LayerNorm default


# ----------------------------------------------------------------------------
# Constant real-DFT matrices implementing ortho rfft2 / irfft2 on an (a,b) grid
# ----------------------------------------------------------------------------
def _real_dft_filter_mats(a: int, b: int):
    """Forward:  Y = (Mr + i Mi) @ x_flat          (x_flat: (a*b,) per channel)
       Inverse:  x = Pr @ Zr + Pi @ Zi             (Z: (a*w,) complex, w=b//2+1)
    Flattening is row-major over (dim_a, dim_b); matches torch.fft.{rfft2,irfft2}
    with norm='ortho' (the c2r step ignores imag parts of DC/Nyquist bins)."""
    w = b // 2 + 1
    ang_a = 2.0 * np.pi * np.outer(np.arange(a), np.arange(a)) / a
    FAc = np.cos(ang_a) / np.sqrt(a)
    FAs = -np.sin(ang_a) / np.sqrt(a)
    ang_b = 2.0 * np.pi * np.outer(np.arange(w), np.arange(b)) / b
    FBc = np.cos(ang_b) / np.sqrt(b)
    FBs = -np.sin(ang_b) / np.sqrt(b)
    Mr = np.kron(FAc, FBc) - np.kron(FAs, FBs)          # (a*w, a*b)
    Mi = np.kron(FAc, FBs) + np.kron(FAs, FBc)

    # inverse: c2c ifft along dim a, then c2r irfft along dim b
    IAc = np.cos(ang_a) / np.sqrt(a)
    IAs = np.sin(ang_a) / np.sqrt(a)
    alpha = np.full((w,), 2.0)
    alpha[0] = 1.0
    if b % 2 == 0:
        alpha[-1] = 1.0
    ang_ib = 2.0 * np.pi * np.outer(np.arange(b), np.arange(w)) / b
    GBc = alpha[None, :] * np.cos(ang_ib) / np.sqrt(b)
    GBs = -alpha[None, :] * np.sin(ang_ib) / np.sqrt(b)
    Pr = np.kron(IAc, GBc) + np.kron(IAs, GBs)          # (a*b, a*w)
    Pi = np.kron(IAc, GBs) - np.kron(IAs, GBc)
    return (Mr.astype(np.float32), Mi.astype(np.float32),
            Pr.astype(np.float32), Pi.astype(np.float32))


# ----------------------------------------------------------------------------
# Pallas kernel: grid = (B // bblk,)  — one fully-fused step per batch block
# ----------------------------------------------------------------------------
def _block_kernel(x_ref, fwd_ref, pr_ref, pi_ref, wr_ref, wi_ref,
                  g1_ref, be1_ref, g2_ref, be2_ref,
                  w1_ref, b1_ref, w2_ref, b2_ref, o_ref):
    K = wr_ref.shape[0]
    c0 = np.float32(math.sqrt(2.0 / math.pi))
    c1 = np.float32(0.044715)
    wr = wr_ref[...]
    wi = wi_ref[...]

    # Static unroll over the batch block: constants / weights stay resident
    # and are reused across all bblk elements within one grid step.
    for bi in range(x_ref.shape[0]):
        x = x_ref[bi]                                          # (N, C) f32

        # ---- LayerNorm 1 (E[x^2]-E[x]^2 so both reductions overlap) --------
        mu = jnp.mean(x, axis=-1, keepdims=True)
        var = jnp.mean(x * x, axis=-1, keepdims=True) - mu * mu
        y = (x - mu) * lax.rsqrt(var + LN_EPS) * g1_ref[...] + be1_ref[...]

        # ---- GlobalFilter: fused forward real rfft2 -------------------------
        yri = jnp.dot(fwd_ref[...], y.astype(jnp.bfloat16),
                      preferred_element_type=jnp.float32)      # (2K, C)
        yr = yri[:K]
        yi = yri[K:]
        zr = (yr * wr - yi * wi).astype(jnp.bfloat16)
        zi = (yr * wi + yi * wr).astype(jnp.bfloat16)

        # ---- inverse irfft2: two K-deep matmuls, no concat ------------------
        filt = (jnp.dot(pr_ref[...], zr, preferred_element_type=jnp.float32)
                + jnp.dot(pi_ref[...], zi, preferred_element_type=jnp.float32))

        # ---- LayerNorm 2 -----------------------------------------------------
        mu2 = jnp.mean(filt, axis=-1, keepdims=True)
        var2 = jnp.mean(filt * filt, axis=-1, keepdims=True) - mu2 * mu2
        z = (filt - mu2) * lax.rsqrt(var2 + LN_EPS) * g2_ref[...] + be2_ref[...]

        # ---- MLP: fc1 -> GELU(tanh approx, EUP) -> fc2 -----------------------
        h = jnp.dot(z.astype(jnp.bfloat16), w1_ref[...],
                    preferred_element_type=jnp.float32) + b1_ref[...]
        h = 0.5 * h * (1.0 + jnp.tanh(c0 * (h + c1 * h * h * h)))
        m = jnp.dot(h.astype(jnp.bfloat16), w2_ref[...],
                    preferred_element_type=jnp.float32) + b2_ref[...]

        # ---- residual, written straight to the output block ------------------
        o_ref[bi] = x + m


def block_forward(x, params, a, b, bblk=1):
    B, N, C = x.shape
    assert N == a * b
    assert B % bblk == 0
    w = b // 2 + 1
    K = a * w
    H = params["w1"].shape[1]

    def full(shape):
        return pl.BlockSpec(shape, lambda i, s=shape: (0,) * len(s))

    grid_spec = pltpu.PrefetchScalarGridSpec(
        num_scalar_prefetch=0,
        grid=(B // bblk,),
        in_specs=[
            pl.BlockSpec((bblk, N, C), lambda i: (i, 0, 0)),   # x
            full((2 * K, N)),                                  # [Mr; Mi]   bf16
            full((N, K)), full((N, K)),                        # Pr, Pi     bf16
            full((K, C)), full((K, C)),                        # filter re, im (f32)
            full((1, C)), full((1, C)),                        # norm1 gamma, beta
            full((1, C)), full((1, C)),                        # norm2 gamma, beta
            full((C, H)), full((1, H)),                        # fc1 weight (bf16), bias
            full((H, C)), full((1, C)),                        # fc2 weight (bf16), bias
        ],
        out_specs=pl.BlockSpec((bblk, N, C), lambda i: (i, 0, 0)),
    )
    return pl.pallas_call(
        _block_kernel,
        out_shape=jax.ShapeDtypeStruct((B, N, C), jnp.float32),
        grid_spec=grid_spec,
        compiler_params=pltpu.CompilerParams(
            dimension_semantics=("parallel",),
            vmem_limit_bytes=32 * 1024 * 1024,
        ),
    )(x, params["Fwd"], params["Pr"], params["Pi"], params["wr"], params["wi"],
      params["g1"], params["be1"], params["g2"], params["be2"],
      params["w1"], params["b1"], params["w2"], params["b2"])


# ----------------------------------------------------------------------------
# Deterministic parameter init (shapes from Block.__init__)
# ----------------------------------------------------------------------------
def init_params(key, dim, a, b, mlp_ratio=4.0):
    w = b // 2 + 1
    H = int(dim * mlp_ratio)
    ks = jax.random.split(key, 8)
    cw = 0.02 * jax.random.normal(ks[0], (a, w, dim, 2), jnp.float32)  # complex_weight
    wr = cw[..., 0].reshape(a * w, dim)
    wi = cw[..., 1].reshape(a * w, dim)
    g1 = 1.0 + 0.1 * jax.random.normal(ks[1], (1, dim), jnp.float32)
    be1 = 0.1 * jax.random.normal(ks[2], (1, dim), jnp.float32)
    g2 = 1.0 + 0.1 * jax.random.normal(ks[3], (1, dim), jnp.float32)
    be2 = 0.1 * jax.random.normal(ks[4], (1, dim), jnp.float32)
    w1 = (0.05 * jax.random.normal(ks[5], (dim, H), jnp.float32)).astype(jnp.bfloat16)
    b1 = 0.02 * jax.random.normal(ks[6], (1, H), jnp.float32)
    w2 = (0.05 * jax.random.normal(ks[7], (H, dim), jnp.float32)).astype(jnp.bfloat16)
    b2 = jnp.zeros((1, dim), jnp.float32)
    Mr, Mi, Pr, Pi = _real_dft_filter_mats(a, b)
    fwd = np.concatenate([Mr, Mi], axis=0)               # (2K, N)
    return dict(wr=wr, wi=wi, g1=g1, be1=be1, g2=g2, be2=be2,
                w1=w1, b1=b1, w2=w2, b2=b2,
                Fwd=jnp.asarray(fwd, dtype=jnp.bfloat16),
                Pr=jnp.asarray(Pr, dtype=jnp.bfloat16),
                Pi=jnp.asarray(Pi, dtype=jnp.bfloat16))


# ----------------------------------------------------------------------------
# Pure numpy reference (float64), using np.fft (same semantics as torch.fft)
# ----------------------------------------------------------------------------
def reference_block(x, p, a, b):
    f64 = lambda t: np.asarray(t).astype(np.float64)
    x = np.asarray(x, np.float64)
    B, N, C = x.shape

    def ln(v, g, be):
        mu = v.mean(-1, keepdims=True)
        var = ((v - mu) ** 2).mean(-1, keepdims=True)
        return (v - mu) / np.sqrt(var + LN_EPS) * f64(g) + f64(be)

    w = b // 2 + 1
    y = ln(x, p["g1"], p["be1"])
    Y = np.fft.rfft2(y.reshape(B, a, b, C), axes=(1, 2), norm="ortho")
    W = (f64(p["wr"]) + 1j * f64(p["wi"])).reshape(a, w, C)
    filt = np.fft.irfft2(Y * W[None], s=(a, b), axes=(1, 2),
                         norm="ortho").reshape(B, N, C)
    z = ln(filt, p["g2"], p["be2"])
    h = z @ f64(p["w1"]) + f64(p["b1"])
    erf = np.vectorize(math.erf)
    h = 0.5 * h * (1.0 + erf(h / math.sqrt(2.0)))      # exact GELU (nn.GELU)
    m = h @ f64(p["w2"]) + f64(p["b2"])
    return x + m


if __name__ == "__main__":
    # GlobalFilter defaults h=14, w=8  ==  (a, b) = (14, 14); lane-dense C=128.
    B, a, b, dim = 2, 14, 14, 128
    N = a * b                                    # 196 tokens
    key = jax.random.PRNGKey(0)
    kx, kp = jax.random.split(key)
    x = jax.random.normal(kx, (B, N, dim), jnp.float32)
    params = init_params(kp, dim, a, b, mlp_ratio=4.0)   # hidden = 512

    # bblk=1 keeps two grid steps (both TCs busy on v7x); raise bblk for large B.
    out = block_forward(x, params, a, b, bblk=1)
    out = jax.block_until_ready(out)

    ref = reference_block(np.asarray(x), params, a, b)
    # bf16 matmul operands (f32 accumulation) + tanh GELU -> ~1e-2 level error
    np.testing.assert_allclose(np.asarray(out), ref, rtol=5e-2, atol=5e-2)
    print("KERNEL_OK")
</pallas_src>

<mosaic_0001>
module attributes {stable_mosaic.version = 11 : i64} {
  func.func @_block_kernel(%arg0: i32, %arg1: memref<1x196x128xf32, #tpu.memory_space<vmem>>, %arg2: memref<224x196xbf16, #tpu.memory_space<vmem>>, %arg3: memref<196x112xbf16, #tpu.memory_space<vmem>>, %arg4: memref<196x112xbf16, #tpu.memory_space<vmem>>, %arg5: memref<112x128xf32, #tpu.memory_space<vmem>>, %arg6: memref<112x128xf32, #tpu.memory_space<vmem>>, %arg7: memref<1x128xf32, #tpu.memory_space<vmem>>, %arg8: memref<1x128xf32, #tpu.memory_space<vmem>>, %arg9: memref<1x128xf32, #tpu.memory_space<vmem>>, %arg10: memref<1x128xf32, #tpu.memory_space<vmem>>, %arg11: memref<128x512xbf16, #tpu.memory_space<vmem>>, %arg12: memref<1x512xf32, #tpu.memory_space<vmem>>, %arg13: memref<512x128xbf16, #tpu.memory_space<vmem>>, %arg14: memref<1x128xf32, #tpu.memory_space<vmem>>, %arg15: memref<1x196x128xf32, #tpu.memory_space<vmem>>) attributes {dimension_semantics = [#tpu.dimension_semantics<parallel>], iteration_bounds = array<i64: 2>, scalar_prefetch = 0 : i64, scratch_operands = 0 : i64, tpu.core_type = #tpu.core_type<tc>, window_params = [{transform_indices = @transform_0, window_bounds = array<i64: 1, 196, 128>}, {pipeline_mode = #tpu.pipeline_mode<synchronous>, transform_indices = @transform_1, window_bounds = array<i64: 224, 196>}, {pipeline_mode = #tpu.pipeline_mode<synchronous>, transform_indices = @transform_2, window_bounds = array<i64: 196, 112>}, {pipeline_mode = #tpu.pipeline_mode<synchronous>, transform_indices = @transform_3, window_bounds = array<i64: 196, 112>}, {pipeline_mode = #tpu.pipeline_mode<synchronous>, transform_indices = @transform_4, window_bounds = array<i64: 112, 128>}, {pipeline_mode = #tpu.pipeline_mode<synchronous>, transform_indices = @transform_5, window_bounds = array<i64: 112, 128>}, {pipeline_mode = #tpu.pipeline_mode<synchronous>, transform_indices = @transform_6, window_bounds = array<i64: 1, 128>}, {pipeline_mode = #tpu.pipeline_mode<synchronous>, transform_indices = @transform_7, window_bounds = array<i64: 1, 128>}, {pipeline_mode = #tpu.pipeline_mode<synchronous>, transform_indices = @transform_8, window_bounds = array<i64: 1, 128>}, {pipeline_mode = #tpu.pipeline_mode<synchronous>, transform_indices = @transform_9, window_bounds = array<i64: 1, 128>}, {pipeline_mode = #tpu.pipeline_mode<synchronous>, transform_indices = @transform_10, window_bounds = array<i64: 128, 512>}, {pipeline_mode = #tpu.pipeline_mode<synchronous>, transform_indices = @transform_11, window_bounds = array<i64: 1, 512>}, {pipeline_mode = #tpu.pipeline_mode<synchronous>, transform_indices = @transform_12, window_bounds = array<i64: 512, 128>}, {pipeline_mode = #tpu.pipeline_mode<synchronous>, transform_indices = @transform_13, window_bounds = array<i64: 1, 128>}, {transform_indices = @transform_14, window_bounds = array<i64: 1, 196, 128>}]} {
    %c0 = arith.constant 0 : index
    %c0_0 = arith.constant 0 : index
    %0 = vector.load %arg5[%c0, %c0_0] : memref<112x128xf32, #tpu.memory_space<vmem>>, vector<112x128xf32>
    %c0_1 = arith.constant 0 : index
    %c0_2 = arith.constant 0 : index
    %1 = vector.load %arg6[%c0_1, %c0_2] : memref<112x128xf32, #tpu.memory_space<vmem>>, vector<112x128xf32>
    %c0_3 = arith.constant 0 : index
    %c0_4 = arith.constant 0 : index
    %c0_5 = arith.constant 0 : index
    %2 = vector.load %arg1[%c0_3, %c0_4, %c0_5] : memref<1x196x128xf32, #tpu.memory_space<vmem>>, vector<1x196x128xf32>
    %3 = vector.shape_cast %2 : vector<1x196x128xf32> to vector<196x128xf32>
    %cst = arith.constant dense<0.000000e+00> : vector<196xf32>
    %4 = vector.multi_reduction <add>, %3, %cst [1] : vector<196x128xf32> to vector<196xf32>
    %5 = vector.shape_cast %4 : vector<196xf32> to vector<196x1xf32>
    %cst_6 = arith.constant 1.280000e+02 : f32
    %6 = vector.broadcast %cst_6 : f32 to vector<196x1xf32>
    %7 = arith.divf %5, %6 : vector<196x1xf32>
    %8 = arith.mulf %3, %3 : vector<196x128xf32>
    %cst_7 = arith.constant dense<0.000000e+00> : vector<196xf32>
    %9 = vector.multi_reduction <add>, %8, %cst_7 [1] : vector<196x128xf32> to vector<196xf32>
    %10 = vector.shape_cast %9 : vector<196xf32> to vector<196x1xf32>
    %cst_8 = arith.constant 1.280000e+02 : f32
    %11 = vector.broadcast %cst_8 : f32 to vector<196x1xf32>
    %12 = arith.divf %10, %11 : vector<196x1xf32>
    %13 = arith.mulf %7, %7 : vector<196x1xf32>
    %14 = arith.subf %12, %13 : vector<196x1xf32>
    %15 = vector.broadcast %7 : vector<196x1xf32> to vector<196x128xf32>
    %16 = arith.subf %3, %15 : vector<196x128xf32>
    %cst_9 = arith.constant 9.99999974E-6 : f32
    %17 = vector.broadcast %cst_9 : f32 to vector<196x1xf32>
    %18 = arith.addf %14, %17 : vector<196x1xf32>
    %19 = math.rsqrt %18 : vector<196x1xf32>
    %20 = vector.broadcast %19 : vector<196x1xf32> to vector<196x128xf32>
    %21 = arith.mulf %16, %20 : vector<196x128xf32>
    %c0_10 = arith.constant 0 : index
    %c0_11 = arith.constant 0 : index
    %22 = vector.load %arg7[%c0_10, %c0_11] : memref<1x128xf32, #tpu.memory_space<vmem>>, vector<1x128xf32>
    %23 = vector.broadcast %22 : vector<1x128xf32> to vector<196x128xf32>
    %24 = arith.mulf %21, %23 : vector<196x128xf32>
    %c0_12 = arith.constant 0 : index
    %c0_13 = arith.constant 0 : index
    %25 = vector.load %arg8[%c0_12, %c0_13] : memref<1x128xf32, #tpu.memory_space<vmem>>, vector<1x128xf32>
    %26 = vector.broadcast %25 : vector<1x128xf32> to vector<196x128xf32>
    %27 = arith.addf %24, %26 : vector<196x128xf32>
    %c0_14 = arith.constant 0 : index
    %c0_15 = arith.constant 0 : index
    %28 = vector.load %arg2[%c0_14, %c0_15] : memref<224x196xbf16, #tpu.memory_space<vmem>>, vector<224x196xbf16>
    %29 = arith.truncf %27 : vector<196x128xf32> to vector<196x128xbf16>
    %cst_16 = arith.constant dense<0.000000e+00> : vector<224x128xf32>
    %30 = tpu.matmul %28, %29, %cst_16 {dimension_numbers = #tpu.dot_dimension_numbers<[1], [0], [0], [1], [0, 0, 1, 1], [], []>} : vector<224x196xbf16>, vector<196x128xbf16>, vector<224x128xf32> -> vector<224x128xf32>
    %31 = vector.extract_strided_slice %30 {offsets = [0, 0], sizes = [112, 128], strides = [1, 1]} : vector<224x128xf32> to vector<112x128xf32>
    %32 = vector.extract_strided_slice %30 {offsets = [112, 0], sizes = [112, 128], strides = [1, 1]} : vector<224x128xf32> to vector<112x128xf32>
    %33 = arith.mulf %31, %0 : vector<112x128xf32>
    %34 = arith.mulf %32, %1 : vector<112x128xf32>
    %35 = arith.subf %33, %34 : vector<112x128xf32>
    %36 = arith.truncf %35 : vector<112x128xf32> to vector<112x128xbf16>
    %37 = arith.mulf %31, %1 : vector<112x128xf32>
    %38 = arith.mulf %32, %0 : vector<112x128xf32>
    %39 = arith.addf %37, %38 : vector<112x128xf32>
    %40 = arith.truncf %39 : vector<112x128xf32> to vector<112x128xbf16>
    %c0_17 = arith.constant 0 : index
    %c0_18 = arith.constant 0 : index
    %41 = vector.load %arg3[%c0_17, %c0_18] : memref<196x112xbf16, #tpu.memory_space<vmem>>, vector<196x112xbf16>
    %cst_19 = arith.constant dense<0.000000e+00> : vector<196x128xf32>
    %42 = tpu.matmul %41, %36, %cst_19 {dimension_numbers = #tpu.dot_dimension_numbers<[1], [0], [0], [1], [0, 0, 1, 1], [], []>} : vector<196x112xbf16>, vector<112x128xbf16>, vector<196x128xf32> -> vector<196x128xf32>
    %c0_20 = arith.constant 0 : index
    %c0_21 = arith.constant 0 : index
    %43 = vector.load %arg4[%c0_20, %c0_21] : memref<196x112xbf16, #tpu.memory_space<vmem>>, vector<196x112xbf16>
    %cst_22 = arith.constant dense<0.000000e+00> : vector<196x128xf32>
    %44 = tpu.matmul %43, %40, %cst_22 {dimension_numbers = #tpu.dot_dimension_numbers<[1], [0], [0], [1], [0, 0, 1, 1], [], []>} : vector<196x112xbf16>, vector<112x128xbf16>, vector<196x128xf32> -> vector<196x128xf32>
    %45 = arith.addf %42, %44 : vector<196x128xf32>
    %cst_23 = arith.constant dense<0.000000e+00> : vector<196xf32>
    %46 = vector.multi_reduction <add>, %45, %cst_23 [1] : vector<196x128xf32> to vector<196xf32>
    %47 = vector.shape_cast %46 : vector<196xf32> to vector<196x1xf32>
    %cst_24 = arith.constant 1.280000e+02 : f32
    %48 = vector.broadcast %cst_24 : f32 to vector<196x1xf32>
    %49 = arith.divf %47, %48 : vector<196x1xf32>
    %50 = arith.mulf %45, %45 : vector<196x128xf32>
    %cst_25 = arith.constant dense<0.000000e+00> : vector<196xf32>
    %51 = vector.multi_reduction <add>, %50, %cst_25 [1] : vector<196x128xf32> to vector<196xf32>
    %52 = vector.shape_cast %51 : vector<196xf32> to vector<196x1xf32>
    %cst_26 = arith.constant 1.280000e+02 : f32
    %53 = vector.broadcast %cst_26 : f32 to vector<196x1xf32>
    %54 = arith.divf %52, %53 : vector<196x1xf32>
    %55 = arith.mulf %49, %49 : vector<196x1xf32>
    %56 = arith.subf %54, %55 : vector<196x1xf32>
    %57 = vector.broadcast %49 : vector<196x1xf32> to vector<196x128xf32>
    %58 = arith.subf %45, %57 : vector<196x128xf32>
    %cst_27 = arith.constant 9.99999974E-6 : f32
    %59 = vector.broadcast %cst_27 : f32 to vector<196x1xf32>
    %60 = arith.addf %56, %59 : vector<196x1xf32>
    %61 = math.rsqrt %60 : vector<196x1xf32>
    %62 = vector.broadcast %61 : vector<196x1xf32> to vector<196x128xf32>
    %63 = arith.mulf %58, %62 : vector<196x128xf32>
    %c0_28 = arith.constant 0 : index
    %c0_29 = arith.constant 0 : index
    %64 = vector.load %arg9[%c0_28, %c0_29] : memref<1x128xf32, #tpu.memory_space<vmem>>, vector<1x128xf32>
    %65 = vector.broadcast %64 : vector<1x128xf32> to vector<196x128xf32>
    %66 = arith.mulf %63, %65 : vector<196x128xf32>
    %c0_30 = arith.constant 0 : index
    %c0_31 = arith.constant 0 : index
    %67 = vector.load %arg10[%c0_30, %c0_31] : memref<1x128xf32, #tpu.memory_space<vmem>>, vector<1x128xf32>
    %68 = vector.broadcast %67 : vector<1x128xf32> to vector<196x128xf32>
    %69 = arith.addf %66, %68 : vector<196x128xf32>
    %70 = arith.truncf %69 : vector<196x128xf32> to vector<196x128xbf16>
    %c0_32 = arith.constant 0 : index
    %c0_33 = arith.constant 0 : index
    %71 = vector.load %arg11[%c0_32, %c0_33] : memref<128x512xbf16, #tpu.memory_space<vmem>>, vector<128x512xbf16>
    %cst_34 = arith.constant dense<0.000000e+00> : vector<196x512xf32>
    %72 = tpu.matmul %70, %71, %cst_34 {dimension_numbers = #tpu.dot_dimension_numbers<[1], [0], [0], [1], [0, 0, 1, 1], [], []>} : vector<196x128xbf16>, vector<128x512xbf16>, vector<196x512xf32> -> vector<196x512xf32>
    %c0_35 = arith.constant 0 : index
    %c0_36 = arith.constant 0 : index
    %73 = vector.load %arg12[%c0_35, %c0_36] : memref<1x512xf32, #tpu.memory_space<vmem>>, vector<1x512xf32>
    %74 = vector.broadcast %73 : vector<1x512xf32> to vector<196x512xf32>
    %75 = arith.addf %72, %74 : vector<196x512xf32>
    %cst_37 = arith.constant 5.000000e-01 : f32
    %76 = vector.broadcast %cst_37 : f32 to vector<196x512xf32>
    %77 = arith.mulf %76, %75 : vector<196x512xf32>
    %cst_38 = arith.constant 4.471500e-02 : f32
    %78 = vector.broadcast %cst_38 : f32 to vector<196x512xf32>
    %79 = arith.mulf %78, %75 : vector<196x512xf32>
    %80 = arith.mulf %79, %75 : vector<196x512xf32>
    %81 = arith.mulf %80, %75 : vector<196x512xf32>
    %82 = arith.addf %75, %81 : vector<196x512xf32>
    %cst_39 = arith.constant 0.797884583 : f32
    %83 = vector.broadcast %cst_39 : f32 to vector<196x512xf32>
    %84 = arith.mulf %83, %82 : vector<196x512xf32>
    %85 = math.tanh %84 : vector<196x512xf32>
    %cst_40 = arith.constant 1.000000e+00 : f32
    %86 = vector.broadcast %cst_40 : f32 to vector<196x512xf32>
    %87 = arith.addf %86, %85 : vector<196x512xf32>
    %88 = arith.mulf %77, %87 : vector<196x512xf32>
    %89 = arith.truncf %88 : vector<196x512xf32> to vector<196x512xbf16>
    %c0_41 = arith.constant 0 : index
    %c0_42 = arith.constant 0 : index
    %90 = vector.load %arg13[%c0_41, %c0_42] : memref<512x128xbf16, #tpu.memory_space<vmem>>, vector<512x128xbf16>
    %cst_43 = arith.constant dense<0.000000e+00> : vector<196x128xf32>
    %91 = tpu.matmul %89, %90, %cst_43 {dimension_numbers = #tpu.dot_dimension_numbers<[1], [0], [0], [1], [0, 0, 1, 1], [], []>} : vector<196x512xbf16>, vector<512x128xbf16>, vector<196x128xf32> -> vector<196x128xf32>
    %c0_44 = arith.constant 0 : index
    %c0_45 = arith.constant 0 : index
    %92 = vector.load %arg14[%c0_44, %c0_45] : memref<1x128xf32, #tpu.memory_space<vmem>>, vector<1x128xf32>
    %93 = vector.broadcast %92 : vector<1x128xf32> to vector<196x128xf32>
    %94 = arith.addf %91, %93 : vector<196x128xf32>
    %95 = arith.addf %3, %94 : vector<196x128xf32>
    %c0_46 = arith.constant 0 : index
    %c0_47 = arith.constant 0 : index
    %c0_48 = arith.constant 0 : index
    %96 = vector.load %arg15[%c0_46, %c0_47, %c0_48] : memref<1x196x128xf32, #tpu.memory_space<vmem>>, vector<1x196x128xf32>
    %97 = vector.shape_cast %96 : vector<1x196x128xf32> to vector<196x128xf32>
    %98 = vector.shape_cast %95 : vector<196x128xf32> to vector<1x196x128xf32>
    tpu.vector_store %arg15[%c0_46, %c0_47, %c0_48], %98 {strides = array<i32>} : memref<1x196x128xf32, #tpu.memory_space<vmem>>, vector<1x196x128xf32>,
    return
  }
  func.func @transform_0(%arg0: i32) -> (i32, i32, i32) {
    %c0_i32 = arith.constant 0 : i32
    %c0_i32_0 = arith.constant 0 : i32
    %c0_i32_1 = arith.constant 0 : i32
    return %arg0, %c0_i32, %c0_i32_0 : i32, i32, i32
  }
  func.func @transform_1(%arg0: i32) -> (i32, i32) {
    %c0_i32 = arith.constant 0 : i32
    %c0_i32_0 = arith.constant 0 : i32
    %c0_i32_1 = arith.constant 0 : i32
    return %c0_i32, %c0_i32_0 : i32, i32
  }
  func.func @transform_2(%arg0: i32) -> (i32, i32) {
    %c0_i32 = arith.constant 0 : i32
    %c0_i32_0 = arith.constant 0 : i32
    %c0_i32_1 = arith.constant 0 : i32
    return %c0_i32, %c0_i32_0 : i32, i32
  }
  func.func @transform_3(%arg0: i32) -> (i32, i32) {
    %c0_i32 = arith.constant 0 : i32
    %c0_i32_0 = arith.constant 0 : i32
    %c0_i32_1 = arith.constant 0 : i32
    return %c0_i32, %c0_i32_0 : i32, i32
  }
  func.func @transform_4(%arg0: i32) -> (i32, i32) {
    %c0_i32 = arith.constant 0 : i32
    %c0_i32_0 = arith.constant 0 : i32
    %c0_i32_1 = arith.constant 0 : i32
    return %c0_i32, %c0_i32_0 : i32, i32
  }
  func.func @transform_5(%arg0: i32) -> (i32, i32) {
    %c0_i32 = arith.constant 0 : i32
    %c0_i32_0 = arith.constant 0 : i32
    %c0_i32_1 = arith.constant 0 : i32
    return %c0_i32, %c0_i32_0 : i32, i32
  }
  func.func @transform_6(%arg0: i32) -> (i32, i32) {
    %c0_i32 = arith.constant 0 : i32
    %c0_i32_0 = arith.constant 0 : i32
    %c0_i32_1 = arith.constant 0 : i32
    return %c0_i32, %c0_i32_0 : i32, i32
  }
  func.func @transform_7(%arg0: i32) -> (i32, i32) {
    %c0_i32 = arith.constant 0 : i32
    %c0_i32_0 = arith.constant 0 : i32
    %c0_i32_1 = arith.constant 0 : i32
    return %c0_i32, %c0_i32_0 : i32, i32
  }
  func.func @transform_8(%arg0: i32) -> (i32, i32) {
    %c0_i32 = arith.constant 0 : i32
    %c0_i32_0 = arith.constant 0 : i32
    %c0_i32_1 = arith.constant 0 : i32
    return %c0_i32, %c0_i32_0 : i32, i32
  }
  func.func @transform_9(%arg0: i32) -> (i32, i32) {
    %c0_i32 = arith.constant 0 : i32
    %c0_i32_0 = arith.constant 0 : i32
    %c0_i32_1 = arith.constant 0 : i32
    return %c0_i32, %c0_i32_0 : i32, i32
  }
  func.func @transform_10(%arg0: i32) -> (i32, i32) {
    %c0_i32 = arith.constant 0 : i32
    %c0_i32_0 = arith.constant 0 : i32
    %c0_i32_1 = arith.constant 0 : i32
    return %c0_i32, %c0_i32_0 : i32, i32
  }
  func.func @transform_11(%arg0: i32) -> (i32, i32) {
    %c0_i32 = arith.constant 0 : i32
    %c0_i32_0 = arith.constant 0 : i32
    %c0_i32_1 = arith.constant 0 : i32
    return %c0_i32, %c0_i32_0 : i32, i32
  }
  func.func @transform_12(%arg0: i32) -> (i32, i32) {
    %c0_i32 = arith.constant 0 : i32
    %c0_i32_0 = arith.constant 0 : i32
    %c0_i32_1 = arith.constant 0 : i32
    return %c0_i32, %c0_i32_0 : i32, i32
  }
  func.func @transform_13(%arg0: i32) -> (i32, i32) {
    %c0_i32 = arith.constant 0 : i32
    %c0_i32_0 = arith.constant 0 : i32
    %c0_i32_1 = arith.constant 0 : i32
    return %c0_i32, %c0_i32_0 : i32, i32
  }
  func.func @transform_14(%arg0: i32) -> (i32, i32, i32) {
    %c0_i32 = arith.constant 0 : i32
    %c0_i32_0 = arith.constant 0 : i32
    %c0_i32_1 = arith.constant 0 : i32
    return %arg0, %c0_i32, %c0_i32_0 : i32, i32, i32
  }
}

</mosaic_0001>

<llo_original>
// kernel: tpu_custom_call.1
$region0: #{tpu_custom_call.1}
  #allocation0 [shape = 'u32[]', space=smem, size = 0x4, offset = 0x4, fixed_abs, tag = 'smem constant byte address 0x4 - core index']
  #allocation1 [shape = 'u32[144,128]{1,0:T(1,128)}', space=vmem, size = 0x12000, scoped, tag = 'internal scratch']
  %s0 = inlined_call_operand.vmem [shape: f32[2,196,128], index: 0, kind: input, shape index: {}]
  %s1 = inlined_call_operand.vmem [shape: bf16[224,196], index: 1, kind: input, shape index: {}]
  %s2 = inlined_call_operand.hbm [shape: bf16[196,112], index: 2, kind: input, shape index: {}]
  %s3 = inlined_call_operand.hbm [shape: bf16[196,112], index: 3, kind: input, shape index: {}]
  %s4 = inlined_call_operand.vmem [shape: f32[112,128], index: 4, kind: input, shape index: {}]
  %s5 = inlined_call_operand.vmem [shape: f32[112,128], index: 5, kind: input, shape index: {}]
  %s6 = inlined_call_operand.vmem [shape: f32[1,128], index: 6, kind: input, shape index: {}]
  %s7 = inlined_call_operand.vmem [shape: f32[1,128], index: 7, kind: input, shape index: {}]
  %s8 = inlined_call_operand.vmem [shape: f32[1,128], index: 8, kind: input, shape index: {}]
  %s9 = inlined_call_operand.vmem [shape: f32[1,128], index: 9, kind: input, shape index: {}]
  %s10 = inlined_call_operand.vmem [shape: bf16[128,512], index: 10, kind: input, shape index: {}]
  %s11 = inlined_call_operand.vmem [shape: f32[1,512], index: 11, kind: input, shape index: {}]
  %s12 = inlined_call_operand.vmem [shape: bf16[512,128], index: 12, kind: input, shape index: {}]
  %s13 = inlined_call_operand.vmem [shape: f32[1,128], index: 13, kind: input, shape index: {}]
  %s14 = inlined_call_operand.vmem [shape: f32[2,196,128], index: 14, kind: output, shape index: {}]
  %s15 = sld [smem:[#allocation0]]
  $region97: #{tpu_custom_call.1} parent=0
    _
  %s17 = ssub.s32 1, %s15
  %s18 = scalar_select 0, %s17, %s15
  $region1: #{tpu_custom_call.1} parent=0
    #allocation2 [shape = 'u8[51200]{0}', space=vmem, size = 0xc800, scoped, tag = 'input window, operand 2, single buffered']
    #allocation3 [shape = 's32[2]{0}', space=sflag, size = 0x8, scoped, tag = 'scoped memory for tpu_custom_call.1']
    #allocation4 [shape = 'u8[51200]{0}', space=vmem, size = 0xc800, scoped, tag = 'input window, operand 3, single buffered']
    #allocation5 [shape = 's32[1]{0}', space=sflag, size = 0x4, scoped, tag = 'scoped memory for tpu_custom_call.1']
    %19 = vsyncpa [#allocation3], 0
    %20 = vsyncpa [#allocation5], 0
    loop: start=0, step=1, limit=4
    $region2: #{tpu_custom_call.1} parent=1 // loop_pre_header
      _
    $region3: #{tpu_custom_call.1} parent=1 // loop_header
      %s22 = sphi 0, %s26
      %p23 = scmp.ge.s32.totalorder %s22, 4
      %s32 = sphi 0, %s34
      %s35 = sphi 0, %s32
      %s36 = sphi 0, %s35
      %s52 = sphi 0, %s36
      %s56 = sphi 0, %s56
      %s58 = sphi 0, %s56
      %s59 = sphi 0, %s58
      %s73 = sphi 0, %s59
      %s77 = sphi 0, %s77
      %s79 = sphi 0, %s77
      %s80 = sphi 0, %s79
      %s94 = sphi 0, %s80
      %s98 = sphi 0, %s98
      %s100 = sphi 0, %s98
      %s101 = sphi 0, %s100
      %s115 = sphi 0, %s101
      %s119 = sphi 0, %s119
      %s121 = sphi 0, %s119
      %s122 = sphi 0, %s121
      %s136 = sphi 0, %s122
      %s140 = sphi 0, %s140
      %s142 = sphi 0, %s140
      %s143 = sphi 0, %s142
      %s157 = sphi 0, %s143
      %s161 = sphi 0, %s161
      %s163 = sphi 0, %s161
      %s164 = sphi 0, %s163
      %s178 = sphi 0, %s164
      %s182 = sphi 0, %s182
      %s184 = sphi 0, %s182
      %s185 = sphi 0, %s184
      %s199 = sphi 0, %s185
      %s203 = sphi 0, %s203
      %s205 = sphi 0, %s203
      %s206 = sphi 0, %s205
      %s220 = sphi 0, %s206
      %s224 = sphi 0, %s224
      %s226 = sphi 0, %s224
      %s227 = sphi 0, %s226
      %s241 = sphi 0, %s227
      %s245 = sphi 0, %s245
      %s247 = sphi 0, %s245
      %s248 = sphi 0, %s247
      %s262 = sphi 0, %s248
      %s266 = sphi 0, %s266
      %s268 = sphi 0, %s266
      %s269 = sphi 0, %s268
      %s283 = sphi 0, %s269
      %s287 = sphi 0, %s287
      %s289 = sphi 0, %s287
      %s290 = sphi 0, %s289
      %s304 = sphi 0, %s290
      %s308 = sphi 0, %s308
      %s310 = sphi 0, %s308
      %s311 = sphi 0, %s310
      %s325 = sphi 0, %s311
      %s331 = sphi 0, %s333
      %s334 = sphi 0, %s331
      %s335 = sphi 0, %s334
      %s351 = sphi 0, %s335
    $region4: #{tpu_custom_call.1} parent=1 // loop_header_branch
      %25 = sbr.rel (%p23) target = $region8
    $region5: #{tpu_custom_call.1} parent=1 // loop_body
      %s27 = ssub.s32 %s22, 1
      %s28 = ssub.s32 %s22, 2
      %s29 = sadd.s32 %s22, 1
      %s30 = ssub.s32 %s22, %s29
      %p31 = scmp.eq.s32.totalorder %s30, 0
      %s33 = sadd.s32 %s32, 1
      %s34 = scalar_select %p31, %s32, %s33
      %p37 = pneg %p31
      %p38 = scmp.eq.s32.totalorder %s22, 1
      %p39 = por %p37, %p38
      %p40 = scmp.ne.s32.totalorder %s32, %s35
      %p41 = scmp.eq.s32.totalorder %s22, 0
      %p42 = por %p40, %p41
      %p43 = scmp.ne.s32.totalorder %s32, %s35
      %p44 = scmp.eq.s32.totalorder %s27, 1
      %p45 = por %p43, %p44
      %p46 = scmp.ne.s32.totalorder %s35, %s36
      %p47 = scmp.eq.s32.totalorder %s27, 0
      %p48 = por %p46, %p47
      %p49 = scmp.ne.s32.totalorder %s35, %s36
      %p50 = scmp.eq.s32.totalorder %s28, 1
      %p51 = por %p49, %p50
      %p53 = scmp.ne.s32.totalorder %s36, %s52
      %p54 = scmp.eq.s32.totalorder %s28, 0
      %p55 = por %p53, %p54
      %s57 = sadd.s32 %s56, 1
      %p60 = scmp.eq.s32.totalorder %s22, 1
      %p61 = scmp.ne.s32.totalorder %s56, %s58
      %p62 = scmp.eq.s32.totalorder %s22, 0
      %p63 = por %p61, %p62
      %p64 = scmp.ne.s32.totalorder %s56, %s58
      %p65 = scmp.eq.s32.totalorder %s27, 1
      %p66 = por %p64, %p65
      %p67 = scmp.ne.s32.totalorder %s58, %s59
      %p68 = scmp.eq.s32.totalorder %s27, 0
      %p69 = por %p67, %p68
      %p70 = scmp.ne.s32.totalorder %s58, %s59
      %p71 = scmp.eq.s32.totalorder %s28, 1
      %p72 = por %p70, %p71
      %p74 = scmp.ne.s32.totalorder %s59, %s73
      %p75 = scmp.eq.s32.totalorder %s28, 0
      %p76 = por %p74, %p75
      %s78 = sadd.s32 %s77, 1
      %p81 = scmp.eq.s32.totalorder %s22, 1
      %p82 = scmp.ne.s32.totalorder %s77, %s79
      %p83 = scmp.eq.s32.totalorder %s22, 0
      %p84 = por %p82, %p83
      %p85 = scmp.ne.s32.totalorder %s77, %s79
      %p86 = scmp.eq.s32.totalorder %s27, 1
      %p87 = por %p85, %p86
      %p88 = scmp.ne.s32.totalorder %s79, %s80
      %p89 = scmp.eq.s32.totalorder %s27, 0
      %p90 = por %p88, %p89
      %p91 = scmp.ne.s32.totalorder %s79, %s80
      %p92 = scmp.eq.s32.totalorder %s28, 1
      %p93 = por %p91, %p92
      %p95 = scmp.ne.s32.totalorder %s80, %s94
      %p96 = scmp.eq.s32.totalorder %s28, 0
      %p97 = por %p95, %p96
      %s99 = sadd.s32 %s98, 1
      %p102 = scmp.eq.s32.totalorder %s22, 1
      %p103 = scmp.ne.s32.totalorder %s98, %s100
      %p104 = scmp.eq.s32.totalorder %s22, 0
      %p105 = por %p103, %p104
      %p106 = scmp.ne.s32.totalorder %s98, %s100
      %p107 = scmp.eq.s32.totalorder %s27, 1
      %p108 = por %p106, %p107
      %p109 = scmp.ne.s32.totalorder %s100, %s101
      %p110 = scmp.eq.s32.totalorder %s27, 0
      %p111 = por %p109, %p110
      %p112 = scmp.ne.s32.totalorder %s100, %s101
      %p113 = scmp.eq.s32.totalorder %s28, 1
      %p114 = por %p112, %p113
      %p116 = scmp.ne.s32.totalorder %s101, %s115
      %p117 = scmp.eq.s32.totalorder %s28, 0
      %p118 = por %p116, %p117
      %s120 = sadd.s32 %s119, 1
      %p123 = scmp.eq.s32.totalorder %s22, 1
      %p124 = scmp.ne.s32.totalorder %s119, %s121
      %p125 = scmp.eq.s32.totalorder %s22, 0
      %p126 = por %p124, %p125
      %p127 = scmp.ne.s32.totalorder %s119, %s121
      %p128 = scmp.eq.s32.totalorder %s27, 1
      %p129 = por %p127, %p128
      %p130 = scmp.ne.s32.totalorder %s121, %s122
      %p131 = scmp.eq.s32.totalorder %s27, 0
      %p132 = por %p130, %p131
      %p133 = scmp.ne.s32.totalorder %s121, %s122
      %p134 = scmp.eq.s32.totalorder %s28, 1
      %p135 = por %p133, %p134
      %p137 = scmp.ne.s32.totalorder %s122, %s136
      %p138 = scmp.eq.s32.totalorder %s28, 0
      %p139 = por %p137, %p138
      %s141 = sadd.s32 %s140, 1
      %p144 = scmp.eq.s32.totalorder %s22, 1
      %p145 = scmp.ne.s32.totalorder %s140, %s142
      %p146 = scmp.eq.s32.totalorder %s22, 0
      %p147 = por %p145, %p146
      %p148 = scmp.ne.s32.totalorder %s140, %s142
      %p149 = scmp.eq.s32.totalorder %s27, 1
      %p150 = por %p148, %p149
      %p151 = scmp.ne.s32.totalorder %s142, %s143
      %p152 = scmp.eq.s32.totalorder %s27, 0
      %p153 = por %p151, %p152
      %p154 = scmp.ne.s32.totalorder %s142, %s143
      %p155 = scmp.eq.s32.totalorder %s28, 1
      %p156 = por %p154, %p155
      %p158 = scmp.ne.s32.totalorder %s143, %s157
      %p159 = scmp.eq.s32.totalorder %s28, 0
      %p160 = por %p158, %p159
      %s162 = sadd.s32 %s161, 1
      %p165 = scmp.eq.s32.totalorder %s22, 1
      %p166 = scmp.ne.s32.totalorder %s161, %s163
      %p167 = scmp.eq.s32.totalorder %s22, 0
      %p168 = por %p166, %p167
      %p169 = scmp.ne.s32.totalorder %s161, %s163
      %p170 = scmp.eq.s32.totalorder %s27, 1
      %p171 = por %p169, %p170
      %p172 = scmp.ne.s32.totalorder %s163, %s164
      %p173 = scmp.eq.s32.totalorder %s27, 0
      %p174 = por %p172, %p173
      %p175 = scmp.ne.s32.totalorder %s163, %s164
      %p176 = scmp.eq.s32.totalorder %s28, 1
      %p177 = por %p175, %p176
      %p179 = scmp.ne.s32.totalorder %s164, %s178
      %p180 = scmp.eq.s32.totalorder %s28, 0
      %p181 = por %p179, %p180
      %s183 = sadd.s32 %s182, 1
      %p186 = scmp.eq.s32.totalorder %s22, 1
      %p187 = scmp.ne.s32.totalorder %s182, %s184
      %p188 = scmp.eq.s32.totalorder %s22, 0
      %p189 = por %p187, %p188
      %p190 = scmp.ne.s32.totalorder %s182, %s184
      %p191 = scmp.eq.s32.totalorder %s27, 1
      %p192 = por %p190, %p191
      %p193 = scmp.ne.s32.totalorder %s184, %s185
      %p194 = scmp.eq.s32.totalorder %s27, 0
      %p195 = por %p193, %p194
      %p196 = scmp.ne.s32.totalorder %s184, %s185
      %p197 = scmp.eq.s32.totalorder %s28, 1
      %p198 = por %p196, %p197
      %p200 = scmp.ne.s32.totalorder %s185, %s199
      %p201 = scmp.eq.s32.totalorder %s28, 0
      %p202 = por %p200, %p201
      %s204 = sadd.s32 %s203, 1
      %p207 = scmp.eq.s32.totalorder %s22, 1
      %p208 = scmp.ne.s32.totalorder %s203, %s205
      %p209 = scmp.eq.s32.totalorder %s22, 0
      %p210 = por %p208, %p209
      %p211 = scmp.ne.s32.totalorder %s203, %s205
      %p212 = scmp.eq.s32.totalorder %s27, 1
      %p213 = por %p211, %p212
      %p214 = scmp.ne.s32.totalorder %s205, %s206
      %p215 = scmp.eq.s32.totalorder %s27, 0
      %p216 = por %p214, %p215
      %p217 = scmp.ne.s32.totalorder %s205, %s206
      %p218 = scmp.eq.s32.totalorder %s28, 1
      %p219 = por %p217, %p218
      %p221 = scmp.ne.s32.totalorder %s206, %s220
      %p222 = scmp.eq.s32.totalorder %s28, 0
      %p223 = por %p221, %p222
      %s225 = sadd.s32 %s224, 1
      %p228 = scmp.eq.s32.totalorder %s22, 1
      %p229 = scmp.ne.s32.totalorder %s224, %s226
      %p230 = scmp.eq.s32.totalorder %s22, 0
      %p231 = por %p229, %p230
      %p232 = scmp.ne.s32.totalorder %s224, %s226
      %p233 = scmp.eq.s32.totalorder %s27, 1
      %p234 = por %p232, %p233
      %p235 = scmp.ne.s32.totalorder %s226, %s227
      %p236 = scmp.eq.s32.totalorder %s27, 0
      %p237 = por %p235, %p236
      %p238 = scmp.ne.s32.totalorder %s226, %s227
      %p239 = scmp.eq.s32.totalorder %s28, 1
      %p240 = por %p238, %p239
      %p242 = scmp.ne.s32.totalorder %s227, %s241
      %p243 = scmp.eq.s32.totalorder %s28, 0
      %p244 = por %p242, %p243
      %s246 = sadd.s32 %s245, 1
      %p249 = scmp.eq.s32.totalorder %s22, 1
      %p250 = scmp.ne.s32.totalorder %s245, %s247
      %p251 = scmp.eq.s32.totalorder %s22, 0
      %p252 = por %p250, %p251
      %p253 = scmp.ne.s32.totalorder %s245, %s247
      %p254 = scmp.eq.s32.totalorder %s27, 1
      %p255 = por %p253, %p254
      %p256 = scmp.ne.s32.totalorder %s247, %s248
      %p257 = scmp.eq.s32.totalorder %s27, 0
      %p258 = por %p256, %p257
      %p259 = scmp.ne.s32.totalorder %s247, %s248
      %p260 = scmp.eq.s32.totalorder %s28, 1
      %p261 = por %p259, %p260
      %p263 = scmp.ne.s32.totalorder %s248, %s262
      %p264 = scmp.eq.s32.totalorder %s28, 0
      %p265 = por %p263, %p264
      %s267 = sadd.s32 %s266, 1
      %p270 = scmp.eq.s32.totalorder %s22, 1
      %p271 = scmp.ne.s32.totalorder %s266, %s268
      %p272 = scmp.eq.s32.totalorder %s22, 0
      %p273 = por %p271, %p272
      %p274 = scmp.ne.s32.totalorder %s266, %s268
      %p275 = scmp.eq.s32.totalorder %s27, 1
      %p276 = por %p274, %p275
      %p277 = scmp.ne.s32.totalorder %s268, %s269
      %p278 = scmp.eq.s32.totalorder %s27, 0
      %p279 = por %p277, %p278
      %p280 = scmp.ne.s32.totalorder %s268, %s269
      %p281 = scmp.eq.s32.totalorder %s28, 1
      %p282 = por %p280, %p281
      %p284 = scmp.ne.s32.totalorder %s269, %s283
      %p285 = scmp.eq.s32.totalorder %s28, 0
      %p286 = por %p284, %p285
      %s288 = sadd.s32 %s287, 1
      %p291 = scmp.eq.s32.totalorder %s22, 1
      %p292 = scmp.ne.s32.totalorder %s287, %s289
      %p293 = scmp.eq.s32.totalorder %s22, 0
      %p294 = por %p292, %p293
      %p295 = scmp.ne.s32.totalorder %s287, %s289
      %p296 = scmp.eq.s32.totalorder %s27, 1
      %p297 = por %p295, %p296
      %p298 = scmp.ne.s32.totalorder %s289, %s290
      %p299 = scmp.eq.s32.totalorder %s27, 0
      %p300 = por %p298, %p299
      %p301 = scmp.ne.s32.totalorder %s289, %s290
      %p302 = scmp.eq.s32.totalorder %s28, 1
      %p303 = por %p301, %p302
      %p305 = scmp.ne.s32.totalorder %s290, %s304
      %p306 = scmp.eq.s32.totalorder %s28, 0
      %p307 = por %p305, %p306
      %s309 = sadd.s32 %s308, 1
      %p312 = scmp.eq.s32.totalorder %s22, 1
      %p313 = scmp.ne.s32.totalorder %s308, %s310
      %p314 = scmp.eq.s32.totalorder %s22, 0
      %p315 = por %p313, %p314
      %p316 = scmp.ne.s32.totalorder %s308, %s310
      %p317 = scmp.eq.s32.totalorder %s27, 1
      %p318 = por %p316, %p317
      %p319 = scmp.ne.s32.totalorder %s310, %s311
      %p320 = scmp.eq.s32.totalorder %s27, 0
      %p321 = por %p319, %p320
      %p322 = scmp.ne.s32.totalorder %s310, %s311
      %p323 = scmp.eq.s32.totalorder %s28, 1
      %p324 = por %p322, %p323
      %p326 = scmp.ne.s32.totalorder %s311, %s325
      %p327 = scmp.eq.s32.totalorder %s28, 0
      %p328 = por %p326, %p327
      %s329 = ssub.s32 %s22, %s29
      %p330 = scmp.eq.s32.totalorder %s329, 0
      %s332 = sadd.s32 %s331, 1
      %s333 = scalar_select %p330, %s331, %s332
      %p336 = pneg %p330
      %p337 = scmp.eq.s32.totalorder %s22, 1
      %p338 = por %p336, %p337
      %p339 = scmp.ne.s32.totalorder %s331, %s334
      %p340 = scmp.eq.s32.totalorder %s22, 0
      %p341 = por %p339, %p340
      %p342 = scmp.ne.s32.totalorder %s331, %s334
      %p343 = scmp.eq.s32.totalorder %s27, 1
      %p344 = por %p342, %p343
      %p345 = scmp.ne.s32.totalorder %s334, %s335
      %p346 = scmp.eq.s32.totalorder %s27, 0
      %p347 = por %p345, %p346
      %p348 = scmp.ne.s32.totalorder %s334, %s335
      %p349 = scmp.eq.s32.totalorder %s28, 1
      %p350 = por %p348, %p349
      %p352 = scmp.ne.s32.totalorder %s335, %s351
      %p353 = scmp.eq.s32.totalorder %s28, 0
      %p354 = por %p352, %p353
      %p355 = scmp.le.s32.totalorder 1, %s22
      %p356 = scmp.lt.s32.totalorder %s22, 3
      %p357 = pnand %p355, %p356
      %p358 = pneg %p357
      // Predicated region
      $region9: #{tpu_custom_call.1} parent=5 // pred_check
        _
      $region10: #{tpu_custom_call.1} parent=5 // pred_check_branch
        %360 = sbr.rel (%p357) target = $region12
      $region11: #{tpu_custom_call.1} parent=5 // pred_region
        %s361 = ssub.s32 %s22, 1
        // Predicated region
        $region13: #{tpu_custom_call.1} parent=11 // pred_check
          %p362 = pneg %p69
        $region14: #{tpu_custom_call.1} parent=11 // pred_check_branch
          %364 = sbr.rel (%p362) target = $region16
        $region15: #{tpu_custom_call.1} parent=11 // pred_region
          _
        $region16: #{tpu_custom_call.1} parent=11 // pred_fallthru
          _
        // Predicated region
        $region17: #{tpu_custom_call.1} parent=11 // pred_check
          %p365 = pneg %p90
        $region18: #{tpu_custom_call.1} parent=11 // pred_check_branch
          %367 = sbr.rel (%p365) target = $region20
        $region19: #{tpu_custom_call.1} parent=11 // pred_region
          %s369 = ssub.s32 1600, 1600
          %370 = vsyncadd [#allocation3], %s369
          %s371 = sshll.u32 [#allocation2], 4
          %s372 = int_to_ptr.vmem [resolvable:$true] %s371
          %377 = dma.hbm_to_vmem [thread:$0]  %s2, 1600, %s372, [#allocation3], 64, 64, 4
        $region20: #{tpu_custom_call.1} parent=11 // pred_fallthru
          _
        // Predicated region
        $region21: #{tpu_custom_call.1} parent=11 // pred_check
          %p378 = pneg %p111
        $region22: #{tpu_custom_call.1} parent=11 // pred_check_branch
          %380 = sbr.rel (%p378) target = $region24
        $region23: #{tpu_custom_call.1} parent=11 // pred_region
          %s382 = ssub.s32 1600, 1600
          %383 = vsyncadd [#allocation5], %s382
          %s384 = sshll.u32 [#allocation4], 4
          %s385 = int_to_ptr.vmem [resolvable:$true] %s384
          %390 = dma.hbm_to_vmem [thread:$0]  %s3, 1600, %s385, [#allocation5], 64, 64, 4
        $region24: #{tpu_custom_call.1} parent=11 // pred_fallthru
          _
        // Predicated region
        $region25: #{tpu_custom_call.1} parent=11 // pred_check
          %p391 = pneg %p132
        $region26: #{tpu_custom_call.1} parent=11 // pred_check_branch
          %393 = sbr.rel (%p391) target = $region28
        $region27: #{tpu_custom_call.1} parent=11 // pred_region
          _
        $region28: #{tpu_custom_call.1} parent=11 // pred_fallthru
          _
        // Predicated region
        $region29: #{tpu_custom_call.1} parent=11 // pred_check
          %p394 = pneg %p153
        $region30: #{tpu_custom_call.1} parent=11 // pred_check_branch
          %396 = sbr.rel (%p394) target = $region32
        $region31: #{tpu_custom_call.1} parent=11 // pred_region
          _
        $region32: #{tpu_custom_call.1} parent=11 // pred_fallthru
          _
        // Predicated region
        $region33: #{tpu_custom_call.1} parent=11 // pred_check
          %p397 = pneg %p174
        $region34: #{tpu_custom_call.1} parent=11 // pred_check_branch
          %399 = sbr.rel (%p397) target = $region36
        $region35: #{tpu_custom_call.1} parent=11 // pred_region
          _
        $region36: #{tpu_custom_call.1} parent=11 // pred_fallthru
          _
        // Predicated region
        $region37: #{tpu_custom_call.1} parent=11 // pred_check
          %p400 = pneg %p195
        $region38: #{tpu_custom_call.1} parent=11 // pred_check_branch
          %402 = sbr.rel (%p400) target = $region40
        $region39: #{tpu_custom_call.1} parent=11 // pred_region
          _
        $region40: #{tpu_custom_call.1} parent=11 // pred_fallthru
          _
        // Predicated region
        $region41: #{tpu_custom_call.1} parent=11 // pred_check
          %p403 = pneg %p216
        $region42: #{tpu_custom_call.1} parent=11 // pred_check_branch
          %405 = sbr.rel (%p403) target = $region44
        $region43: #{tpu_custom_call.1} parent=11 // pred_region
          _
        $region44: #{tpu_custom_call.1} parent=11 // pred_fallthru
          _
        // Predicated region
        $region45: #{tpu_custom_call.1} parent=11 // pred_check
          %p406 = pneg %p237
        $region46: #{tpu_custom_call.1} parent=11 // pred_check_branch
          %408 = sbr.rel (%p406) target = $region48
        $region47: #{tpu_custom_call.1} parent=11 // pred_region
          _
        $region48: #{tpu_custom_call.1} parent=11 // pred_fallthru
          _
        // Predicated region
        $region49: #{tpu_custom_call.1} parent=11 // pred_check
          %p409 = pneg %p258
        $region50: #{tpu_custom_call.1} parent=11 // pred_check_branch
          %411 = sbr.rel (%p409) target = $region52
        $region51: #{tpu_custom_call.1} parent=11 // pred_region
          _
        $region52: #{tpu_custom_call.1} parent=11 // pred_fallthru
          _
        // Predicated region
        $region53: #{tpu_custom_call.1} parent=11 // pred_check
          %p412 = pneg %p279
        $region54: #{tpu_custom_call.1} parent=11 // pred_check_branch
          %414 = sbr.rel (%p412) target = $region56
        $region55: #{tpu_custom_call.1} parent=11 // pred_region
          _
        $region56: #{tpu_custom_call.1} parent=11 // pred_fallthru
          _
        // Predicated region
        $region57: #{tpu_custom_call.1} parent=11 // pred_check
          %p415 = pneg %p300
        $region58: #{tpu_custom_call.1} parent=11 // pred_check_branch
          %417 = sbr.rel (%p415) target = $region60
        $region59: #{tpu_custom_call.1} parent=11 // pred_region
          _
        $region60: #{tpu_custom_call.1} parent=11 // pred_fallthru
          _
        // Predicated region
        $region61: #{tpu_custom_call.1} parent=11 // pred_check
          %p418 = pneg %p321
        $region62: #{tpu_custom_call.1} parent=11 // pred_check_branch
          %420 = sbr.rel (%p418) target = $region64
        $region63: #{tpu_custom_call.1} parent=11 // pred_region
          _
        $region64: #{tpu_custom_call.1} parent=11 // pred_fallthru
          _
      $region12: #{tpu_custom_call.1} parent=5 // pred_fallthru
        _
      %p421 = scmp.lt.s32.totalorder %s22, 2
      // Predicated region
      $region65: #{tpu_custom_call.1} parent=5 // pred_check
        %p422 = pneg %p421
      $region66: #{tpu_custom_call.1} parent=5 // pred_check_branch
        %424 = sbr.rel (%p422) target = $region68
      $region67: #{tpu_custom_call.1} parent=5 // pred_region
        // Predicated region
        $region69: #{tpu_custom_call.1} parent=67 // pred_check
          %p425 = pneg %p42
        $region70: #{tpu_custom_call.1} parent=67 // pred_check_branch
          %427 = sbr.rel (%p425) target = $region72
        $region71: #{tpu_custom_call.1} parent=67 // pred_region
          %p428 = scmp.lt.s32.totalorder %s22, 1
          %s429 = scalar_select %p428, %s22, 1
          %s430 = smul.addr %s429, 25
          %s431 = smul.addr %s430, 8
          %s432 = scalar_lea.vmem %s0, %s431
        $region72: #{tpu_custom_call.1} parent=67 // pred_fallthru
          _
      $region68: #{tpu_custom_call.1} parent=5 // pred_fallthru
        _
      %p433 = scmp.le.s32.totalorder 1, %s22
      %p434 = scmp.lt.s32.totalorder %s22, 3
      %p435 = pnand %p433, %p434
      %p436 = pneg %p435
      // Predicated region
      $region73: #{tpu_custom_call.1} parent=5 // pred_check
        _
      $region74: #{tpu_custom_call.1} parent=5 // pred_check_branch
        %438 = sbr.rel (%p435) target = $region76
      $region75: #{tpu_custom_call.1} parent=5 // pred_region
        %s439 = ssub.s32 %s22, 1
        // Predicated region
        $region77: #{tpu_custom_call.1} parent=75 // pred_check
          %p440 = pneg %p90
        $region78: #{tpu_custom_call.1} parent=75 // pred_check_branch
          %442 = sbr.rel (%p440) target = $region80
        $region79: #{tpu_custom_call.1} parent=75 // pred_region
          %443 = dma.done [#allocation3], 1600
        $region80: #{tpu_custom_call.1} parent=75 // pred_fallthru
          _
        // Predicated region
        $region81: #{tpu_custom_call.1} parent=75 // pred_check
          %p444 = pneg %p111
        $region82: #{tpu_custom_call.1} parent=75 // pred_check_branch
          %446 = sbr.rel (%p444) target = $region84
        $region83: #{tpu_custom_call.1} parent=75 // pred_region
          %447 = dma.done [#allocation5], 1600
        $region84: #{tpu_custom_call.1} parent=75 // pred_fallthru
          _
        %p448 = scmp.lt.s32.totalorder %s27, 1
        %s449 = scalar_select %p448, %s27, 1
        %s450 = smul.addr %s449, 25
        %s451 = smul.addr %s450, 8
        %s452 = scalar_lea.vmem %s0, %s451
        %p453 = pneg %p48
        %p454 = pneg %p45
        %p455 = pneg %p69
        %p456 = pneg %p66
        %p457 = pneg %p90
        %p458 = pneg %p87
        %p459 = pneg %p111
        %p460 = pneg %p108
        %p461 = pneg %p132
        %p462 = pneg %p129
        %p463 = pneg %p153
        %p464 = pneg %p150
        %p465 = pneg %p174
        %p466 = pneg %p171
        %p467 = pneg %p195
        %p468 = pneg %p192
        %p469 = pneg %p216
        %p470 = pneg %p213
        %p471 = pneg %p237
        %p472 = pneg %p234
        %p473 = pneg %p258
        %p474 = pneg %p255
        %p475 = pneg %p279
        %p476 = pneg %p276
        %p477 = pneg %p300
        %p478 = pneg %p297
        %p479 = pneg %p321
        %p480 = pneg %p318
        %p481 = pneg %p347
        %p482 = pneg %p344
        %p483 = scmp.lt.s32.totalorder %s27, 1
        %s484 = scalar_select %p483, %s27, 1
        %s485 = smul.addr %s484, 25
        %s486 = smul.addr %s485, 8
        %s487 = scalar_lea.vmem %s14, %s486
        %p488 = scmp.lt.s32.totalorder %s27, 1
        %s489 = scalar_select %p488, %s27, 1
        %s490 = smul.addr %s489, 25
        %s491 = smul.addr %s490, 8
        %s492 = scalar_lea.vmem %s0, %s491
        %p493 = scmp.lt.s32.totalorder %s27, 1
        %s494 = scalar_select %p493, %s27, 1
        %s495 = smul.addr %s494, 25
        %s496 = smul.addr %s495, 8
        %s497 = scalar_lea.vmem %s14, %s496
        %v499 = vld [vmem:[%s4] sm:$0xff]
        %v500 = vld [vmem:[%s4 + $0x8] sm:$0xff]
        %v501 = vld [vmem:[%s4 + $0x10] sm:$0xff]
        %v502 = vld [vmem:[%s4 + $0x18] sm:$0xff]
        %v503 = vld [vmem:[%s4 + $0x20] sm:$0xff]
        %v504 = vld [vmem:[%s4 + $0x28] sm:$0xff]
        %v505 = vld [vmem:[%s4 + $0x30] sm:$0xff]
        %v506 = vld [vmem:[%s4 + $0x38] sm:$0xff]
        %v507 = vld [vmem:[%s4 + $0x40] sm:$0xff]
        %v508 = vld [vmem:[%s4 + $0x48] sm:$0xff]
        %v509 = vld [vmem:[%s4 + $0x50] sm:$0xff]
        %v510 = vld [vmem:[%s4 + $0x58] sm:$0xff]
        %v511 = vld [vmem:[%s4 + $0x60] sm:$0xff]
        %v512 = vld [vmem:[%s4 + $0x68] sm:$0xff]
        %v513 = vld [vmem:[%s5] sm:$0xff]
        %v514 = vld [vmem:[%s5 + $0x8] sm:$0xff]
        %v515 = vld [vmem:[%s5 + $0x10] sm:$0xff]
        %v516 = vld [vmem:[%s5 + $0x18] sm:$0xff]
        %v517 = vld [vmem:[%s5 + $0x20] sm:$0xff]
        %v518 = vld [vmem:[%s5 + $0x28] sm:$0xff]
        %v519 = vld [vmem:[%s5 + $0x30] sm:$0xff]
        %v520 = vld [vmem:[%s5 + $0x38] sm:$0xff]
        %v521 = vld [vmem:[%s5 + $0x40] sm:$0xff]
        %v522 = vld [vmem:[%s5 + $0x48] sm:$0xff]
        %v523 = vld [vmem:[%s5 + $0x50] sm:$0xff]
        %v524 = vld [vmem:[%s5 + $0x58] sm:$0xff]
        %v525 = vld [vmem:[%s5 + $0x60] sm:$0xff]
        %v526 = vld [vmem:[%s5 + $0x68] sm:$0xff]
        %v527 = vld [vmem:[%s492] sm:$0xff]
        %v528 = vld [vmem:[%s492 + $0x8] sm:$0xff]
        %v529 = vld [vmem:[%s492 + $0x10] sm:$0xff]
        %v530 = vld [vmem:[%s492 + $0x18] sm:$0xff]
        %v531 = vld [vmem:[%s492 + $0x20] sm:$0xff]
        %v532 = vld [vmem:[%s492 + $0x28] sm:$0xff]
        %v533 = vld [vmem:[%s492 + $0x30] sm:$0xff]
        %v534 = vld [vmem:[%s492 + $0x38] sm:$0xff]
        %v535 = vld [vmem:[%s492 + $0x40] sm:$0xff]
        %v536 = vld [vmem:[%s492 + $0x48] sm:$0xff]
        %v537 = vld [vmem:[%s492 + $0x50] sm:$0xff]
        %v538 = vld [vmem:[%s492 + $0x58] sm:$0xff]
        %v539 = vld [vmem:[%s492 + $0x60] sm:$0xff]
        %v540 = vld [vmem:[%s492 + $0x68] sm:$0xff]
        %v541 = vld [vmem:[%s492 + $0x70] sm:$0xff]
        %v542 = vld [vmem:[%s492 + $0x78] sm:$0xff]
        %v543 = vld [vmem:[%s492 + $0x80] sm:$0xff]
        %v544 = vld [vmem:[%s492 + $0x88] sm:$0xff]
        %v545 = vld [vmem:[%s492 + $0x90] sm:$0xff]
        %v546 = vld [vmem:[%s492 + $0x98] sm:$0xff]
        %v547 = vld [vmem:[%s492 + $0xa0] sm:$0xff]
        %v548 = vld [vmem:[%s492 + $0xa8] sm:$0xff]
        %v549 = vld [vmem:[%s492 + $0xb0] sm:$0xff]
        %v550 = vld [vmem:[%s492 + $0xb8] sm:$0xff]
        %v551 = vld [vmem:[%s492 + $0xc0] sm:$0xf]
        %552 = vadd.xlane.f32.xlu0 %v527
        %v553 = vpop.xlane.xlu0 %552
        %554 = vadd.xlane.f32.xlu0 %v528
        %v555 = vpop.xlane.xlu0 %554
        %556 = vadd.xlane.f32.xlu0 %v529
        %v557 = vpop.xlane.xlu0 %556
        %558 = vadd.xlane.f32.xlu0 %v530
        %v559 = vpop.xlane.xlu0 %558
        %560 = vadd.xlane.f32.xlu0 %v531
        %v561 = vpop.xlane.xlu0 %560
        %562 = vadd.xlane.f32.xlu0 %v532
        %v563 = vpop.xlane.xlu0 %562
        %564 = vadd.xlane.f32.xlu0 %v533
        %v565 = vpop.xlane.xlu0 %564
        %566 = vadd.xlane.f32.xlu0 %v534
        %v567 = vpop.xlane.xlu0 %566
        %568 = vadd.xlane.f32.xlu0 %v535
        %v569 = vpop.xlane.xlu0 %568
        %570 = vadd.xlane.f32.xlu0 %v536
        %v571 = vpop.xlane.xlu0 %570
        %572 = vadd.xlane.f32.xlu0 %v537
        %v573 = vpop.xlane.xlu0 %572
        %574 = vadd.xlane.f32.xlu0 %v538
        %v575 = vpop.xlane.xlu0 %574
        %576 = vadd.xlane.f32.xlu0 %v539
        %v577 = vpop.xlane.xlu0 %576
        %578 = vadd.xlane.f32.xlu0 %v540
        %v579 = vpop.xlane.xlu0 %578
        %580 = vadd.xlane.f32.xlu0 %v541
        %v581 = vpop.xlane.xlu0 %580
        %582 = vadd.xlane.f32.xlu0 %v542
        %v583 = vpop.xlane.xlu0 %582
        %584 = vadd.xlane.f32.xlu0 %v543
        %v585 = vpop.xlane.xlu0 %584
        %586 = vadd.xlane.f32.xlu0 %v544
        %v587 = vpop.xlane.xlu0 %586
        %588 = vadd.xlane.f32.xlu0 %v545
        %v589 = vpop.xlane.xlu0 %588
        %590 = vadd.xlane.f32.xlu0 %v546
        %v591 = vpop.xlane.xlu0 %590
        %592 = vadd.xlane.f32.xlu0 %v547
        %v593 = vpop.xlane.xlu0 %592
        %594 = vadd.xlane.f32.xlu0 %v548
        %v595 = vpop.xlane.xlu0 %594
        %596 = vadd.xlane.f32.xlu0 %v549
        %v597 = vpop.xlane.xlu0 %596
        %598 = vadd.xlane.f32.xlu0 %v550
        %v599 = vpop.xlane.xlu0 %598
        %vm600 = vcmask 1043456
        %v601 = vsel %vm600, %v551, 0.0
        %602 = vadd.xlane.f32.xlu0 %v601
        %v603 = vpop.xlane.xlu0 %602
        %v604 = vrcp.pop 128.0
        %v605 = vmul.f32 %v553, %v604
        %v606 = vmul.f32 %v555, %v604
        %v607 = vmul.f32 %v557, %v604
        %v608 = vmul.f32 %v559, %v604
        %v609 = vmul.f32 %v561, %v604
        %v610 = vmul.f32 %v563, %v604
        %v611 = vmul.f32 %v565, %v604
        %v612 = vmul.f32 %v567, %v604
        %v613 = vmul.f32 %v569, %v604
        %v614 = vmul.f32 %v571, %v604
        %v615 = vmul.f32 %v573, %v604
        %v616 = vmul.f32 %v575, %v604
        %v617 = vmul.f32 %v577, %v604
        %v618 = vmul.f32 %v579, %v604
        %v619 = vmul.f32 %v581, %v604
        %v620 = vmul.f32 %v583, %v604
        %v621 = vmul.f32 %v585, %v604
        %v622 = vmul.f32 %v587, %v604
        %v623 = vmul.f32 %v589, %v604
        %v624 = vmul.f32 %v591, %v604
        %v625 = vmul.f32 %v593, %v604
        %v626 = vmul.f32 %v595, %v604
        %v627 = vmul.f32 %v597, %v604
        %v628 = vmul.f32 %v599, %v604
        %v629 = vmul.f32 %v603, %v604
        %v630 = vmul.f32 %v527, %v527
        %v631 = vmul.f32 %v528, %v528
        %v632 = vmul.f32 %v529, %v529
        %v633 = vmul.f32 %v530, %v530
        %v634 = vmul.f32 %v531, %v531
        %v635 = vmul.f32 %v532, %v532
        %v636 = vmul.f32 %v533, %v533
        %v637 = vmul.f32 %v534, %v534
        %v638 = vmul.f32 %v535, %v535
        %v639 = vmul.f32 %v536, %v536
        %v640 = vmul.f32 %v537, %v537
        %v641 = vmul.f32 %v538, %v538
        %v642 = vmul.f32 %v539, %v539
        %v643 = vmul.f32 %v540, %v540
        %v644 = vmul.f32 %v541, %v541
        %v645 = vmul.f32 %v542, %v542
        %v646 = vmul.f32 %v543, %v543
        %v647 = vmul.f32 %v544, %v544
        %v648 = vmul.f32 %v545, %v545
        %v649 = vmul.f32 %v546, %v546
        %v650 = vmul.f32 %v547, %v547
        %v651 = vmul.f32 %v548, %v548
        %v652 = vmul.f32 %v549, %v549
        %v653 = vmul.f32 %v550, %v550
        %v654 = vmul.f32 %v551, %v551
        %655 = vadd.xlane.f32.xlu0 %v630
        %v656 = vpop.xlane.xlu0 %655
        %657 = vadd.xlane.f32.xlu0 %v631
        %v658 = vpop.xlane.xlu0 %657
        %659 = vadd.xlane.f32.xlu0 %v632
        %v660 = vpop.xlane.xlu0 %659
        %661 = vadd.xlane.f32.xlu0 %v633
        %v662 = vpop.xlane.xlu0 %661
        %663 = vadd.xlane.f32.xlu0 %v634
        %v664 = vpop.xlane.xlu0 %663
        %665 = vadd.xlane.f32.xlu0 %v635
        %v666 = vpop.xlane.xlu0 %665
        %667 = vadd.xlane.f32.xlu0 %v636
        %v668 = vpop.xlane.xlu0 %667
        %669 = vadd.xlane.f32.xlu0 %v637
        %v670 = vpop.xlane.xlu0 %669
        %671 = vadd.xlane.f32.xlu0 %v638
        %v672 = vpop.xlane.xlu0 %671
        %673 = vadd.xlane.f32.xlu0 %v639
        %v674 = vpop.xlane.xlu0 %673
        %675 = vadd.xlane.f32.xlu0 %v640
        %v676 = vpop.xlane.xlu0 %675
        %677 = vadd.xlane.f32.xlu0 %v641
        %v678 = vpop.xlane.xlu0 %677
        %679 = vadd.xlane.f32.xlu0 %v642
        %v680 = vpop.xlane.xlu0 %679
        %681 = vadd.xlane.f32.xlu0 %v643
        %v682 = vpop.xlane.xlu0 %681
        %683 = vadd.xlane.f32.xlu0 %v644
        %v684 = vpop.xlane.xlu0 %683
        %685 = vadd.xlane.f32.xlu0 %v645
        %v686 = vpop.xlane.xlu0 %685
        %687 = vadd.xlane.f32.xlu0 %v646
        %v688 = vpop.xlane.xlu0 %687
        %689 = vadd.xlane.f32.xlu0 %v647
        %v690 = vpop.xlane.xlu0 %689
        %691 = vadd.xlane.f32.xlu0 %v648
        %v692 = vpop.xlane.xlu0 %691
        %693 = vadd.xlane.f32.xlu0 %v649
        %v694 = vpop.xlane.xlu0 %693
        %695 = vadd.xlane.f32.xlu0 %v650
        %v696 = vpop.xlane.xlu0 %695
        %697 = vadd.xlane.f32.xlu0 %v651
        %v698 = vpop.xlane.xlu0 %697
        %699 = vadd.xlane.f32.xlu0 %v652
        %v700 = vpop.xlane.xlu0 %699
        %701 = vadd.xlane.f32.xlu0 %v653
        %v702 = vpop.xlane.xlu0 %701
        %v703 = vsel %vm600, %v654, 0.0
        %704 = vadd.xlane.f32.xlu0 %v703
        %v705 = vpop.xlane.xlu0 %704
        %v706 = vmul.f32 %v656, %v604
        %v707 = vmul.f32 %v658, %v604
        %v708 = vmul.f32 %v660, %v604
        %v709 = vmul.f32 %v662, %v604
        %v710 = vmul.f32 %v664, %v604
        %v711 = vmul.f32 %v666, %v604
        %v712 = vmul.f32 %v668, %v604
        %v713 = vmul.f32 %v670, %v604
        %v714 = vmul.f32 %v672, %v604
        %v715 = vmul.f32 %v674, %v604
        %v716 = vmul.f32 %v676, %v604
        %v717 = vmul.f32 %v678, %v604
        %v718 = vmul.f32 %v680, %v604
        %v719 = vmul.f32 %v682, %v604
        %v720 = vmul.f32 %v684, %v604
        %v721 = vmul.f32 %v686, %v604
        %v722 = vmul.f32 %v688, %v604
        %v723 = vmul.f32 %v690, %v604
        %v724 = vmul.f32 %v692, %v604
        %v725 = vmul.f32 %v694, %v604
        %v726 = vmul.f32 %v696, %v604
        %v727 = vmul.f32 %v698, %v604
        %v728 = vmul.f32 %v700, %v604
        %v729 = vmul.f32 %v702, %v604
        %v730 = vmul.f32 %v705, %v604
        %v731 = vmul.f32 %v605, %v605
        %v732 = vmul.f32 %v606, %v606
        %v733 = vmul.f32 %v607, %v607
        %v734 = vmul.f32 %v608, %v608
        %v735 = vmul.f32 %v609, %v609
        %v736 = vmul.f32 %v610, %v610
        %v737 = vmul.f32 %v611, %v611
        %v738 = vmul.f32 %v612, %v612
        %v739 = vmul.f32 %v613, %v613
        %v740 = vmul.f32 %v614, %v614
        %v741 = vmul.f32 %v615, %v615
        %v742 = vmul.f32 %v616, %v616
        %v743 = vmul.f32 %v617, %v617
        %v744 = vmul.f32 %v618, %v618
        %v745 = vmul.f32 %v619, %v619
        %v746 = vmul.f32 %v620, %v620
        %v747 = vmul.f32 %v621, %v621
        %v748 = vmul.f32 %v622, %v622
        %v749 = vmul.f32 %v623, %v623
        %v750 = vmul.f32 %v624, %v624
        %v751 = vmul.f32 %v625, %v625
        %v752 = vmul.f32 %v626, %v626
        %v753 = vmul.f32 %v627, %v627
        %v754 = vmul.f32 %v628, %v628
        %v755 = vmul.f32 %v629, %v629
        %v756 = vsub.f32 %v706, %v731
        %v757 = vsub.f32 %v707, %v732
        %v758 = vsub.f32 %v708, %v733
        %v759 = vsub.f32 %v709, %v734
        %v760 = vsub.f32 %v710, %v735
        %v761 = vsub.f32 %v711, %v736
        %v762 = vsub.f32 %v712, %v737
        %v763 = vsub.f32 %v713, %v738
        %v764 = vsub.f32 %v714, %v739
        %v765 = vsub.f32 %v715, %v740
        %v766 = vsub.f32 %v716, %v741
        %v767 = vsub.f32 %v717, %v742
        %v768 = vsub.f32 %v718, %v743
        %v769 = vsub.f32 %v719, %v744
        %v770 = vsub.f32 %v720, %v745
        %v771 = vsub.f32 %v721, %v746
        %v772 = vsub.f32 %v722, %v747
        %v773 = vsub.f32 %v723, %v748
        %v774 = vsub.f32 %v724, %v749
        %v775 = vsub.f32 %v725, %v750
        %v776 = vsub.f32 %v726, %v751
        %v777 = vsub.f32 %v727, %v752
        %v778 = vsub.f32 %v728, %v753
        %v779 = vsub.f32 %v729, %v754
        %v780 = vsub.f32 %v730, %v755
        %v781 = vsub.f32 %v527, %v605
        %v782 = vsub.f32 %v528, %v606
        %v783 = vsub.f32 %v529, %v607
        %v784 = vsub.f32 %v530, %v608
        %v785 = vsub.f32 %v531, %v609
        %v786 = vsub.f32 %v532, %v610
        %v787 = vsub.f32 %v533, %v611
        %v788 = vsub.f32 %v534, %v612
        %v789 = vsub.f32 %v535, %v613
        %v790 = vsub.f32 %v536, %v614
        %v791 = vsub.f32 %v537, %v615
        %v792 = vsub.f32 %v538, %v616
        %v793 = vsub.f32 %v539, %v617
        %v794 = vsub.f32 %v540, %v618
        %v795 = vsub.f32 %v541, %v619
        %v796 = vsub.f32 %v542, %v620
        %v797 = vsub.f32 %v543, %v621
        %v798 = vsub.f32 %v544, %v622
        %v799 = vsub.f32 %v545, %v623
        %v800 = vsub.f32 %v546, %v624
        %v801 = vsub.f32 %v547, %v625
        %v802 = vsub.f32 %v548, %v626
        %v803 = vsub.f32 %v549, %v627
        %v804 = vsub.f32 %v550, %v628
        %v805 = vsub.f32 %v551, %v629
        %v806 = vadd.f32 %v756, 1e-05
        %v807 = vadd.f32 %v757, 1e-05
        %v808 = vadd.f32 %v758, 1e-05
        %v809 = vadd.f32 %v759, 1e-05
        %v810 = vadd.f32 %v760, 1e-05
        %v811 = vadd.f32 %v761, 1e-05
        %v812 = vadd.f32 %v762, 1e-05
        %v813 = vadd.f32 %v763, 1e-05
        %v814 = vadd.f32 %v764, 1e-05
        %v815 = vadd.f32 %v765, 1e-05
        %v816 = vadd.f32 %v766, 1e-05
        %v817 = vadd.f32 %v767, 1e-05
        %v818 = vadd.f32 %v768, 1e-05
        %v819 = vadd.f32 %v769, 1e-05
        %v820 = vadd.f32 %v770, 1e-05
        %v821 = vadd.f32 %v771, 1e-05
        %v822 = vadd.f32 %v772, 1e-05
        %v823 = vadd.f32 %v773, 1e-05
        %v824 = vadd.f32 %v774, 1e-05
        %v825 = vadd.f32 %v775, 1e-05
        %v826 = vadd.f32 %v776, 1e-05
        %v827 = vadd.f32 %v777, 1e-05
        %v828 = vadd.f32 %v778, 1e-05
        %v829 = vadd.f32 %v779, 1e-05
        %v830 = vadd.f32 %v780, 1e-05
        %v831 = vrsqrt.pop %v806
        %v832 = vrsqrt.pop %v807
        %v833 = vrsqrt.pop %v808
        %v834 = vrsqrt.pop %v809
        %v835 = vrsqrt.pop %v810
        %v836 = vrsqrt.pop %v811
        %v837 = vrsqrt.pop %v812
        %v838 = vrsqrt.pop %v813
        %v839 = vrsqrt.pop %v814
        %v840 = vrsqrt.pop %v815
        %v841 = vrsqrt.pop %v816
        %v842 = vrsqrt.pop %v817
        %v843 = vrsqrt.pop %v818
        %v844 = vrsqrt.pop %v819
        %v845 = vrsqrt.pop %v820
        %v846 = vrsqrt.pop %v821
        %v847 = vrsqrt.pop %v822
        %v848 = vrsqrt.pop %v823
        %v849 = vrsqrt.pop %v824
        %v850 = vrsqrt.pop %v825
        %v851 = vrsqrt.pop %v826
        %v852 = vrsqrt.pop %v827
        %v853 = vrsqrt.pop %v828
        %v854 = vrsqrt.pop %v829
        %v855 = vrsqrt.pop %v830
        %v856 = vmul.f32 %v781, %v831
        %v857 = vmul.f32 %v782, %v832
        %v858 = vmul.f32 %v783, %v833
        %v859 = vmul.f32 %v784, %v834
        %v860 = vmul.f32 %v785, %v835
        %v861 = vmul.f32 %v786, %v836
        %v862 = vmul.f32 %v787, %v837
        %v863 = vmul.f32 %v788, %v838
        %v864 = vmul.f32 %v789, %v839
        %v865 = vmul.f32 %v790, %v840
        %v866 = vmul.f32 %v791, %v841
        %v867 = vmul.f32 %v792, %v842
        %v868 = vmul.f32 %v793, %v843
        %v869 = vmul.f32 %v794, %v844
        %v870 = vmul.f32 %v795, %v845
        %v871 = vmul.f32 %v796, %v846
        %v872 = vmul.f32 %v797, %v847
        %v873 = vmul.f32 %v798, %v848
        %v874 = vmul.f32 %v799, %v849
        %v875 = vmul.f32 %v800, %v850
        %v876 = vmul.f32 %v801, %v851
        %v877 = vmul.f32 %v802, %v852
        %v878 = vmul.f32 %v803, %v853
        %v879 = vmul.f32 %v804, %v854
        %v880 = vmul.f32 %v805, %v855
        %v881 = vld [vmem:[%s6] sm:$0x1]
        %v883 = vlaneseq
        %v884 = vshrl.u32 %v883, 7
        %v885 = vsub.s32 0, %v884
        %v886 = vrot.slane %v881, %v885
        %v888 = vmul.f32 %v856, %v886
        %v889 = vmul.f32 %v857, %v886
        %v890 = vmul.f32 %v858, %v886
        %v891 = vmul.f32 %v859, %v886
        %v892 = vmul.f32 %v860, %v886
        %v893 = vmul.f32 %v861, %v886
        %v894 = vmul.f32 %v862, %v886
        %v895 = vmul.f32 %v863, %v886
        %v896 = vmul.f32 %v864, %v886
        %v897 = vmul.f32 %v865, %v886
        %v898 = vmul.f32 %v866, %v886
        %v899 = vmul.f32 %v867, %v886
        %v900 = vmul.f32 %v868, %v886
        %v901 = vmul.f32 %v869, %v886
        %v902 = vmul.f32 %v870, %v886
        %v903 = vmul.f32 %v871, %v886
        %v904 = vmul.f32 %v872, %v886
        %v905 = vmul.f32 %v873, %v886
        %v906 = vmul.f32 %v874, %v886
        %v907 = vmul.f32 %v875, %v886
        %v908 = vmul.f32 %v876, %v886
        %v909 = vmul.f32 %v877, %v886
        %v910 = vmul.f32 %v878, %v886
        %v911 = vmul.f32 %v879, %v886
        %v912 = vmul.f32 %v880, %v886
        %v913 = vld [vmem:[%s7] sm:$0x1]
        %v915 = vlaneseq
        %v916 = vshrl.u32 %v915, 7
        %v917 = vsub.s32 0, %v916
        %v918 = vrot.slane %v913, %v917
        %v920 = vadd.f32 %v888, %v918
        %v921 = vadd.f32 %v889, %v918
        %v922 = vadd.f32 %v890, %v918
        %v923 = vadd.f32 %v891, %v918
        %v924 = vadd.f32 %v892, %v918
        %v925 = vadd.f32 %v893, %v918
        %v926 = vadd.f32 %v894, %v918
        %v927 = vadd.f32 %v895, %v918
        %v928 = vadd.f32 %v896, %v918
        %v929 = vadd.f32 %v897, %v918
        %v930 = vadd.f32 %v898, %v918
        %v931 = vadd.f32 %v899, %v918
        %v932 = vadd.f32 %v900, %v918
        %v933 = vadd.f32 %v901, %v918
        %v934 = vadd.f32 %v902, %v918
        %v935 = vadd.f32 %v903, %v918
        %v936 = vadd.f32 %v904, %v918
        %v937 = vadd.f32 %v905, %v918
        %v938 = vadd.f32 %v906, %v918
        %v939 = vadd.f32 %v907, %v918
        %v940 = vadd.f32 %v908, %v918
        %v941 = vadd.f32 %v909, %v918
        %v942 = vadd.f32 %v910, %v918
        %v943 = vadd.f32 %v911, %v918
        %v944 = vadd.f32 %v912, %v918
        %v945 = vld [vmem:[%s1] sm:$0xff]
        %v946 = vld [vmem:[%s1 + $0x8] sm:$0xff]
        %v947 = vld [vmem:[%s1 + $0x10] sm:$0xff]
        %v948 = vld [vmem:[%s1 + $0x18] sm:$0xff]
        %v949 = vld [vmem:[%s1 + $0x20] sm:$0xff]
        %v950 = vld [vmem:[%s1 + $0x28] sm:$0xff]
        %v951 = vld [vmem:[%s1 + $0x30] sm:$0xff]
        %v952 = vld [vmem:[%s1 + $0x38] sm:$0xff]
        %v953 = vld [vmem:[%s1 + $0x40] sm:$0xff]
        %v954 = vld [vmem:[%s1 + $0x48] sm:$0xff]
        %v955 = vld [vmem:[%s1 + $0x50] sm:$0xff]
        %v956 = vld [vmem:[%s1 + $0x58] sm:$0xff]
        %v957 = vld [vmem:[%s1 + $0x60] sm:$0xff]
        %v958 = vld [vmem:[%s1 + $0x68] sm:$0xff]
        %v959 = vld [vmem:[%s1 + $0x70] sm:$0xff]
        %v960 = vld [vmem:[%s1 + $0x78] sm:$0xff]
        %v961 = vld [vmem:[%s1 + $0x80] sm:$0xff]
        %v962 = vld [vmem:[%s1 + $0x88] sm:$0xff]
        %v963 = vld [vmem:[%s1 + $0x90] sm:$0xff]
        %v964 = vld [vmem:[%s1 + $0x98] sm:$0xff]
        %v965 = vld [vmem:[%s1 + $0xa0] sm:$0xff]
        %v966 = vld [vmem:[%s1 + $0xa8] sm:$0xff]
        %v967 = vld [vmem:[%s1 + $0xb0] sm:$0xff]
        %v968 = vld [vmem:[%s1 + $0xb8] sm:$0xff]
        %v969 = vld [vmem:[%s1 + $0xc0] sm:$0xff]
        %v970 = vld [vmem:[%s1 + $0xc8] sm:$0xff]
        %v971 = vld [vmem:[%s1 + $0xd0] sm:$0xff]
        %v972 = vld [vmem:[%s1 + $0xd8] sm:$0xff]
        %v973 = vpack.c.bf16 %v921, %v920
        %v974 = vpack.c.bf16 %v923, %v922
        %v975 = vpack.c.bf16 %v925, %v924
        %v976 = vpack.c.bf16 %v927, %v926
        %v977 = vpack.c.bf16 %v929, %v928
        %v978 = vpack.c.bf16 %v931, %v930
        %v979 = vpack.c.bf16 %v933, %v932
        %v980 = vpack.c.bf16 %v935, %v934
        %v981 = vpack.c.bf16 %v937, %v936
        %v982 = vpack.c.bf16 %v939, %v938
        %v983 = vpack.c.bf16 %v941, %v940
        %v984 = vpack.c.bf16 %v943, %v942
        %v985 = vpack.c.bf16 %v944, %v944
        %v1014 = vunpack.c.l.b16 %v945
        %v1015 = vunpack.c.h.b16 %v945
        %v1016 = vunpack.c.l.b16 %v946
        %v1017 = vunpack.c.h.b16 %v946
        %v1018 = vunpack.c.l.b16 %v947
        %v1019 = vunpack.c.h.b16 %v947
        %v1020 = vunpack.c.l.b16 %v948
        %v1021 = vunpack.c.h.b16 %v948
        %v1022 = vunpack.c.l.b16 %v949
        %v1023 = vunpack.c.h.b16 %v949
        %v1024 = vunpack.c.l.b16 %v950
        %v1025 = vunpack.c.h.b16 %v950
        %v1026 = vunpack.c.l.b16 %v951
        %v1027 = vunpack.c.h.b16 %v951
        %v1028 = vunpack.c.l.b16 %v952
        %v1029 = vunpack.c.h.b16 %v952
        %v1030 = vunpack.c.l.b16 %v953
        %v1031 = vunpack.c.h.b16 %v953
        %v1032 = vunpack.c.l.b16 %v954
        %v1033 = vunpack.c.h.b16 %v954
        %v1034 = vunpack.c.l.b16 %v955
        %v1035 = vunpack.c.h.b16 %v955
        %v1036 = vunpack.c.l.b16 %v956
        %v1037 = vunpack.c.h.b16 %v956
        %v1038 = vunpack.c.l.b16 %v957
        %v1039 = vunpack.c.h.b16 %v957
        %v1040 = vunpack.c.l.b16 %v958
        %v1041 = vunpack.c.h.b16 %v958
        %v1042 = vunpack.c.l.b16 %v959
        %v1043 = vunpack.c.h.b16 %v959
        %v1044 = vunpack.c.l.b16 %v960
        %v1045 = vunpack.c.h.b16 %v960
        %v1046 = vunpack.c.l.b16 %v961
        %v1047 = vunpack.c.h.b16 %v961
        %v1048 = vunpack.c.l.b16 %v962
        %v1049 = vunpack.c.h.b16 %v962
        %v1050 = vunpack.c.l.b16 %v963
        %v1051 = vunpack.c.h.b16 %v963
        %v1052 = vunpack.c.l.b16 %v964
        %v1053 = vunpack.c.h.b16 %v964
        %v1054 = vunpack.c.l.b16 %v965
        %v1055 = vunpack.c.h.b16 %v965
        %v1056 = vunpack.c.l.b16 %v966
        %v1057 = vunpack.c.h.b16 %v966
        %v1058 = vunpack.c.l.b16 %v967
        %v1059 = vunpack.c.h.b16 %v967
        %v1060 = vunpack.c.l.b16 %v968
        %v1061 = vunpack.c.h.b16 %v968
        %v1062 = vunpack.c.l.b16 %v969
        %v1063 = vunpack.c.h.b16 %v969
        %v1064 = vunpack.c.l.b16 %v970
        %v1065 = vunpack.c.h.b16 %v970
        %v1066 = vunpack.c.l.b16 %v971
        %v1067 = vunpack.c.h.b16 %v971
        %v1068 = vunpack.c.l.b16 %v972
        %v1069 = vunpack.c.h.b16 %v972
        %v1070 = vpack.c.b16 %v1016, %v1014
        %v1071 = vpack.c.b16 %v1017, %v1015
        %v1072 = vpack.c.b16 %v1020, %v1018
        %v1073 = vpack.c.b16 %v1021, %v1019
        %v1074 = vpack.c.b16 %v1024, %v1022
        %v1075 = vpack.c.b16 %v1025, %v1023
        %v1076 = vpack.c.b16 %v1028, %v1026
        %v1077 = vpack.c.b16 %v1029, %v1027
        %v1078 = vpack.c.b16 %v1032, %v1030
        %v1079 = vpack.c.b16 %v1033, %v1031
        %v1080 = vpack.c.b16 %v1036, %v1034
        %v1081 = vpack.c.b16 %v1037, %v1035
        %v1082 = vpack.c.b16 %v1040, %v1038
        %v1083 = vpack.c.b16 %v1041, %v1039
        %v1084 = vpack.c.b16 %v1044, %v1042
        %v1085 = vpack.c.b16 %v1045, %v1043
        %v1086 = vpack.c.b16 %v1048, %v1046
        %v1087 = vpack.c.b16 %v1049, %v1047
        %v1088 = vpack.c.b16 %v1052, %v1050
        %v1089 = vpack.c.b16 %v1053, %v1051
        %v1090 = vpack.c.b16 %v1056, %v1054
        %v1091 = vpack.c.b16 %v1057, %v1055
        %v1092 = vpack.c.b16 %v1060, %v1058
        %v1093 = vpack.c.b16 %v1061, %v1059
        %v1094 = vpack.c.b16 %v1064, %v1062
        %v1095 = vpack.c.b16 %v1065, %v1063
        %v1096 = vpack.c.b16 %v1068, %v1066
        %v1097 = vpack.c.b16 %v1069, %v1067
        %vm1112 = vcmask 556032
        %v1114 = vsel %vm1112, %v1071, 0
        %v1117 = vsel %vm1112, %v1073, 0
        %v1120 = vsel %vm1112, %v1075, 0
        %v1123 = vsel %vm1112, %v1077, 0
        %v1126 = vsel %vm1112, %v1079, 0
        %v1129 = vsel %vm1112, %v1081, 0
        %v1132 = vsel %vm1112, %v1083, 0
        %v1135 = vsel %vm1112, %v1085, 0
        %v1138 = vsel %vm1112, %v1087, 0
        %v1141 = vsel %vm1112, %v1089, 0
        %v1144 = vsel %vm1112, %v1091, 0
        %v1147 = vsel %vm1112, %v1093, 0
        %v1150 = vsel %vm1112, %v1095, 0
        %v1153 = vsel %vm1112, %v1097, 0
        %vm1155 = vcmask 1041408
        %v1157 = vsel %vm1155, %v985, 0
        %1159 = vmatprep.subr.bf16.mxu0 0
        %1160 = vmatpush1.bf16.msra.mxu0 %v980
        %1161 = vmatprep.subr.bf16.mxu0 0
        %1162 = vmatpush1.bf16.msra.mxu0 %v979
        %1163 = vmatprep.subr.bf16.mxu0 0
        %1164 = vmatpush1.bf16.msra.mxu0 %v978
        %1165 = vmatprep.subr.bf16.mxu0 0
        %1166 = vmatpush1.bf16.msra.mxu0 %v977
        %1167 = vmatprep.subr.bf16.mxu0 0
        %1168 = vmatpush1.bf16.msra.mxu0 %v976
        %1169 = vmatprep.subr.bf16.mxu0 0
        %1170 = vmatpush1.bf16.msra.mxu0 %v975
        %1171 = vmatprep.subr.bf16.mxu0 0
        %1172 = vmatpush1.bf16.msra.mxu0 %v974
        %1173 = vmatprep.subr.bf16.mxu0 0
        %1174 = vmatpush1.bf16.msra.mxu0 %v973
        %1175 = vmatprep.subr.bf16.mxu0 0
        %1176 = vmatpush2.bf16.msra.mxu0 0
        %1177 = vmatprep.subr.bf16.mxu0 0
        %1178 = vmatpush2.bf16.msra.mxu0 0
        %1179 = vmatprep.subr.bf16.mxu0 0
        %1180 = vmatpush2.bf16.msra.mxu0 0
        %1181 = vmatprep.subr.bf16.mxu0 0
        %1182 = vmatpush2.bf16.msra.mxu0 %v1157
        %1183 = vmatprep.subr.bf16.mxu0 0
        %1184 = vmatpush2.bf16.msra.mxu0 %v984
        %1185 = vmatprep.subr.bf16.mxu0 0
        %1186 = vmatpush2.bf16.msra.mxu0 %v983
        %1187 = vmatprep.subr.bf16.mxu0 0
        %1188 = vmatpush2.bf16.msra.mxu0 %v982
        %1189 = vmatprep.subr.bf16.mxu0 0
        %1190 = vmatpush2.bf16.msra.mxu0 %v981
        %1191 = vmatprep.mubr.bf16.mxu0 %v1114
        %1192 = vmatmul.mubr.bf16.gmra.mxu0 %v1070
        %v1193 = vpop.f32.mrf.mxu0
        %v1194 = vadd.f32 0.0, %v1193
        %v1195 = vpop.f32.mrf.mxu0
        %v1196 = vpop.f32.mrf.mxu0
        %v1197 = vadd.f32 0.0, %v1196
        %v1198 = vpop.f32.mrf.mxu0
        %1199 = vmatprep.mubr.bf16.mxu0 %v1117
        %1200 = vmatmul.mubr.bf16.gmra.mxu0 %v1072
        %v1201 = vpop.f32.mrf.mxu0
        %v1202 = vadd.f32 0.0, %v1201
        %v1203 = vpop.f32.mrf.mxu0
        %v1204 = vpop.f32.mrf.mxu0
        %v1205 = vadd.f32 0.0, %v1204
        %v1206 = vpop.f32.mrf.mxu0
        %1207 = vmatprep.mubr.bf16.mxu0 %v1120
        %1208 = vmatmul.mubr.bf16.gmra.mxu0 %v1074
        %v1209 = vpop.f32.mrf.mxu0
        %v1210 = vadd.f32 0.0, %v1209
        %v1211 = vpop.f32.mrf.mxu0
        %v1212 = vpop.f32.mrf.mxu0
        %v1213 = vadd.f32 0.0, %v1212
        %v1214 = vpop.f32.mrf.mxu0
        %1215 = vmatprep.mubr.bf16.mxu0 %v1123
        %1216 = vmatmul.mubr.bf16.gmra.mxu0 %v1076
        %v1217 = vpop.f32.mrf.mxu0
        %v1218 = vadd.f32 0.0, %v1217
        %v1219 = vpop.f32.mrf.mxu0
        %v1220 = vpop.f32.mrf.mxu0
        %v1221 = vadd.f32 0.0, %v1220
        %v1222 = vpop.f32.mrf.mxu0
        %1223 = vmatprep.mubr.bf16.mxu0 %v1126
        %1224 = vmatmul.mubr.bf16.gmra.mxu0 %v1078
        %v1225 = vpop.f32.mrf.mxu0
        %v1226 = vadd.f32 0.0, %v1225
        %v1227 = vpop.f32.mrf.mxu0
        %v1228 = vpop.f32.mrf.mxu0
        %v1229 = vadd.f32 0.0, %v1228
        %v1230 = vpop.f32.mrf.mxu0
        %1231 = vmatprep.mubr.bf16.mxu0 %v1129
        %1232 = vmatmul.mubr.bf16.gmra.mxu0 %v1080
        %v1233 = vpop.f32.mrf.mxu0
        %v1234 = vadd.f32 0.0, %v1233
        %v1235 = vpop.f32.mrf.mxu0
        %v1236 = vpop.f32.mrf.mxu0
        %v1237 = vadd.f32 0.0, %v1236
        %v1238 = vpop.f32.mrf.mxu0
        %1239 = vmatprep.mubr.bf16.mxu0 %v1132
        %1240 = vmatmul.mubr.bf16.gmra.mxu0 %v1082
        %v1241 = vpop.f32.mrf.mxu0
        %v1242 = vadd.f32 0.0, %v1241
        %v1243 = vpop.f32.mrf.mxu0
        %v1244 = vpop.f32.mrf.mxu0
        %v1245 = vadd.f32 0.0, %v1244
        %v1246 = vpop.f32.mrf.mxu0
        %1247 = vmatprep.mubr.bf16.mxu0 %v1135
        %1248 = vmatmul.mubr.bf16.gmra.mxu0 %v1084
        %v1249 = vpop.f32.mrf.mxu0
        %v1250 = vadd.f32 0.0, %v1249
        %v1251 = vpop.f32.mrf.mxu0
        %v1252 = vpop.f32.mrf.mxu0
        %v1253 = vadd.f32 0.0, %v1252
        %v1254 = vpop.f32.mrf.mxu0
        %1255 = vmatprep.mubr.bf16.mxu0 %v1138
        %1256 = vmatmul.mubr.bf16.gmra.mxu0 %v1086
        %v1257 = vpop.f32.mrf.mxu0
        %v1258 = vadd.f32 0.0, %v1257
        %v1259 = vpop.f32.mrf.mxu0
        %v1260 = vpop.f32.mrf.mxu0
        %v1261 = vadd.f32 0.0, %v1260
        %v1262 = vpop.f32.mrf.mxu0
        %1263 = vmatprep.mubr.bf16.mxu0 %v1141
        %1264 = vmatmul.mubr.bf16.gmra.mxu0 %v1088
        %v1265 = vpop.f32.mrf.mxu0
        %v1266 = vadd.f32 0.0, %v1265
        %v1267 = vpop.f32.mrf.mxu0
        %v1268 = vpop.f32.mrf.mxu0
        %v1269 = vadd.f32 0.0, %v1268
        %v1270 = vpop.f32.mrf.mxu0
        %1271 = vmatprep.mubr.bf16.mxu0 %v1144
        %1272 = vmatmul.mubr.bf16.gmra.mxu0 %v1090
        %v1273 = vpop.f32.mrf.mxu0
        %v1274 = vadd.f32 0.0, %v1273
        %v1275 = vpop.f32.mrf.mxu0
        %v1276 = vpop.f32.mrf.mxu0
        %v1277 = vadd.f32 0.0, %v1276
        %v1278 = vpop.f32.mrf.mxu0
        %1279 = vmatprep.mubr.bf16.mxu0 %v1147
        %1280 = vmatmul.mubr.bf16.gmra.mxu0 %v1092
        %v1281 = vpop.f32.mrf.mxu0
        %v1282 = vadd.f32 0.0, %v1281
        %v1283 = vpop.f32.mrf.mxu0
        %v1284 = vpop.f32.mrf.mxu0
        %v1285 = vadd.f32 0.0, %v1284
        %v1286 = vpop.f32.mrf.mxu0
        %1287 = vmatprep.mubr.bf16.mxu0 %v1150
        %1288 = vmatmul.mubr.bf16.gmra.mxu0 %v1094
        %v1289 = vpop.f32.mrf.mxu0
        %v1290 = vadd.f32 0.0, %v1289
        %v1291 = vpop.f32.mrf.mxu0
        %v1292 = vpop.f32.mrf.mxu0
        %v1293 = vadd.f32 0.0, %v1292
        %v1294 = vpop.f32.mrf.mxu0
        %1295 = vmatprep.mubr.bf16.mxu0 %v1153
        %1296 = vmatmul.mubr.bf16.gmra.mxu0 %v1096
        %v1297 = vpop.f32.mrf.mxu0
        %v1298 = vadd.f32 0.0, %v1297
        %v1299 = vpop.f32.mrf.mxu0
        %v1300 = vpop.f32.mrf.mxu0
        %v1301 = vadd.f32 0.0, %v1300
        %v1302 = vpop.f32.mrf.mxu0
        %1303 = vdwg.mxu0
        %v1304 = vmul.f32 %v1194, %v499
        %v1305 = vmul.f32 %v1197, %v500
        %v1306 = vmul.f32 %v1202, %v501
        %v1307 = vmul.f32 %v1205, %v502
        %v1308 = vmul.f32 %v1210, %v503
        %v1309 = vmul.f32 %v1213, %v504
        %v1310 = vmul.f32 %v1218, %v505
        %v1311 = vmul.f32 %v1221, %v506
        %v1312 = vmul.f32 %v1226, %v507
        %v1313 = vmul.f32 %v1229, %v508
        %v1314 = vmul.f32 %v1234, %v509
        %v1315 = vmul.f32 %v1237, %v510
        %v1316 = vmul.f32 %v1242, %v511
        %v1317 = vmul.f32 %v1245, %v512
        %v1318 = vmul.f32 %v1250, %v513
        %v1319 = vmul.f32 %v1253, %v514
        %v1320 = vmul.f32 %v1258, %v515
        %v1321 = vmul.f32 %v1261, %v516
        %v1322 = vmul.f32 %v1266, %v517
        %v1323 = vmul.f32 %v1269, %v518
        %v1324 = vmul.f32 %v1274, %v519
        %v1325 = vmul.f32 %v1277, %v520
        %v1326 = vmul.f32 %v1282, %v521
        %v1327 = vmul.f32 %v1285, %v522
        %v1328 = vmul.f32 %v1290, %v523
        %v1329 = vmul.f32 %v1293, %v524
        %v1330 = vmul.f32 %v1298, %v525
        %v1331 = vmul.f32 %v1301, %v526
        %v1332 = vsub.f32 %v1304, %v1318
        %v1333 = vsub.f32 %v1305, %v1319
        %v1334 = vsub.f32 %v1306, %v1320
        %v1335 = vsub.f32 %v1307, %v1321
        %v1336 = vsub.f32 %v1308, %v1322
        %v1337 = vsub.f32 %v1309, %v1323
        %v1338 = vsub.f32 %v1310, %v1324
        %v1339 = vsub.f32 %v1311, %v1325
        %v1340 = vsub.f32 %v1312, %v1326
        %v1341 = vsub.f32 %v1313, %v1327
        %v1342 = vsub.f32 %v1314, %v1328
        %v1343 = vsub.f32 %v1315, %v1329
        %v1344 = vsub.f32 %v1316, %v1330
        %v1345 = vsub.f32 %v1317, %v1331
        %v1346 = vpack.c.bf16 %v1333, %v1332
        %v1347 = vpack.c.bf16 %v1335, %v1334
        %v1348 = vpack.c.bf16 %v1337, %v1336
        %v1349 = vpack.c.bf16 %v1339, %v1338
        %v1350 = vpack.c.bf16 %v1341, %v1340
        %v1351 = vpack.c.bf16 %v1343, %v1342
        %v1352 = vpack.c.bf16 %v1345, %v1344
        %v1353 = vmul.f32 %v1194, %v513
        %v1354 = vmul.f32 %v1197, %v514
        %v1355 = vmul.f32 %v1202, %v515
        %v1356 = vmul.f32 %v1205, %v516
        %v1357 = vmul.f32 %v1210, %v517
        %v1358 = vmul.f32 %v1213, %v518
        %v1359 = vmul.f32 %v1218, %v519
        %v1360 = vmul.f32 %v1221, %v520
        %v1361 = vmul.f32 %v1226, %v521
        %v1362 = vmul.f32 %v1229, %v522
        %v1363 = vmul.f32 %v1234, %v523
        %v1364 = vmul.f32 %v1237, %v524
        %v1365 = vmul.f32 %v1242, %v525
        %v1366 = vmul.f32 %v1245, %v526
        %v1367 = vmul.f32 %v1250, %v499
        %v1368 = vmul.f32 %v1253, %v500
        %v1369 = vmul.f32 %v1258, %v501
        %v1370 = vmul.f32 %v1261, %v502
        %v1371 = vmul.f32 %v1266, %v503
        %v1372 = vmul.f32 %v1269, %v504
        %v1373 = vmul.f32 %v1274, %v505
        %v1374 = vmul.f32 %v1277, %v506
        %v1375 = vmul.f32 %v1282, %v507
        %v1376 = vmul.f32 %v1285, %v508
        %v1377 = vmul.f32 %v1290, %v509
        %v1378 = vmul.f32 %v1293, %v510
        %v1379 = vmul.f32 %v1298, %v511
        %v1380 = vmul.f32 %v1301, %v512
        %v1381 = vadd.f32 %v1353, %v1367
        %v1382 = vadd.f32 %v1354, %v1368
        %v1383 = vadd.f32 %v1355, %v1369
        %v1384 = vadd.f32 %v1356, %v1370
        %v1385 = vadd.f32 %v1357, %v1371
        %v1386 = vadd.f32 %v1358, %v1372
        %v1387 = vadd.f32 %v1359, %v1373
        %v1388 = vadd.f32 %v1360, %v1374
        %v1389 = vadd.f32 %v1361, %v1375
        %v1390 = vadd.f32 %v1362, %v1376
        %v1391 = vadd.f32 %v1363, %v1377
        %v1392 = vadd.f32 %v1364, %v1378
        %v1393 = vadd.f32 %v1365, %v1379
        %v1394 = vadd.f32 %v1366, %v1380
        %v1395 = vpack.c.bf16 %v1382, %v1381
        %v1396 = vpack.c.bf16 %v1384, %v1383
        %v1397 = vpack.c.bf16 %v1386, %v1385
        %v1398 = vpack.c.bf16 %v1388, %v1387
        %v1399 = vpack.c.bf16 %v1390, %v1389
        %v1400 = vpack.c.bf16 %v1392, %v1391
        %v1401 = vpack.c.bf16 %v1394, %v1393
        %v1402 = vld [vmem:[#allocation2] sm:$0xf]
        %v1403 = vld [vmem:[#allocation2 + $0x4] sm:$0xf]
        %v1404 = vld [vmem:[#allocation2 + $0x8] sm:$0xf]
        %v1405 = vld [vmem:[#allocation2 + $0xc] sm:$0xf]
        %v1406 = vld [vmem:[#allocation2 + $0x10] sm:$0xf]
        %v1407 = vld [vmem:[#allocation2 + $0x14] sm:$0xf]
        %v1408 = vld [vmem:[#allocation2 + $0x18] sm:$0xf]
        %v1409 = vld [vmem:[#allocation2 + $0x1c] sm:$0xf]
        %v1410 = vld [vmem:[#allocation2 + $0x20] sm:$0xf]
        %v1411 = vld [vmem:[#allocation2 + $0x24] sm:$0xf]
        %v1412 = vld [vmem:[#allocation2 + $0x28] sm:$0xf]
        %v1413 = vld [vmem:[#allocation2 + $0x2c] sm:$0xf]
        %v1414 = vld [vmem:[#allocation2 + $0x30] sm:$0xf]
        %v1415 = vld [vmem:[#allocation2 + $0x34] sm:$0xf]
        %v1416 = vld [vmem:[#allocation2 + $0x38] sm:$0xf]
        %v1417 = vld [vmem:[#allocation2 + $0x3c] sm:$0xf]
        %v1418 = vld [vmem:[#allocation2 + $0x40] sm:$0xf]
        %v1419 = vld [vmem:[#allocation2 + $0x44] sm:$0xf]
        %v1420 = vld [vmem:[#allocation2 + $0x48] sm:$0xf]
        %v1421 = vld [vmem:[#allocation2 + $0x4c] sm:$0xf]
        %v1422 = vld [vmem:[#allocation2 + $0x50] sm:$0xf]
        %v1423 = vld [vmem:[#allocation2 + $0x54] sm:$0xf]
        %v1424 = vld [vmem:[#allocation2 + $0x58] sm:$0xf]
        %v1425 = vld [vmem:[#allocation2 + $0x5c] sm:$0xf]
        %v1426 = vld [vmem:[#allocation2 + $0x60] sm:$0x3]
        %v1427 = vld [vmem:[#allocation4] sm:$0xf]
        %v1428 = vld [vmem:[#allocation4 + $0x4] sm:$0xf]
        %v1429 = vld [vmem:[#allocation4 + $0x8] sm:$0xf]
        %v1430 = vld [vmem:[#allocation4 + $0xc] sm:$0xf]
        %v1431 = vld [vmem:[#allocation4 + $0x10] sm:$0xf]
        %v1432 = vld [vmem:[#allocation4 + $0x14] sm:$0xf]
        %v1433 = vld [vmem:[#allocation4 + $0x18] sm:$0xf]
        %v1434 = vld [vmem:[#allocation4 + $0x1c] sm:$0xf]
        %v1435 = vld [vmem:[#allocation4 + $0x20] sm:$0xf]
        %v1436 = vld [vmem:[#allocation4 + $0x24] sm:$0xf]
        %v1437 = vld [vmem:[#allocation4 + $0x28] sm:$0xf]
        %v1438 = vld [vmem:[#allocation4 + $0x2c] sm:$0xf]
        %v1439 = vld [vmem:[#allocation4 + $0x30] sm:$0xf]
        %v1440 = vld [vmem:[#allocation4 + $0x34] sm:$0xf]
        %v1441 = vld [vmem:[#allocation4 + $0x38] sm:$0xf]
        %v1442 = vld [vmem:[#allocation4 + $0x3c] sm:$0xf]
        %v1443 = vld [vmem:[#allocation4 + $0x40] sm:$0xf]
        %v1444 = vld [vmem:[#allocation4 + $0x44] sm:$0xf]
        %v1445 = vld [vmem:[#allocation4 + $0x48] sm:$0xf]
        %v1446 = vld [vmem:[#allocation4 + $0x4c] sm:$0xf]
        %v1447 = vld [vmem:[#allocation4 + $0x50] sm:$0xf]
        %v1448 = vld [vmem:[#allocation4 + $0x54] sm:$0xf]
        %v1449 = vld [vmem:[#allocation4 + $0x58] sm:$0xf]
        %v1450 = vld [vmem:[#allocation4 + $0x5c] sm:$0xf]
        %v1451 = vld [vmem:[#allocation4 + $0x60] sm:$0x3]
        %v1477 = vunpack.c.l.b16 %v1427
        %v1478 = vunpack.c.l.b16 %v1428
        %v1479 = vunpack.c.l.b16 %v1429
        %v1480 = vunpack.c.l.b16 %v1430
        %v1481 = vunpack.c.l.b16 %v1431
        %v1482 = vunpack.c.l.b16 %v1432
        %v1483 = vunpack.c.l.b16 %v1433
        %v1484 = vunpack.c.l.b16 %v1434
        %v1485 = vunpack.c.l.b16 %v1435
        %v1486 = vunpack.c.l.b16 %v1436
        %v1487 = vunpack.c.l.b16 %v1437
        %v1488 = vunpack.c.l.b16 %v1438
        %v1489 = vunpack.c.l.b16 %v1439
        %v1490 = vunpack.c.l.b16 %v1440
        %v1491 = vunpack.c.l.b16 %v1441
        %v1492 = vunpack.c.l.b16 %v1442
        %v1493 = vunpack.c.l.b16 %v1443
        %v1494 = vunpack.c.l.b16 %v1444
        %v1495 = vunpack.c.l.b16 %v1445
        %v1496 = vunpack.c.l.b16 %v1446
        %v1497 = vunpack.c.l.b16 %v1447
        %v1498 = vunpack.c.l.b16 %v1448
        %v1499 = vunpack.c.l.b16 %v1449
        %v1500 = vunpack.c.l.b16 %v1450
        %v1501 = vunpack.c.l.b16 %v1451
        %v1502 = vpack.c.b16 %v1478, %v1477
        %v1503 = vpack.c.b16 %v1480, %v1479
        %v1504 = vpack.c.b16 %v1482, %v1481
        %v1505 = vpack.c.b16 %v1484, %v1483
        %v1506 = vpack.c.b16 %v1486, %v1485
        %v1507 = vpack.c.b16 %v1488, %v1487
        %v1508 = vpack.c.b16 %v1490, %v1489
        %v1509 = vpack.c.b16 %v1492, %v1491
        %v1510 = vpack.c.b16 %v1494, %v1493
        %v1511 = vpack.c.b16 %v1496, %v1495
        %v1512 = vpack.c.b16 %v1498, %v1497
        %v1513 = vpack.c.b16 %v1500, %v1499
        %v1514 = vpack.c.b16 %v1501, %v1501
        %vm1515 = vcmask 916480
        %v1517 = vsel %vm1515, %v1502, 0
        %v1520 = vsel %vm1515, %v1503, 0
        %v1523 = vsel %vm1515, %v1504, 0
        %v1526 = vsel %vm1515, %v1505, 0
        %v1529 = vsel %vm1515, %v1506, 0
        %v1532 = vsel %vm1515, %v1507, 0
        %v1535 = vsel %vm1515, %v1508, 0
        %v1538 = vsel %vm1515, %v1509, 0
        %v1541 = vsel %vm1515, %v1510, 0
        %v1544 = vsel %vm1515, %v1511, 0
        %v1547 = vsel %vm1515, %v1512, 0
        %v1550 = vsel %vm1515, %v1513, 0
        %v1553 = vsel %vm1515, %v1514, 0
        %1555 = vmatprep.subr.bf16.mxu0 0
        %1556 = vmatpush1.bf16.msra.mxu0 0
        %1557 = vmatprep.subr.bf16.mxu0 0
        %1558 = vmatpush1.bf16.msra.mxu0 %v1401
        %1559 = vmatprep.subr.bf16.mxu0 0
        %1560 = vmatpush1.bf16.msra.mxu0 %v1400
        %1561 = vmatprep.subr.bf16.mxu0 0
        %1562 = vmatpush1.bf16.msra.mxu0 %v1399
        %1563 = vmatprep.subr.bf16.mxu0 0
        %1564 = vmatpush1.bf16.msra.mxu0 %v1398
        %1565 = vmatprep.subr.bf16.mxu0 0
        %1566 = vmatpush1.bf16.msra.mxu0 %v1397
        %1567 = vmatprep.subr.bf16.mxu0 0
        %1568 = vmatpush1.bf16.msra.mxu0 %v1396
        %1569 = vmatprep.subr.bf16.mxu0 0
        %1570 = vmatpush1.bf16.msra.mxu0 %v1395
        %1571 = vmatprep.subr.bf16.mxu0 0
        %1572 = vmatpush2.bf16.msra.mxu0 0
        %1573 = vmatprep.subr.bf16.mxu0 0
        %1574 = vmatpush2.bf16.msra.mxu0 0
        %1575 = vmatprep.subr.bf16.mxu0 0
        %1576 = vmatpush2.bf16.msra.mxu0 0
        %1577 = vmatprep.subr.bf16.mxu0 0
        %1578 = vmatpush2.bf16.msra.mxu0 0
        %1579 = vmatprep.subr.bf16.mxu0 0
        %1580 = vmatpush2.bf16.msra.mxu0 0
        %1581 = vmatprep.subr.bf16.mxu0 0
        %1582 = vmatpush2.bf16.msra.mxu0 0
        %1583 = vmatprep.subr.bf16.mxu0 0
        %1584 = vmatpush2.bf16.msra.mxu0 0
        %1585 = vmatprep.subr.bf16.mxu0 0
        %1586 = vmatpush2.bf16.msra.mxu0 0
        %1587 = vmatprep.mubr.bf16.mxu0 0
        %1588 = vmatmul.mubr.bf16.gmra.mxu0 %v1517
        %v1589 = vpop.f32.mrf.mxu0
        %v1590 = vadd.f32 0.0, %v1589
        %v1591 = vpop.f32.mrf.mxu0
        %v1592 = vpop.f32.mrf.mxu0
        %v1593 = vadd.f32 0.0, %v1592
        %v1594 = vpop.f32.mrf.mxu0
        %1595 = vmatprep.mubr.bf16.mxu0 0
        %1596 = vmatmul.mubr.bf16.gmra.mxu0 %v1520
        %v1597 = vpop.f32.mrf.mxu0
        %v1598 = vadd.f32 0.0, %v1597
        %v1599 = vpop.f32.mrf.mxu0
        %v1600 = vpop.f32.mrf.mxu0
        %v1601 = vadd.f32 0.0, %v1600
        %v1602 = vpop.f32.mrf.mxu0
        %1603 = vmatprep.mubr.bf16.mxu0 0
        %1604 = vmatmul.mubr.bf16.gmra.mxu0 %v1523
        %v1605 = vpop.f32.mrf.mxu0
        %v1606 = vadd.f32 0.0, %v1605
        %v1607 = vpop.f32.mrf.mxu0
        %v1608 = vpop.f32.mrf.mxu0
        %v1609 = vadd.f32 0.0, %v1608
        %v1610 = vpop.f32.mrf.mxu0
        %1611 = vmatprep.mubr.bf16.mxu0 0
        %1612 = vmatmul.mubr.bf16.gmra.mxu0 %v1526
        %v1613 = vpop.f32.mrf.mxu0
        %v1614 = vadd.f32 0.0, %v1613
        %v1615 = vpop.f32.mrf.mxu0
        %v1616 = vpop.f32.mrf.mxu0
        %v1617 = vadd.f32 0.0, %v1616
        %v1618 = vpop.f32.mrf.mxu0
        %1619 = vmatprep.mubr.bf16.mxu0 0
        %1620 = vmatmul.mubr.bf16.gmra.mxu0 %v1529
        %v1621 = vpop.f32.mrf.mxu0
        %v1622 = vadd.f32 0.0, %v1621
        %v1623 = vpop.f32.mrf.mxu0
        %v1624 = vpop.f32.mrf.mxu0
        %v1625 = vadd.f32 0.0, %v1624
        %v1626 = vpop.f32.mrf.mxu0
        %1627 = vmatprep.mubr.bf16.mxu0 0
        %1628 = vmatmul.mubr.bf16.gmra.mxu0 %v1532
        %v1629 = vpop.f32.mrf.mxu0
        %v1630 = vadd.f32 0.0, %v1629
        %v1631 = vpop.f32.mrf.mxu0
        %v1632 = vpop.f32.mrf.mxu0
        %v1633 = vadd.f32 0.0, %v1632
        %v1634 = vpop.f32.mrf.mxu0
        %1635 = vmatprep.mubr.bf16.mxu0 0
        %1636 = vmatmul.mubr.bf16.gmra.mxu0 %v1535
        %v1637 = vpop.f32.mrf.mxu0
        %v1638 = vadd.f32 0.0, %v1637
        %v1639 = vpop.f32.mrf.mxu0
        %v1640 = vpop.f32.mrf.mxu0
        %v1641 = vadd.f32 0.0, %v1640
        %v1642 = vpop.f32.mrf.mxu0
        %1643 = vmatprep.mubr.bf16.mxu0 0
        %1644 = vmatmul.mubr.bf16.gmra.mxu0 %v1538
        %v1645 = vpop.f32.mrf.mxu0
        %v1646 = vadd.f32 0.0, %v1645
        %v1647 = vpop.f32.mrf.mxu0
        %v1648 = vpop.f32.mrf.mxu0
        %v1649 = vadd.f32 0.0, %v1648
        %v1650 = vpop.f32.mrf.mxu0
        %1651 = vmatprep.mubr.bf16.mxu0 0
        %1652 = vmatmul.mubr.bf16.gmra.mxu0 %v1541
        %v1653 = vpop.f32.mrf.mxu0
        %v1654 = vadd.f32 0.0, %v1653
        %v1655 = vpop.f32.mrf.mxu0
        %v1656 = vpop.f32.mrf.mxu0
        %v1657 = vadd.f32 0.0, %v1656
        %v1658 = vpop.f32.mrf.mxu0
        %1659 = vmatprep.mubr.bf16.mxu0 0
        %1660 = vmatmul.mubr.bf16.gmra.mxu0 %v1544
        %v1661 = vpop.f32.mrf.mxu0
        %v1662 = vadd.f32 0.0, %v1661
        %v1663 = vpop.f32.mrf.mxu0
        %v1664 = vpop.f32.mrf.mxu0
        %v1665 = vadd.f32 0.0, %v1664
        %v1666 = vpop.f32.mrf.mxu0
        %1667 = vmatprep.mubr.bf16.mxu0 0
        %1668 = vmatmul.mubr.bf16.gmra.mxu0 %v1547
        %v1669 = vpop.f32.mrf.mxu0
        %v1670 = vadd.f32 0.0, %v1669
        %v1671 = vpop.f32.mrf.mxu0
        %v1672 = vpop.f32.mrf.mxu0
        %v1673 = vadd.f32 0.0, %v1672
        %v1674 = vpop.f32.mrf.mxu0
        %1675 = vmatprep.mubr.bf16.mxu0 0
        %1676 = vmatmul.mubr.bf16.gmra.mxu0 %v1550
        %v1677 = vpop.f32.mrf.mxu0
        %v1678 = vadd.f32 0.0, %v1677
        %v1679 = vpop.f32.mrf.mxu0
        %v1680 = vpop.f32.mrf.mxu0
        %v1681 = vadd.f32 0.0, %v1680
        %v1682 = vpop.f32.mrf.mxu0
        %1683 = vmatprep.mubr.bf16.mxu0 0
        %1684 = vmatmul.mubr.bf16.gmra.mxu0 %v1553
        %v1685 = vpop.f32.mrf.mxu0
        %v1686 = vadd.f32 0.0, %v1685
        %v1687 = vpop.f32.mrf.mxu0
        %v1688 = vpop.f32.mrf.mxu0
        %v1689 = vpop.f32.mrf.mxu0
        %1690 = vdwg.mxu0
        %v1716 = vunpack.c.l.b16 %v1402
        %v1717 = vunpack.c.l.b16 %v1403
        %v1718 = vunpack.c.l.b16 %v1404
        %v1719 = vunpack.c.l.b16 %v1405
        %v1720 = vunpack.c.l.b16 %v1406
        %v1721 = vunpack.c.l.b16 %v1407
        %v1722 = vunpack.c.l.b16 %v1408
        %v1723 = vunpack.c.l.b16 %v1409
        %v1724 = vunpack.c.l.b16 %v1410
        %v1725 = vunpack.c.l.b16 %v1411
        %v1726 = vunpack.c.l.b16 %v1412
        %v1727 = vunpack.c.l.b16 %v1413
        %v1728 = vunpack.c.l.b16 %v1414
        %v1729 = vunpack.c.l.b16 %v1415
        %v1730 = vunpack.c.l.b16 %v1416
        %v1731 = vunpack.c.l.b16 %v1417
        %v1732 = vunpack.c.l.b16 %v1418
        %v1733 = vunpack.c.l.b16 %v1419
        %v1734 = vunpack.c.l.b16 %v1420
        %v1735 = vunpack.c.l.b16 %v1421
        %v1736 = vunpack.c.l.b16 %v1422
        %v1737 = vunpack.c.l.b16 %v1423
        %v1738 = vunpack.c.l.b16 %v1424
        %v1739 = vunpack.c.l.b16 %v1425
        %v1740 = vunpack.c.l.b16 %v1426
        %v1741 = vpack.c.b16 %v1717, %v1716
        %v1742 = vpack.c.b16 %v1719, %v1718
        %v1743 = vpack.c.b16 %v1721, %v1720
        %v1744 = vpack.c.b16 %v1723, %v1722
        %v1745 = vpack.c.b16 %v1725, %v1724
        %v1746 = vpack.c.b16 %v1727, %v1726
        %v1747 = vpack.c.b16 %v1729, %v1728
        %v1748 = vpack.c.b16 %v1731, %v1730
        %v1749 = vpack.c.b16 %v1733, %v1732
        %v1750 = vpack.c.b16 %v1735, %v1734
        %v1751 = vpack.c.b16 %v1737, %v1736
        %v1752 = vpack.c.b16 %v1739, %v1738
        %v1753 = vpack.c.b16 %v1740, %v1740
        %v1755 = vsel %vm1515, %v1741, 0
        %v1758 = vsel %vm1515, %v1742, 0
        %v1761 = vsel %vm1515, %v1743, 0
        %v1764 = vsel %vm1515, %v1744, 0
        %v1767 = vsel %vm1515, %v1745, 0
        %v1770 = vsel %vm1515, %v1746, 0
        %v1773 = vsel %vm1515, %v1747, 0
        %v1776 = vsel %vm1515, %v1748, 0
        %v1779 = vsel %vm1515, %v1749, 0
        %v1782 = vsel %vm1515, %v1750, 0
        %v1785 = vsel %vm1515, %v1751, 0
        %v1788 = vsel %vm1515, %v1752, 0
        %v1791 = vsel %vm1515, %v1753, 0
        %1793 = vmatprep.subr.bf16.mxu0 0
        %1794 = vmatpush1.bf16.msra.mxu0 0
        %1795 = vmatprep.subr.bf16.mxu0 0
        %1796 = vmatpush1.bf16.msra.mxu0 %v1352
        %1797 = vmatprep.subr.bf16.mxu0 0
        %1798 = vmatpush1.bf16.msra.mxu0 %v1351
        %1799 = vmatprep.subr.bf16.mxu0 0
        %1800 = vmatpush1.bf16.msra.mxu0 %v1350
        %1801 = vmatprep.subr.bf16.mxu0 0
        %1802 = vmatpush1.bf16.msra.mxu0 %v1349
        %1803 = vmatprep.subr.bf16.mxu0 0
        %1804 = vmatpush1.bf16.msra.mxu0 %v1348
        %1805 = vmatprep.subr.bf16.mxu0 0
        %1806 = vmatpush1.bf16.msra.mxu0 %v1347
        %1807 = vmatprep.subr.bf16.mxu0 0
        %1808 = vmatpush1.bf16.msra.mxu0 %v1346
        %1809 = vmatprep.subr.bf16.mxu0 0
        %1810 = vmatpush2.bf16.msra.mxu0 0
        %1811 = vmatprep.subr.bf16.mxu0 0
        %1812 = vmatpush2.bf16.msra.mxu0 0
        %1813 = vmatprep.subr.bf16.mxu0 0
        %1814 = vmatpush2.bf16.msra.mxu0 0
        %1815 = vmatprep.subr.bf16.mxu0 0
        %1816 = vmatpush2.bf16.msra.mxu0 0
        %1817 = vmatprep.subr.bf16.mxu0 0
        %1818 = vmatpush2.bf16.msra.mxu0 0
        %1819 = vmatprep.subr.bf16.mxu0 0
        %1820 = vmatpush2.bf16.msra.mxu0 0
        %1821 = vmatprep.subr.bf16.mxu0 0
        %1822 = vmatpush2.bf16.msra.mxu0 0
        %1823 = vmatprep.subr.bf16.mxu0 0
        %1824 = vmatpush2.bf16.msra.mxu0 0
        %1825 = vmatprep.mubr.bf16.mxu0 0
        %1826 = vmatmul.mubr.bf16.gmra.mxu0 %v1755
        %v1827 = vpop.f32.mrf.mxu0
        %v1828 = vadd.f32 %v1590, %v1827
        %v1829 = vpop.f32.mrf.mxu0
        %v1830 = vpop.f32.mrf.mxu0
        %v1831 = vadd.f32 %v1593, %v1830
        %v1832 = vpop.f32.mrf.mxu0
        %1833 = vmatprep.mubr.bf16.mxu0 0
        %1834 = vmatmul.mubr.bf16.gmra.mxu0 %v1758
        %v1835 = vpop.f32.mrf.mxu0
        %v1836 = vadd.f32 %v1598, %v1835
        %v1837 = vpop.f32.mrf.mxu0
        %v1838 = vpop.f32.mrf.mxu0
        %v1839 = vadd.f32 %v1601, %v1838
        %v1840 = vpop.f32.mrf.mxu0
        %1841 = vmatprep.mubr.bf16.mxu0 0
        %1842 = vmatmul.mubr.bf16.gmra.mxu0 %v1761
        %v1843 = vpop.f32.mrf.mxu0
        %v1844 = vadd.f32 %v1606, %v1843
        %v1845 = vpop.f32.mrf.mxu0
        %v1846 = vpop.f32.mrf.mxu0
        %v1847 = vadd.f32 %v1609, %v1846
        %v1848 = vpop.f32.mrf.mxu0
        %1849 = vmatprep.mubr.bf16.mxu0 0
        %1850 = vmatmul.mubr.bf16.gmra.mxu0 %v1764
        %v1851 = vpop.f32.mrf.mxu0
        %v1852 = vadd.f32 %v1614, %v1851
        %v1853 = vpop.f32.mrf.mxu0
        %v1854 = vpop.f32.mrf.mxu0
        %v1855 = vadd.f32 %v1617, %v1854
        %v1856 = vpop.f32.mrf.mxu0
        %1857 = vmatprep.mubr.bf16.mxu0 0
        %1858 = vmatmul.mubr.bf16.gmra.mxu0 %v1767
        %v1859 = vpop.f32.mrf.mxu0
        %v1860 = vadd.f32 %v1622, %v1859
        %v1861 = vpop.f32.mrf.mxu0
        %v1862 = vpop.f32.mrf.mxu0
        %v1863 = vadd.f32 %v1625, %v1862
        %v1864 = vpop.f32.mrf.mxu0
        %1865 = vmatprep.mubr.bf16.mxu0 0
        %1866 = vmatmul.mubr.bf16.gmra.mxu0 %v1770
        %v1867 = vpop.f32.mrf.mxu0
        %v1868 = vadd.f32 %v1630, %v1867
        %v1869 = vpop.f32.mrf.mxu0
        %v1870 = vpop.f32.mrf.mxu0
        %v1871 = vadd.f32 %v1633, %v1870
        %v1872 = vpop.f32.mrf.mxu0
        %1873 = vmatprep.mubr.bf16.mxu0 0
        %1874 = vmatmul.mubr.bf16.gmra.mxu0 %v1773
        %v1875 = vpop.f32.mrf.mxu0
        %v1876 = vadd.f32 %v1638, %v1875
        %v1877 = vpop.f32.mrf.mxu0
        %v1878 = vpop.f32.mrf.mxu0
        %v1879 = vadd.f32 %v1641, %v1878
        %v1880 = vpop.f32.mrf.mxu0
        %1881 = vmatprep.mubr.bf16.mxu0 0
        %1882 = vmatmul.mubr.bf16.gmra.mxu0 %v1776
        %v1883 = vpop.f32.mrf.mxu0
        %v1884 = vadd.f32 %v1646, %v1883
        %v1885 = vpop.f32.mrf.mxu0
        %v1886 = vpop.f32.mrf.mxu0
        %v1887 = vadd.f32 %v1649, %v1886
        %v1888 = vpop.f32.mrf.mxu0
        %1889 = vmatprep.mubr.bf16.mxu0 0
        %1890 = vmatmul.mubr.bf16.gmra.mxu0 %v1779
        %v1891 = vpop.f32.mrf.mxu0
        %v1892 = vadd.f32 %v1654, %v1891
        %v1893 = vpop.f32.mrf.mxu0
        %v1894 = vpop.f32.mrf.mxu0
        %v1895 = vadd.f32 %v1657, %v1894
        %v1896 = vpop.f32.mrf.mxu0
        %1897 = vmatprep.mubr.bf16.mxu0 0
        %1898 = vmatmul.mubr.bf16.gmra.mxu0 %v1782
        %v1899 = vpop.f32.mrf.mxu0
        %v1900 = vadd.f32 %v1662, %v1899
        %v1901 = vpop.f32.mrf.mxu0
        %v1902 = vpop.f32.mrf.mxu0
        %v1903 = vadd.f32 %v1665, %v1902
        %v1904 = vpop.f32.mrf.mxu0
        %1905 = vmatprep.mubr.bf16.mxu0 0
        %1906 = vmatmul.mubr.bf16.gmra.mxu0 %v1785
        %v1907 = vpop.f32.mrf.mxu0
        %v1908 = vadd.f32 %v1670, %v1907
        %v1909 = vpop.f32.mrf.mxu0
        %v1910 = vpop.f32.mrf.mxu0
        %v1911 = vadd.f32 %v1673, %v1910
        %v1912 = vpop.f32.mrf.mxu0
        %1913 = vmatprep.mubr.bf16.mxu0 0
        %1914 = vmatmul.mubr.bf16.gmra.mxu0 %v1788
        %v1915 = vpop.f32.mrf.mxu0
        %v1916 = vadd.f32 %v1678, %v1915
        %v1917 = vpop.f32.mrf.mxu0
        %v1918 = vpop.f32.mrf.mxu0
        %v1919 = vadd.f32 %v1681, %v1918
        %v1920 = vpop.f32.mrf.mxu0
        %1921 = vmatprep.mubr.bf16.mxu0 0
        %1922 = vmatmul.mubr.bf16.gmra.mxu0 %v1791
        %v1923 = vpop.f32.mrf.mxu0
        %v1924 = vadd.f32 %v1686, %v1923
        %v1925 = vpop.f32.mrf.mxu0
        %v1926 = vpop.f32.mrf.mxu0
        %v1927 = vpop.f32.mrf.mxu0
        %1928 = vdwg.mxu0
        %1929 = vadd.xlane.f32.xlu0 %v1828
        %v1930 = vpop.xlane.xlu0 %1929
        %1931 = vadd.xlane.f32.xlu0 %v1831
        %v1932 = vpop.xlane.xlu0 %1931
        %1933 = vadd.xlane.f32.xlu0 %v1836
        %v1934 = vpop.xlane.xlu0 %1933
        %1935 = vadd.xlane.f32.xlu0 %v1839
        %v1936 = vpop.xlane.xlu0 %1935
        %1937 = vadd.xlane.f32.xlu0 %v1844
        %v1938 = vpop.xlane.xlu0 %1937
        %1939 = vadd.xlane.f32.xlu0 %v1847
        %v1940 = vpop.xlane.xlu0 %1939
        %1941 = vadd.xlane.f32.xlu0 %v1852
        %v1942 = vpop.xlane.xlu0 %1941
        %1943 = vadd.xlane.f32.xlu0 %v1855
        %v1944 = vpop.xlane.xlu0 %1943
        %1945 = vadd.xlane.f32.xlu0 %v1860
        %v1946 = vpop.xlane.xlu0 %1945
        %1947 = vadd.xlane.f32.xlu0 %v1863
        %v1948 = vpop.xlane.xlu0 %1947
        %1949 = vadd.xlane.f32.xlu0 %v1868
        %v1950 = vpop.xlane.xlu0 %1949
        %1951 = vadd.xlane.f32.xlu0 %v1871
        %v1952 = vpop.xlane.xlu0 %1951
        %1953 = vadd.xlane.f32.xlu0 %v1876
        %v1954 = vpop.xlane.xlu0 %1953
        %1955 = vadd.xlane.f32.xlu0 %v1879
        %v1956 = vpop.xlane.xlu0 %1955
        %1957 = vadd.xlane.f32.xlu0 %v1884
        %v1958 = vpop.xlane.xlu0 %1957
        %1959 = vadd.xlane.f32.xlu0 %v1887
        %v1960 = vpop.xlane.xlu0 %1959
        %1961 = vadd.xlane.f32.xlu0 %v1892
        %v1962 = vpop.xlane.xlu0 %1961
        %1963 = vadd.xlane.f32.xlu0 %v1895
        %v1964 = vpop.xlane.xlu0 %1963
        %1965 = vadd.xlane.f32.xlu0 %v1900
        %v1966 = vpop.xlane.xlu0 %1965
        %1967 = vadd.xlane.f32.xlu0 %v1903
        %v1968 = vpop.xlane.xlu0 %1967
        %1969 = vadd.xlane.f32.xlu0 %v1908
        %v1970 = vpop.xlane.xlu0 %1969
        %1971 = vadd.xlane.f32.xlu0 %v1911
        %v1972 = vpop.xlane.xlu0 %1971
        %1973 = vadd.xlane.f32.xlu0 %v1916
        %v1974 = vpop.xlane.xlu0 %1973
        %1975 = vadd.xlane.f32.xlu0 %v1919
        %v1976 = vpop.xlane.xlu0 %1975
        %v1977 = vsel %vm600, %v1924, 0.0
        %1978 = vadd.xlane.f32.xlu0 %v1977
        %v1979 = vpop.xlane.xlu0 %1978
        %v1980 = vmul.f32 %v1930, %v604
        %v1981 = vmul.f32 %v1932, %v604
        %v1982 = vmul.f32 %v1934, %v604
        %v1983 = vmul.f32 %v1936, %v604
        %v1984 = vmul.f32 %v1938, %v604
        %v1985 = vmul.f32 %v1940, %v604
        %v1986 = vmul.f32 %v1942, %v604
        %v1987 = vmul.f32 %v1944, %v604
        %v1988 = vmul.f32 %v1946, %v604
        %v1989 = vmul.f32 %v1948, %v604
        %v1990 = vmul.f32 %v1950, %v604
        %v1991 = vmul.f32 %v1952, %v604
        %v1992 = vmul.f32 %v1954, %v604
        %v1993 = vmul.f32 %v1956, %v604
        %v1994 = vmul.f32 %v1958, %v604
        %v1995 = vmul.f32 %v1960, %v604
        %v1996 = vmul.f32 %v1962, %v604
        %v1997 = vmul.f32 %v1964, %v604
        %v1998 = vmul.f32 %v1966, %v604
        %v1999 = vmul.f32 %v1968, %v604
        %v2000 = vmul.f32 %v1970, %v604
        %v2001 = vmul.f32 %v1972, %v604
        %v2002 = vmul.f32 %v1974, %v604
        %v2003 = vmul.f32 %v1976, %v604
        %v2004 = vmul.f32 %v1979, %v604
        %v2005 = vmul.f32 %v1828, %v1828
        %v2006 = vmul.f32 %v1831, %v1831
        %v2007 = vmul.f32 %v1836, %v1836
        %v2008 = vmul.f32 %v1839, %v1839
        %v2009 = vmul.f32 %v1844, %v1844
        %v2010 = vmul.f32 %v1847, %v1847
        %v2011 = vmul.f32 %v1852, %v1852
        %v2012 = vmul.f32 %v1855, %v1855
        %v2013 = vmul.f32 %v1860, %v1860
        %v2014 = vmul.f32 %v1863, %v1863
        %v2015 = vmul.f32 %v1868, %v1868
        %v2016 = vmul.f32 %v1871, %v1871
        %v2017 = vmul.f32 %v1876, %v1876
        %v2018 = vmul.f32 %v1879, %v1879
        %v2019 = vmul.f32 %v1884, %v1884
        %v2020 = vmul.f32 %v1887, %v1887
        %v2021 = vmul.f32 %v1892, %v1892
        %v2022 = vmul.f32 %v1895, %v1895
        %v2023 = vmul.f32 %v1900, %v1900
        %v2024 = vmul.f32 %v1903, %v1903
        %v2025 = vmul.f32 %v1908, %v1908
        %v2026 = vmul.f32 %v1911, %v1911
        %v2027 = vmul.f32 %v1916, %v1916
        %v2028 = vmul.f32 %v1919, %v1919
        %v2029 = vmul.f32 %v1924, %v1924
        %2030 = vadd.xlane.f32.xlu0 %v2005
        %v2031 = vpop.xlane.xlu0 %2030
        %2032 = vadd.xlane.f32.xlu0 %v2006
        %v2033 = vpop.xlane.xlu0 %2032
        %2034 = vadd.xlane.f32.xlu0 %v2007
        %v2035 = vpop.xlane.xlu0 %2034
        %2036 = vadd.xlane.f32.xlu0 %v2008
        %v2037 = vpop.xlane.xlu0 %2036
        %2038 = vadd.xlane.f32.xlu0 %v2009
        %v2039 = vpop.xlane.xlu0 %2038
        %2040 = vadd.xlane.f32.xlu0 %v2010
        %v2041 = vpop.xlane.xlu0 %2040
        %2042 = vadd.xlane.f32.xlu0 %v2011
        %v2043 = vpop.xlane.xlu0 %2042
        %2044 = vadd.xlane.f32.xlu0 %v2012
        %v2045 = vpop.xlane.xlu0 %2044
        %2046 = vadd.xlane.f32.xlu0 %v2013
        %v2047 = vpop.xlane.xlu0 %2046
        %2048 = vadd.xlane.f32.xlu0 %v2014
        %v2049 = vpop.xlane.xlu0 %2048
        %2050 = vadd.xlane.f32.xlu0 %v2015
        %v2051 = vpop.xlane.xlu0 %2050
        %2052 = vadd.xlane.f32.xlu0 %v2016
        %v2053 = vpop.xlane.xlu0 %2052
        %2054 = vadd.xlane.f32.xlu0 %v2017
        %v2055 = vpop.xlane.xlu0 %2054
        %2056 = vadd.xlane.f32.xlu0 %v2018
        %v2057 = vpop.xlane.xlu0 %2056
        %2058 = vadd.xlane.f32.xlu0 %v2019
        %v2059 = vpop.xlane.xlu0 %2058
        %2060 = vadd.xlane.f32.xlu0 %v2020
        %v2061 = vpop.xlane.xlu0 %2060
        %2062 = vadd.xlane.f32.xlu0 %v2021
        %v2063 = vpop.xlane.xlu0 %2062
        %2064 = vadd.xlane.f32.xlu0 %v2022
        %v2065 = vpop.xlane.xlu0 %2064
        %2066 = vadd.xlane.f32.xlu0 %v2023
        %v2067 = vpop.xlane.xlu0 %2066
        %2068 = vadd.xlane.f32.xlu0 %v2024
        %v2069 = vpop.xlane.xlu0 %2068
        %2070 = vadd.xlane.f32.xlu0 %v2025
        %v2071 = vpop.xlane.xlu0 %2070
        %2072 = vadd.xlane.f32.xlu0 %v2026
        %v2073 = vpop.xlane.xlu0 %2072
        %2074 = vadd.xlane.f32.xlu0 %v2027
        %v2075 = vpop.xlane.xlu0 %2074
        %2076 = vadd.xlane.f32.xlu0 %v2028
        %v2077 = vpop.xlane.xlu0 %2076
        %v2078 = vsel %vm600, %v2029, 0.0
        %2079 = vadd.xlane.f32.xlu0 %v2078
        %v2080 = vpop.xlane.xlu0 %2079
        %v2081 = vmul.f32 %v2031, %v604
        %v2082 = vmul.f32 %v2033, %v604
        %v2083 = vmul.f32 %v2035, %v604
        %v2084 = vmul.f32 %v2037, %v604
        %v2085 = vmul.f32 %v2039, %v604
        %v2086 = vmul.f32 %v2041, %v604
        %v2087 = vmul.f32 %v2043, %v604
        %v2088 = vmul.f32 %v2045, %v604
        %v2089 = vmul.f32 %v2047, %v604
        %v2090 = vmul.f32 %v2049, %v604
        %v2091 = vmul.f32 %v2051, %v604
        %v2092 = vmul.f32 %v2053, %v604
        %v2093 = vmul.f32 %v2055, %v604
        %v2094 = vmul.f32 %v2057, %v604
        %v2095 = vmul.f32 %v2059, %v604
        %v2096 = vmul.f32 %v2061, %v604
        %v2097 = vmul.f32 %v2063, %v604
        %v2098 = vmul.f32 %v2065, %v604
        %v2099 = vmul.f32 %v2067, %v604
        %v2100 = vmul.f32 %v2069, %v604
        %v2101 = vmul.f32 %v2071, %v604
        %v2102 = vmul.f32 %v2073, %v604
        %v2103 = vmul.f32 %v2075, %v604
        %v2104 = vmul.f32 %v2077, %v604
        %v2105 = vmul.f32 %v2080, %v604
        %v2106 = vmul.f32 %v1980, %v1980
        %v2107 = vmul.f32 %v1981, %v1981
        %v2108 = vmul.f32 %v1982, %v1982
        %v2109 = vmul.f32 %v1983, %v1983
        %v2110 = vmul.f32 %v1984, %v1984
        %v2111 = vmul.f32 %v1985, %v1985
        %v2112 = vmul.f32 %v1986, %v1986
        %v2113 = vmul.f32 %v1987, %v1987
        %v2114 = vmul.f32 %v1988, %v1988
        %v2115 = vmul.f32 %v1989, %v1989
        %v2116 = vmul.f32 %v1990, %v1990
        %v2117 = vmul.f32 %v1991, %v1991
        %v2118 = vmul.f32 %v1992, %v1992
        %v2119 = vmul.f32 %v1993, %v1993
        %v2120 = vmul.f32 %v1994, %v1994
        %v2121 = vmul.f32 %v1995, %v1995
        %v2122 = vmul.f32 %v1996, %v1996
        %v2123 = vmul.f32 %v1997, %v1997
        %v2124 = vmul.f32 %v1998, %v1998
        %v2125 = vmul.f32 %v1999, %v1999
        %v2126 = vmul.f32 %v2000, %v2000
        %v2127 = vmul.f32 %v2001, %v2001
        %v2128 = vmul.f32 %v2002, %v2002
        %v2129 = vmul.f32 %v2003, %v2003
        %v2130 = vmul.f32 %v2004, %v2004
        %v2131 = vsub.f32 %v2081, %v2106
        %v2132 = vsub.f32 %v2082, %v2107
        %v2133 = vsub.f32 %v2083, %v2108
        %v2134 = vsub.f32 %v2084, %v2109
        %v2135 = vsub.f32 %v2085, %v2110
        %v2136 = vsub.f32 %v2086, %v2111
        %v2137 = vsub.f32 %v2087, %v2112
        %v2138 = vsub.f32 %v2088, %v2113
        %v2139 = vsub.f32 %v2089, %v2114
        %v2140 = vsub.f32 %v2090, %v2115
        %v2141 = vsub.f32 %v2091, %v2116
        %v2142 = vsub.f32 %v2092, %v2117
        %v2143 = vsub.f32 %v2093, %v2118
        %v2144 = vsub.f32 %v2094, %v2119
        %v2145 = vsub.f32 %v2095, %v2120
        %v2146 = vsub.f32 %v2096, %v2121
        %v2147 = vsub.f32 %v2097, %v2122
        %v2148 = vsub.f32 %v2098, %v2123
        %v2149 = vsub.f32 %v2099, %v2124
        %v2150 = vsub.f32 %v2100, %v2125
        %v2151 = vsub.f32 %v2101, %v2126
        %v2152 = vsub.f32 %v2102, %v2127
        %v2153 = vsub.f32 %v2103, %v2128
        %v2154 = vsub.f32 %v2104, %v2129
        %v2155 = vsub.f32 %v2105, %v2130
        %v2156 = vsub.f32 %v1828, %v1980
        %v2157 = vsub.f32 %v1831, %v1981
        %v2158 = vsub.f32 %v1836, %v1982
        %v2159 = vsub.f32 %v1839, %v1983
        %v2160 = vsub.f32 %v1844, %v1984
        %v2161 = vsub.f32 %v1847, %v1985
        %v2162 = vsub.f32 %v1852, %v1986
        %v2163 = vsub.f32 %v1855, %v1987
        %v2164 = vsub.f32 %v1860, %v1988
        %v2165 = vsub.f32 %v1863, %v1989
        %v2166 = vsub.f32 %v1868, %v1990
        %v2167 = vsub.f32 %v1871, %v1991
        %v2168 = vsub.f32 %v1876, %v1992
        %v2169 = vsub.f32 %v1879, %v1993
        %v2170 = vsub.f32 %v1884, %v1994
        %v2171 = vsub.f32 %v1887, %v1995
        %v2172 = vsub.f32 %v1892, %v1996
        %v2173 = vsub.f32 %v1895, %v1997
        %v2174 = vsub.f32 %v1900, %v1998
        %v2175 = vsub.f32 %v1903, %v1999
        %v2176 = vsub.f32 %v1908, %v2000
        %v2177 = vsub.f32 %v1911, %v2001
        %v2178 = vsub.f32 %v1916, %v2002
        %v2179 = vsub.f32 %v1919, %v2003
        %v2180 = vsub.f32 %v1924, %v2004
        %v2181 = vadd.f32 %v2131, 1e-05
        %v2182 = vadd.f32 %v2132, 1e-05
        %v2183 = vadd.f32 %v2133, 1e-05
        %v2184 = vadd.f32 %v2134, 1e-05
        %v2185 = vadd.f32 %v2135, 1e-05
        %v2186 = vadd.f32 %v2136, 1e-05
        %v2187 = vadd.f32 %v2137, 1e-05
        %v2188 = vadd.f32 %v2138, 1e-05
        %v2189 = vadd.f32 %v2139, 1e-05
        %v2190 = vadd.f32 %v2140, 1e-05
        %v2191 = vadd.f32 %v2141, 1e-05
        %v2192 = vadd.f32 %v2142, 1e-05
        %v2193 = vadd.f32 %v2143, 1e-05
        %v2194 = vadd.f32 %v2144, 1e-05
        %v2195 = vadd.f32 %v2145, 1e-05
        %v2196 = vadd.f32 %v2146, 1e-05
        %v2197 = vadd.f32 %v2147, 1e-05
        %v2198 = vadd.f32 %v2148, 1e-05
        %v2199 = vadd.f32 %v2149, 1e-05
        %v2200 = vadd.f32 %v2150, 1e-05
        %v2201 = vadd.f32 %v2151, 1e-05
        %v2202 = vadd.f32 %v2152, 1e-05
        %v2203 = vadd.f32 %v2153, 1e-05
        %v2204 = vadd.f32 %v2154, 1e-05
        %v2205 = vadd.f32 %v2155, 1e-05
        %v2206 = vrsqrt.pop %v2181
        %v2207 = vrsqrt.pop %v2182
        %v2208 = vrsqrt.pop %v2183
        %v2209 = vrsqrt.pop %v2184
        %v2210 = vrsqrt.pop %v2185
        %v2211 = vrsqrt.pop %v2186
        %v2212 = vrsqrt.pop %v2187
        %v2213 = vrsqrt.pop %v2188
        %v2214 = vrsqrt.pop %v2189
        %v2215 = vrsqrt.pop %v2190
        %v2216 = vrsqrt.pop %v2191
        %v2217 = vrsqrt.pop %v2192
        %v2218 = vrsqrt.pop %v2193
        %v2219 = vrsqrt.pop %v2194
        %v2220 = vrsqrt.pop %v2195
        %v2221 = vrsqrt.pop %v2196
        %v2222 = vrsqrt.pop %v2197
        %v2223 = vrsqrt.pop %v2198
        %v2224 = vrsqrt.pop %v2199
        %v2225 = vrsqrt.pop %v2200
        %v2226 = vrsqrt.pop %v2201
        %v2227 = vrsqrt.pop %v2202
        %v2228 = vrsqrt.pop %v2203
        %v2229 = vrsqrt.pop %v2204
        %v2230 = vrsqrt.pop %v2205
        %v2231 = vmul.f32 %v2156, %v2206
        %v2232 = vmul.f32 %v2157, %v2207
        %v2233 = vmul.f32 %v2158, %v2208
        %v2234 = vmul.f32 %v2159, %v2209
        %v2235 = vmul.f32 %v2160, %v2210
        %v2236 = vmul.f32 %v2161, %v2211
        %v2237 = vmul.f32 %v2162, %v2212
        %v2238 = vmul.f32 %v2163, %v2213
        %v2239 = vmul.f32 %v2164, %v2214
        %v2240 = vmul.f32 %v2165, %v2215
        %v2241 = vmul.f32 %v2166, %v2216
        %v2242 = vmul.f32 %v2167, %v2217
        %v2243 = vmul.f32 %v2168, %v2218
        %v2244 = vmul.f32 %v2169, %v2219
        %v2245 = vmul.f32 %v2170, %v2220
        %v2246 = vmul.f32 %v2171, %v2221
        %v2247 = vmul.f32 %v2172, %v2222
        %v2248 = vmul.f32 %v2173, %v2223
        %v2249 = vmul.f32 %v2174, %v2224
        %v2250 = vmul.f32 %v2175, %v2225
        %v2251 = vmul.f32 %v2176, %v2226
        %v2252 = vmul.f32 %v2177, %v2227
        %v2253 = vmul.f32 %v2178, %v2228
        %v2254 = vmul.f32 %v2179, %v2229
        %v2255 = vmul.f32 %v2180, %v2230
        %v2256 = vld [vmem:[%s8] sm:$0x1]
        %v2258 = vlaneseq
        %v2259 = vshrl.u32 %v2258, 7
        %v2260 = vsub.s32 0, %v2259
        %v2261 = vrot.slane %v2256, %v2260
        %v2263 = vmul.f32 %v2231, %v2261
        %v2264 = vmul.f32 %v2232, %v2261
        %v2265 = vmul.f32 %v2233, %v2261
        %v2266 = vmul.f32 %v2234, %v2261
        %v2267 = vmul.f32 %v2235, %v2261
        %v2268 = vmul.f32 %v2236, %v2261
        %v2269 = vmul.f32 %v2237, %v2261
        %v2270 = vmul.f32 %v2238, %v2261
        %v2271 = vmul.f32 %v2239, %v2261
        %v2272 = vmul.f32 %v2240, %v2261
        %v2273 = vmul.f32 %v2241, %v2261
        %v2274 = vmul.f32 %v2242, %v2261
        %v2275 = vmul.f32 %v2243, %v2261
        %v2276 = vmul.f32 %v2244, %v2261
        %v2277 = vmul.f32 %v2245, %v2261
        %v2278 = vmul.f32 %v2246, %v2261
        %v2279 = vmul.f32 %v2247, %v2261
        %v2280 = vmul.f32 %v2248, %v2261
        %v2281 = vmul.f32 %v2249, %v2261
        %v2282 = vmul.f32 %v2250, %v2261
        %v2283 = vmul.f32 %v2251, %v2261
        %v2284 = vmul.f32 %v2252, %v2261
        %v2285 = vmul.f32 %v2253, %v2261
        %v2286 = vmul.f32 %v2254, %v2261
        %v2287 = vmul.f32 %v2255, %v2261
        %v2288 = vld [vmem:[%s9] sm:$0x1]
        %v2290 = vlaneseq
        %v2291 = vshrl.u32 %v2290, 7
        %v2292 = vsub.s32 0, %v2291
        %v2293 = vrot.slane %v2288, %v2292
        %v2295 = vadd.f32 %v2263, %v2293
        %v2296 = vadd.f32 %v2264, %v2293
        %v2297 = vadd.f32 %v2265, %v2293
        %v2298 = vadd.f32 %v2266, %v2293
        %v2299 = vadd.f32 %v2267, %v2293
        %v2300 = vadd.f32 %v2268, %v2293
        %v2301 = vadd.f32 %v2269, %v2293
        %v2302 = vadd.f32 %v2270, %v2293
        %v2303 = vadd.f32 %v2271, %v2293
        %v2304 = vadd.f32 %v2272, %v2293
        %v2305 = vadd.f32 %v2273, %v2293
        %v2306 = vadd.f32 %v2274, %v2293
        %v2307 = vadd.f32 %v2275, %v2293
        %v2308 = vadd.f32 %v2276, %v2293
        %v2309 = vadd.f32 %v2277, %v2293
        %v2310 = vadd.f32 %v2278, %v2293
        %v2311 = vadd.f32 %v2279, %v2293
        %v2312 = vadd.f32 %v2280, %v2293
        %v2313 = vadd.f32 %v2281, %v2293
        %v2314 = vadd.f32 %v2282, %v2293
        %v2315 = vadd.f32 %v2283, %v2293
        %v2316 = vadd.f32 %v2284, %v2293
        %v2317 = vadd.f32 %v2285, %v2293
        %v2318 = vadd.f32 %v2286, %v2293
        %v2319 = vadd.f32 %v2287, %v2293
        %v2320 = vpack.c.bf16 %v2296, %v2295
        %v2321 = vpack.c.bf16 %v2298, %v2297
        %v2322 = vpack.c.bf16 %v2300, %v2299
        %v2323 = vpack.c.bf16 %v2302, %v2301
        %v2324 = vpack.c.bf16 %v2304, %v2303
        %v2325 = vpack.c.bf16 %v2306, %v2305
        %v2326 = vpack.c.bf16 %v2308, %v2307
        %v2327 = vpack.c.bf16 %v2310, %v2309
        %v2328 = vpack.c.bf16 %v2312, %v2311
        %v2329 = vpack.c.bf16 %v2314, %v2313
        %v2330 = vpack.c.bf16 %v2316, %v2315
        %v2331 = vpack.c.bf16 %v2318, %v2317
        %v2332 = vpack.c.bf16 %v2319, %v2319
        %v2333 = vld [vmem:[%s10] sm:$0xff]
        %v2334 = vld [vmem:[%s10 + $0x8] sm:$0xff]
        %v2335 = vld [vmem:[%s10 + $0x10] sm:$0xff]
        %v2336 = vld [vmem:[%s10 + $0x18] sm:$0xff]
        %v2337 = vld [vmem:[%s10 + $0x20] sm:$0xff]
        %v2338 = vld [vmem:[%s10 + $0x28] sm:$0xff]
        %v2339 = vld [vmem:[%s10 + $0x30] sm:$0xff]
        %v2340 = vld [vmem:[%s10 + $0x38] sm:$0xff]
        %v2341 = vld [vmem:[%s10 + $0x40] sm:$0xff]
        %v2342 = vld [vmem:[%s10 + $0x48] sm:$0xff]
        %v2343 = vld [vmem:[%s10 + $0x50] sm:$0xff]
        %v2344 = vld [vmem:[%s10 + $0x58] sm:$0xff]
        %v2345 = vld [vmem:[%s10 + $0x60] sm:$0xff]
        %v2346 = vld [vmem:[%s10 + $0x68] sm:$0xff]
        %v2347 = vld [vmem:[%s10 + $0x70] sm:$0xff]
        %v2348 = vld [vmem:[%s10 + $0x78] sm:$0xff]
        %v2349 = vld [vmem:[%s10 + $0x80] sm:$0xff]
        %v2350 = vld [vmem:[%s10 + $0x88] sm:$0xff]
        %v2351 = vld [vmem:[%s10 + $0x90] sm:$0xff]
        %v2352 = vld [vmem:[%s10 + $0x98] sm:$0xff]
        %v2353 = vld [vmem:[%s10 + $0xa0] sm:$0xff]
        %v2354 = vld [vmem:[%s10 + $0xa8] sm:$0xff]
        %v2355 = vld [vmem:[%s10 + $0xb0] sm:$0xff]
        %v2356 = vld [vmem:[%s10 + $0xb8] sm:$0xff]
        %v2357 = vld [vmem:[%s10 + $0xc0] sm:$0xff]
        %v2358 = vld [vmem:[%s10 + $0xc8] sm:$0xff]
        %v2359 = vld [vmem:[%s10 + $0xd0] sm:$0xff]
        %v2360 = vld [vmem:[%s10 + $0xd8] sm:$0xff]
        %v2361 = vld [vmem:[%s10 + $0xe0] sm:$0xff]
        %v2362 = vld [vmem:[%s10 + $0xe8] sm:$0xff]
        %v2363 = vld [vmem:[%s10 + $0xf0] sm:$0xff]
        %v2364 = vld [vmem:[%s10 + $0xf8] sm:$0xff]
        %v2365 = vld [vmem:[%s11] sm:$0xf]
        %v2367 = vlaneseq
        %v2368 = vshrl.u32 %v2367, 7
        %v2369 = vsub.s32 0, %v2368
        %v2370 = vrot.slane %v2365, %v2369
        %v2371 = vlaneseq
        %v2372 = vshrl.u32 %v2371, 7
        %v2373 = vsub.s32 1, %v2372
        %v2374 = vrot.slane %v2365, %v2373
        %v2375 = vlaneseq
        %v2376 = vshrl.u32 %v2375, 7
        %v2377 = vsub.s32 2, %v2376
        %v2378 = vrot.slane %v2365, %v2377
        %v2379 = vlaneseq
        %v2380 = vshrl.u32 %v2379, 7
        %v2381 = vsub.s32 3, %v2380
        %v2382 = vrot.slane %v2365, %v2381
        %v2419 = vunpack.c.l.b16 %v2333
        %v2420 = vunpack.c.h.b16 %v2333
        %v2421 = vunpack.c.l.b16 %v2334
        %v2422 = vunpack.c.h.b16 %v2334
        %v2423 = vunpack.c.l.b16 %v2335
        %v2424 = vunpack.c.h.b16 %v2335
        %v2425 = vunpack.c.l.b16 %v2336
        %v2426 = vunpack.c.h.b16 %v2336
        %v2427 = vunpack.c.l.b16 %v2337
        %v2428 = vunpack.c.h.b16 %v2337
        %v2429 = vunpack.c.l.b16 %v2338
        %v2430 = vunpack.c.h.b16 %v2338
        %v2431 = vunpack.c.l.b16 %v2339
        %v2432 = vunpack.c.h.b16 %v2339
        %v2433 = vunpack.c.l.b16 %v2340
        %v2434 = vunpack.c.h.b16 %v2340
        %v2435 = vunpack.c.l.b16 %v2341
        %v2436 = vunpack.c.h.b16 %v2341
        %v2437 = vunpack.c.l.b16 %v2342
        %v2438 = vunpack.c.h.b16 %v2342
        %v2439 = vunpack.c.l.b16 %v2343
        %v2440 = vunpack.c.h.b16 %v2343
        %v2441 = vunpack.c.l.b16 %v2344
        %v2442 = vunpack.c.h.b16 %v2344
        %v2443 = vunpack.c.l.b16 %v2345
        %v2444 = vunpack.c.h.b16 %v2345
        %v2445 = vunpack.c.l.b16 %v2346
        %v2446 = vunpack.c.h.b16 %v2346
        %v2447 = vunpack.c.l.b16 %v2347
        %v2448 = vunpack.c.h.b16 %v2347
        %v2449 = vunpack.c.l.b16 %v2348
        %v2450 = vunpack.c.h.b16 %v2348
        %v2451 = vunpack.c.l.b16 %v2349
        %v2452 = vunpack.c.h.b16 %v2349
        %v2453 = vunpack.c.l.b16 %v2350
        %v2454 = vunpack.c.h.b16 %v2350
        %v2455 = vunpack.c.l.b16 %v2351
        %v2456 = vunpack.c.h.b16 %v2351
        %v2457 = vunpack.c.l.b16 %v2352
        %v2458 = vunpack.c.h.b16 %v2352
        %v2459 = vunpack.c.l.b16 %v2353
        %v2460 = vunpack.c.h.b16 %v2353
        %v2461 = vunpack.c.l.b16 %v2354
        %v2462 = vunpack.c.h.b16 %v2354
        %v2463 = vunpack.c.l.b16 %v2355
        %v2464 = vunpack.c.h.b16 %v2355
        %v2465 = vunpack.c.l.b16 %v2356
        %v2466 = vunpack.c.h.b16 %v2356
        %v2467 = vunpack.c.l.b16 %v2357
        %v2468 = vunpack.c.h.b16 %v2357
        %v2469 = vunpack.c.l.b16 %v2358
        %v2470 = vunpack.c.h.b16 %v2358
        %v2471 = vunpack.c.l.b16 %v2359
        %v2472 = vunpack.c.h.b16 %v2359
        %v2473 = vunpack.c.l.b16 %v2360
        %v2474 = vunpack.c.h.b16 %v2360
        %v2475 = vunpack.c.l.b16 %v2361
        %v2476 = vunpack.c.h.b16 %v2361
        %v2477 = vunpack.c.l.b16 %v2362
        %v2478 = vunpack.c.h.b16 %v2362
        %v2479 = vunpack.c.l.b16 %v2363
        %v2480 = vunpack.c.h.b16 %v2363
        %v2481 = vunpack.c.l.b16 %v2364
        %v2482 = vunpack.c.h.b16 %v2364
        %v2483 = vpack.c.b16 %v2423, %v2419
        %v2484 = vpack.c.b16 %v2424, %v2420
        %v2485 = vpack.c.b16 %v2425, %v2421
        %v2486 = vpack.c.b16 %v2426, %v2422
        %v2487 = vpack.c.b16 %v2431, %v2427
        %v2488 = vpack.c.b16 %v2432, %v2428
        %v2489 = vpack.c.b16 %v2433, %v2429
        %v2490 = vpack.c.b16 %v2434, %v2430
        %v2491 = vpack.c.b16 %v2439, %v2435
        %v2492 = vpack.c.b16 %v2440, %v2436
        %v2493 = vpack.c.b16 %v2441, %v2437
        %v2494 = vpack.c.b16 %v2442, %v2438
        %v2495 = vpack.c.b16 %v2447, %v2443
        %v2496 = vpack.c.b16 %v2448, %v2444
        %v2497 = vpack.c.b16 %v2449, %v2445
        %v2498 = vpack.c.b16 %v2450, %v2446
        %v2499 = vpack.c.b16 %v2455, %v2451
        %v2500 = vpack.c.b16 %v2456, %v2452
        %v2501 = vpack.c.b16 %v2457, %v2453
        %v2502 = vpack.c.b16 %v2458, %v2454
        %v2503 = vpack.c.b16 %v2463, %v2459
        %v2504 = vpack.c.b16 %v2464, %v2460
        %v2505 = vpack.c.b16 %v2465, %v2461
        %v2506 = vpack.c.b16 %v2466, %v2462
        %v2507 = vpack.c.b16 %v2471, %v2467
        %v2508 = vpack.c.b16 %v2472, %v2468
        %v2509 = vpack.c.b16 %v2473, %v2469
        %v2510 = vpack.c.b16 %v2474, %v2470
        %v2511 = vpack.c.b16 %v2479, %v2475
        %v2512 = vpack.c.b16 %v2480, %v2476
        %v2513 = vpack.c.b16 %v2481, %v2477
        %v2514 = vpack.c.b16 %v2482, %v2478
        %2547 = vmatprep.subr.bf16.mxu0 %v2512
        %2548 = vmatpush1.bf16.msra.mxu0 %v2511
        %2549 = vmatprep.subr.bf16.mxu0 %v2508
        %2550 = vmatpush1.bf16.msra.mxu0 %v2507
        %2551 = vmatprep.subr.bf16.mxu0 %v2504
        %2552 = vmatpush1.bf16.msra.mxu0 %v2503
        %2553 = vmatprep.subr.bf16.mxu0 %v2500
        %2554 = vmatpush1.bf16.msra.mxu0 %v2499
        %2555 = vmatprep.subr.bf16.mxu0 %v2496
        %2556 = vmatpush1.bf16.msra.mxu0 %v2495
        %2557 = vmatprep.subr.bf16.mxu0 %v2492
        %2558 = vmatpush1.bf16.msra.mxu0 %v2491
        %2559 = vmatprep.subr.bf16.mxu0 %v2488
        %2560 = vmatpush1.bf16.msra.mxu0 %v2487
        %2561 = vmatprep.subr.bf16.mxu0 %v2484
        %2562 = vmatpush1.bf16.msra.mxu0 %v2483
        %2563 = vmatprep.subr.bf16.mxu0 0
        %2564 = vmatpush2.bf16.msra.mxu0 0
        %2565 = vmatprep.subr.bf16.mxu0 0
        %2566 = vmatpush2.bf16.msra.mxu0 0
        %2567 = vmatprep.subr.bf16.mxu0 0
        %2568 = vmatpush2.bf16.msra.mxu0 0
        %2569 = vmatprep.subr.bf16.mxu0 0
        %2570 = vmatpush2.bf16.msra.mxu0 0
        %2571 = vmatprep.subr.bf16.mxu0 0
        %2572 = vmatpush2.bf16.msra.mxu0 0
        %2573 = vmatprep.subr.bf16.mxu0 0
        %2574 = vmatpush2.bf16.msra.mxu0 0
        %2575 = vmatprep.subr.bf16.mxu0 0
        %2576 = vmatpush2.bf16.msra.mxu0 0
        %2577 = vmatprep.subr.bf16.mxu0 0
        %2578 = vmatpush2.bf16.msra.mxu0 0
        %2579 = vmatprep.mubr.bf16.mxu0 0
        %2580 = vmatmul.mubr.bf16.gmra.mxu0 %v2320
        %v2581 = vpop.f32.mrf.mxu0
        %v2582 = vadd.f32 %v2370, %v2581
        %v2583 = vpop.f32.mrf.mxu0
        %v2584 = vadd.f32 %v2374, %v2583
        %v2585 = vpop.f32.mrf.mxu0
        %v2586 = vadd.f32 %v2370, %v2585
        %v2587 = vpop.f32.mrf.mxu0
        %v2588 = vadd.f32 %v2374, %v2587
        %2589 = vmatprep.mubr.bf16.mxu0 0
        %2590 = vmatmul.mubr.bf16.gmra.mxu0 %v2321
        %v2591 = vpop.f32.mrf.mxu0
        %v2592 = vadd.f32 %v2370, %v2591
        %v2593 = vpop.f32.mrf.mxu0
        %v2594 = vadd.f32 %v2374, %v2593
        %v2595 = vpop.f32.mrf.mxu0
        %v2596 = vadd.f32 %v2370, %v2595
        %v2597 = vpop.f32.mrf.mxu0
        %v2598 = vadd.f32 %v2374, %v2597
        %2599 = vmatprep.mubr.bf16.mxu0 0
        %2600 = vmatmul.mubr.bf16.gmra.mxu0 %v2322
        %v2601 = vpop.f32.mrf.mxu0
        %v2602 = vadd.f32 %v2370, %v2601
        %v2603 = vpop.f32.mrf.mxu0
        %v2604 = vadd.f32 %v2374, %v2603
        %v2605 = vpop.f32.mrf.mxu0
        %v2606 = vadd.f32 %v2370, %v2605
        %v2607 = vpop.f32.mrf.mxu0
        %v2608 = vadd.f32 %v2374, %v2607
        %2609 = vmatprep.mubr.bf16.mxu0 0
        %2610 = vmatmul.mubr.bf16.gmra.mxu0 %v2323
        %v2611 = vpop.f32.mrf.mxu0
        %v2612 = vadd.f32 %v2370, %v2611
        %v2613 = vpop.f32.mrf.mxu0
        %v2614 = vadd.f32 %v2374, %v2613
        %v2615 = vpop.f32.mrf.mxu0
        %v2616 = vadd.f32 %v2370, %v2615
        %v2617 = vpop.f32.mrf.mxu0
        %v2618 = vadd.f32 %v2374, %v2617
        %2619 = vmatprep.mubr.bf16.mxu0 0
        %2620 = vmatmul.mubr.bf16.gmra.mxu0 %v2324
        %v2621 = vpop.f32.mrf.mxu0
        %v2622 = vadd.f32 %v2370, %v2621
        %v2623 = vpop.f32.mrf.mxu0
        %v2624 = vadd.f32 %v2374, %v2623
        %v2625 = vpop.f32.mrf.mxu0
        %v2626 = vadd.f32 %v2370, %v2625
        %v2627 = vpop.f32.mrf.mxu0
        %v2628 = vadd.f32 %v2374, %v2627
        %2629 = vmatprep.mubr.bf16.mxu0 0
        %2630 = vmatmul.mubr.bf16.gmra.mxu0 %v2325
        %v2631 = vpop.f32.mrf.mxu0
        %v2632 = vadd.f32 %v2370, %v2631
        %v2633 = vpop.f32.mrf.mxu0
        %v2634 = vadd.f32 %v2374, %v2633
        %v2635 = vpop.f32.mrf.mxu0
        %v2636 = vadd.f32 %v2370, %v2635
        %v2637 = vpop.f32.mrf.mxu0
        %v2638 = vadd.f32 %v2374, %v2637
        %2639 = vmatprep.mubr.bf16.mxu0 0
        %2640 = vmatmul.mubr.bf16.gmra.mxu0 %v2326
        %v2641 = vpop.f32.mrf.mxu0
        %v2642 = vadd.f32 %v2370, %v2641
        %v2643 = vpop.f32.mrf.mxu0
        %v2644 = vadd.f32 %v2374, %v2643
        %v2645 = vpop.f32.mrf.mxu0
        %v2646 = vadd.f32 %v2370, %v2645
        %v2647 = vpop.f32.mrf.mxu0
        %v2648 = vadd.f32 %v2374, %v2647
        %2649 = vmatprep.mubr.bf16.mxu0 0
        %2650 = vmatmul.mubr.bf16.gmra.mxu0 %v2327
        %v2651 = vpop.f32.mrf.mxu0
        %v2652 = vadd.f32 %v2370, %v2651
        %v2653 = vpop.f32.mrf.mxu0
        %v2654 = vadd.f32 %v2374, %v2653
        %v2655 = vpop.f32.mrf.mxu0
        %v2656 = vadd.f32 %v2370, %v2655
        %v2657 = vpop.f32.mrf.mxu0
        %v2658 = vadd.f32 %v2374, %v2657
        %2659 = vmatprep.mubr.bf16.mxu0 0
        %2660 = vmatmul.mubr.bf16.gmra.mxu0 %v2328
        %v2661 = vpop.f32.mrf.mxu0
        %v2662 = vadd.f32 %v2370, %v2661
        %v2663 = vpop.f32.mrf.mxu0
        %v2664 = vadd.f32 %v2374, %v2663
        %v2665 = vpop.f32.mrf.mxu0
        %v2666 = vadd.f32 %v2370, %v2665
        %v2667 = vpop.f32.mrf.mxu0
        %v2668 = vadd.f32 %v2374, %v2667
        %2669 = vmatprep.mubr.bf16.mxu0 0
        %2670 = vmatmul.mubr.bf16.gmra.mxu0 %v2329
        %v2671 = vpop.f32.mrf.mxu0
        %v2672 = vadd.f32 %v2370, %v2671
        %v2673 = vpop.f32.mrf.mxu0
        %v2674 = vadd.f32 %v2374, %v2673
        %v2675 = vpop.f32.mrf.mxu0
        %v2676 = vadd.f32 %v2370, %v2675
        %v2677 = vpop.f32.mrf.mxu0
        %v2678 = vadd.f32 %v2374, %v2677
        %2679 = vmatprep.mubr.bf16.mxu0 0
        %2680 = vmatmul.mubr.bf16.gmra.mxu0 %v2330
        %v2681 = vpop.f32.mrf.mxu0
        %v2682 = vadd.f32 %v2370, %v2681
        %v2683 = vpop.f32.mrf.mxu0
        %v2684 = vadd.f32 %v2374, %v2683
        %v2685 = vpop.f32.mrf.mxu0
        %v2686 = vadd.f32 %v2370, %v2685
        %v2687 = vpop.f32.mrf.mxu0
        %v2688 = vadd.f32 %v2374, %v2687
        %2689 = vmatprep.mubr.bf16.mxu0 0
        %2690 = vmatmul.mubr.bf16.gmra.mxu0 %v2331
        %v2691 = vpop.f32.mrf.mxu0
        %v2692 = vadd.f32 %v2370, %v2691
        %v2693 = vpop.f32.mrf.mxu0
        %v2694 = vadd.f32 %v2374, %v2693
        %v2695 = vpop.f32.mrf.mxu0
        %v2696 = vadd.f32 %v2370, %v2695
        %v2697 = vpop.f32.mrf.mxu0
        %v2698 = vadd.f32 %v2374, %v2697
        %2699 = vmatprep.mubr.bf16.mxu0 0
        %2700 = vmatmul.mubr.bf16.gmra.mxu0 %v2332
        %v2701 = vpop.f32.mrf.mxu0
        %v2702 = vadd.f32 %v2370, %v2701
        %v2703 = vpop.f32.mrf.mxu0
        %v2704 = vadd.f32 %v2374, %v2703
        %v2705 = vpop.f32.mrf.mxu0
        %v2706 = vpop.f32.mrf.mxu0
        %2707 = vdwg.mxu0
        %2708 = vmatprep.subr.bf16.mxu0 %v2514
        %2709 = vmatpush1.bf16.msra.mxu0 %v2513
        %2710 = vmatprep.subr.bf16.mxu0 %v2510
        %2711 = vmatpush1.bf16.msra.mxu0 %v2509
        %2712 = vmatprep.subr.bf16.mxu0 %v2506
        %2713 = vmatpush1.bf16.msra.mxu0 %v2505
        %2714 = vmatprep.subr.bf16.mxu0 %v2502
        %2715 = vmatpush1.bf16.msra.mxu0 %v2501
        %2716 = vmatprep.subr.bf16.mxu0 %v2498
        %2717 = vmatpush1.bf16.msra.mxu0 %v2497
        %2718 = vmatprep.subr.bf16.mxu0 %v2494
        %2719 = vmatpush1.bf16.msra.mxu0 %v2493
        %2720 = vmatprep.subr.bf16.mxu0 %v2490
        %2721 = vmatpush1.bf16.msra.mxu0 %v2489
        %2722 = vmatprep.subr.bf16.mxu0 %v2486
        %2723 = vmatpush1.bf16.msra.mxu0 %v2485
        %2724 = vmatprep.subr.bf16.mxu0 0
        %2725 = vmatpush2.bf16.msra.mxu0 0
        %2726 = vmatprep.subr.bf16.mxu0 0
        %2727 = vmatpush2.bf16.msra.mxu0 0
        %2728 = vmatprep.subr.bf16.mxu0 0
        %2729 = vmatpush2.bf16.msra.mxu0 0
        %2730 = vmatprep.subr.bf16.mxu0 0
        %2731 = vmatpush2.bf16.msra.mxu0 0
        %2732 = vmatprep.subr.bf16.mxu0 0
        %2733 = vmatpush2.bf16.msra.mxu0 0
        %2734 = vmatprep.subr.bf16.mxu0 0
        %2735 = vmatpush2.bf16.msra.mxu0 0
        %2736 = vmatprep.subr.bf16.mxu0 0
        %2737 = vmatpush2.bf16.msra.mxu0 0
        %2738 = vmatprep.subr.bf16.mxu0 0
        %2739 = vmatpush2.bf16.msra.mxu0 0
        %2740 = vmatprep.mubr.bf16.mxu0 0
        %2741 = vmatmul.mubr.bf16.gmra.mxu0 %v2320
        %v2742 = vpop.f32.mrf.mxu0
        %v2743 = vadd.f32 %v2378, %v2742
        %v2744 = vpop.f32.mrf.mxu0
        %v2745 = vadd.f32 %v2382, %v2744
        %v2746 = vpop.f32.mrf.mxu0
        %v2747 = vadd.f32 %v2378, %v2746
        %v2748 = vpop.f32.mrf.mxu0
        %v2749 = vadd.f32 %v2382, %v2748
        %2750 = vmatprep.mubr.bf16.mxu0 0
        %2751 = vmatmul.mubr.bf16.gmra.mxu0 %v2321
        %v2752 = vpop.f32.mrf.mxu0
        %v2753 = vadd.f32 %v2378, %v2752
        %v2754 = vpop.f32.mrf.mxu0
        %v2755 = vadd.f32 %v2382, %v2754
        %v2756 = vpop.f32.mrf.mxu0
        %v2757 = vadd.f32 %v2378, %v2756
        %v2758 = vpop.f32.mrf.mxu0
        %v2759 = vadd.f32 %v2382, %v2758
        %2760 = vmatprep.mubr.bf16.mxu0 0
        %2761 = vmatmul.mubr.bf16.gmra.mxu0 %v2322
        %v2762 = vpop.f32.mrf.mxu0
        %v2763 = vadd.f32 %v2378, %v2762
        %v2764 = vpop.f32.mrf.mxu0
        %v2765 = vadd.f32 %v2382, %v2764
        %v2766 = vpop.f32.mrf.mxu0
        %v2767 = vadd.f32 %v2378, %v2766
        %v2768 = vpop.f32.mrf.mxu0
        %v2769 = vadd.f32 %v2382, %v2768
        %2770 = vmatprep.mubr.bf16.mxu0 0
        %2771 = vmatmul.mubr.bf16.gmra.mxu0 %v2323
        %v2772 = vpop.f32.mrf.mxu0
        %v2773 = vadd.f32 %v2378, %v2772
        %v2774 = vpop.f32.mrf.mxu0
        %v2775 = vadd.f32 %v2382, %v2774
        %v2776 = vpop.f32.mrf.mxu0
        %v2777 = vadd.f32 %v2378, %v2776
        %v2778 = vpop.f32.mrf.mxu0
        %v2779 = vadd.f32 %v2382, %v2778
        %2780 = vmatprep.mubr.bf16.mxu0 0
        %2781 = vmatmul.mubr.bf16.gmra.mxu0 %v2324
        %v2782 = vpop.f32.mrf.mxu0
        %v2783 = vadd.f32 %v2378, %v2782
        %v2784 = vpop.f32.mrf.mxu0
        %v2785 = vadd.f32 %v2382, %v2784
        %v2786 = vpop.f32.mrf.mxu0
        %v2787 = vadd.f32 %v2378, %v2786
        %v2788 = vpop.f32.mrf.mxu0
        %v2789 = vadd.f32 %v2382, %v2788
        %2790 = vmatprep.mubr.bf16.mxu0 0
        %2791 = vmatmul.mubr.bf16.gmra.mxu0 %v2325
        %v2792 = vpop.f32.mrf.mxu0
        %v2793 = vadd.f32 %v2378, %v2792
        %v2794 = vpop.f32.mrf.mxu0
        %v2795 = vadd.f32 %v2382, %v2794
        %v2796 = vpop.f32.mrf.mxu0
        %v2797 = vadd.f32 %v2378, %v2796
        %v2798 = vpop.f32.mrf.mxu0
        %v2799 = vadd.f32 %v2382, %v2798
        %2800 = vmatprep.mubr.bf16.mxu0 0
        %2801 = vmatmul.mubr.bf16.gmra.mxu0 %v2326
        %v2802 = vpop.f32.mrf.mxu0
        %v2803 = vadd.f32 %v2378, %v2802
        %v2804 = vpop.f32.mrf.mxu0
        %v2805 = vadd.f32 %v2382, %v2804
        %v2806 = vpop.f32.mrf.mxu0
        %v2807 = vadd.f32 %v2378, %v2806
        %v2808 = vpop.f32.mrf.mxu0
        %v2809 = vadd.f32 %v2382, %v2808
        %2810 = vmatprep.mubr.bf16.mxu0 0
        %2811 = vmatmul.mubr.bf16.gmra.mxu0 %v2327
        %v2812 = vpop.f32.mrf.mxu0
        %v2813 = vadd.f32 %v2378, %v2812
        %v2814 = vpop.f32.mrf.mxu0
        %v2815 = vadd.f32 %v2382, %v2814
        %v2816 = vpop.f32.mrf.mxu0
        %v2817 = vadd.f32 %v2378, %v2816
        %v2818 = vpop.f32.mrf.mxu0
        %v2819 = vadd.f32 %v2382, %v2818
        %2820 = vmatprep.mubr.bf16.mxu0 0
        %2821 = vmatmul.mubr.bf16.gmra.mxu0 %v2328
        %v2822 = vpop.f32.mrf.mxu0
        %v2823 = vadd.f32 %v2378, %v2822
        %v2824 = vpop.f32.mrf.mxu0
        %v2825 = vadd.f32 %v2382, %v2824
        %v2826 = vpop.f32.mrf.mxu0
        %v2827 = vadd.f32 %v2378, %v2826
        %v2828 = vpop.f32.mrf.mxu0
        %v2829 = vadd.f32 %v2382, %v2828
        %2830 = vmatprep.mubr.bf16.mxu0 0
        %2831 = vmatmul.mubr.bf16.gmra.mxu0 %v2329
        %v2832 = vpop.f32.mrf.mxu0
        %v2833 = vadd.f32 %v2378, %v2832
        %v2834 = vpop.f32.mrf.mxu0
        %v2835 = vadd.f32 %v2382, %v2834
        %v2836 = vpop.f32.mrf.mxu0
        %v2837 = vadd.f32 %v2378, %v2836
        %v2838 = vpop.f32.mrf.mxu0
        %v2839 = vadd.f32 %v2382, %v2838
        %2840 = vmatprep.mubr.bf16.mxu0 0
        %2841 = vmatmul.mubr.bf16.gmra.mxu0 %v2330
        %v2842 = vpop.f32.mrf.mxu0
        %v2843 = vadd.f32 %v2378, %v2842
        %v2844 = vpop.f32.mrf.mxu0
        %v2845 = vadd.f32 %v2382, %v2844
        %v2846 = vpop.f32.mrf.mxu0
        %v2847 = vadd.f32 %v2378, %v2846
        %v2848 = vpop.f32.mrf.mxu0
        %v2849 = vadd.f32 %v2382, %v2848
        %2850 = vmatprep.mubr.bf16.mxu0 0
        %2851 = vmatmul.mubr.bf16.gmra.mxu0 %v2331
        %v2852 = vpop.f32.mrf.mxu0
        %v2853 = vadd.f32 %v2378, %v2852
        %v2854 = vpop.f32.mrf.mxu0
        %v2855 = vadd.f32 %v2382, %v2854
        %v2856 = vpop.f32.mrf.mxu0
        %v2857 = vadd.f32 %v2378, %v2856
        %v2858 = vpop.f32.mrf.mxu0
        %v2859 = vadd.f32 %v2382, %v2858
        %2860 = vmatprep.mubr.bf16.mxu0 0
        %2861 = vmatmul.mubr.bf16.gmra.mxu0 %v2332
        %v2862 = vpop.f32.mrf.mxu0
        %v2863 = vadd.f32 %v2378, %v2862
        %v2864 = vpop.f32.mrf.mxu0
        %v2865 = vadd.f32 %v2382, %v2864
        %v2866 = vpop.f32.mrf.mxu0
        %v2867 = vpop.f32.mrf.mxu0
        %2868 = vdwg.mxu0
        %v2869 = vmul.f32 %v2582, 0.5
        %v2870 = vmul.f32 %v2584, 0.5
        %v2871 = vmul.f32 %v2743, 0.5
        %v2872 = vmul.f32 %v2745, 0.5
        %v2873 = vmul.f32 %v2586, 0.5
        %v2874 = vmul.f32 %v2588, 0.5
        %v2875 = vmul.f32 %v2747, 0.5
        %v2876 = vmul.f32 %v2749, 0.5
        %v2877 = vmul.f32 %v2592, 0.5
        %v2878 = vmul.f32 %v2594, 0.5
        %v2879 = vmul.f32 %v2753, 0.5
        %v2880 = vmul.f32 %v2755, 0.5
        %v2881 = vmul.f32 %v2596, 0.5
        %v2882 = vmul.f32 %v2598, 0.5
        %v2883 = vmul.f32 %v2757, 0.5
        %v2884 = vmul.f32 %v2759, 0.5
        %v2885 = vmul.f32 %v2602, 0.5
        %v2886 = vmul.f32 %v2604, 0.5
        %v2887 = vmul.f32 %v2763, 0.5
        %v2888 = vmul.f32 %v2765, 0.5
        %v2889 = vmul.f32 %v2606, 0.5
        %v2890 = vmul.f32 %v2608, 0.5
        %v2891 = vmul.f32 %v2767, 0.5
        %v2892 = vmul.f32 %v2769, 0.5
        %v2893 = vmul.f32 %v2612, 0.5
        %v2894 = vmul.f32 %v2614, 0.5
        %v2895 = vmul.f32 %v2773, 0.5
        %v2896 = vmul.f32 %v2775, 0.5
        %v2897 = vmul.f32 %v2616, 0.5
        %v2898 = vmul.f32 %v2618, 0.5
        %v2899 = vmul.f32 %v2777, 0.5
        %v2900 = vmul.f32 %v2779, 0.5
        %v2901 = vmul.f32 %v2622, 0.5
        %v2902 = vmul.f32 %v2624, 0.5
        %v2903 = vmul.f32 %v2783, 0.5
        %v2904 = vmul.f32 %v2785, 0.5
        %v2905 = vmul.f32 %v2626, 0.5
        %v2906 = vmul.f32 %v2628, 0.5
        %v2907 = vmul.f32 %v2787, 0.5
        %v2908 = vmul.f32 %v2789, 0.5
        %v2909 = vmul.f32 %v2632, 0.5
        %v2910 = vmul.f32 %v2634, 0.5
        %v2911 = vmul.f32 %v2793, 0.5
        %v2912 = vmul.f32 %v2795, 0.5
        %v2913 = vmul.f32 %v2636, 0.5
        %v2914 = vmul.f32 %v2638, 0.5
        %v2915 = vmul.f32 %v2797, 0.5
        %v2916 = vmul.f32 %v2799, 0.5
        %v2917 = vmul.f32 %v2642, 0.5
        %v2918 = vmul.f32 %v2644, 0.5
        %v2919 = vmul.f32 %v2803, 0.5
        %v2920 = vmul.f32 %v2805, 0.5
        %v2921 = vmul.f32 %v2646, 0.5
        %v2922 = vmul.f32 %v2648, 0.5
        %v2923 = vmul.f32 %v2807, 0.5
        %v2924 = vmul.f32 %v2809, 0.5
        %v2925 = vmul.f32 %v2652, 0.5
        %v2926 = vmul.f32 %v2654, 0.5
        %v2927 = vmul.f32 %v2813, 0.5
        %v2928 = vmul.f32 %v2815, 0.5
        %v2929 = vmul.f32 %v2656, 0.5
        %v2930 = vmul.f32 %v2658, 0.5
        %v2931 = vmul.f32 %v2817, 0.5
        %v2932 = vmul.f32 %v2819, 0.5
        %v2933 = vmul.f32 %v2662, 0.5
        %v2934 = vmul.f32 %v2664, 0.5
        %v2935 = vmul.f32 %v2823, 0.5
        %v2936 = vmul.f32 %v2825, 0.5
        %v2937 = vmul.f32 %v2666, 0.5
        %v2938 = vmul.f32 %v2668, 0.5
        %v2939 = vmul.f32 %v2827, 0.5
        %v2940 = vmul.f32 %v2829, 0.5
        %v2941 = vmul.f32 %v2672, 0.5
        %v2942 = vmul.f32 %v2674, 0.5
        %v2943 = vmul.f32 %v2833, 0.5
        %v2944 = vmul.f32 %v2835, 0.5
        %v2945 = vmul.f32 %v2676, 0.5
        %v2946 = vmul.f32 %v2678, 0.5
        %v2947 = vmul.f32 %v2837, 0.5
        %v2948 = vmul.f32 %v2839, 0.5
        %v2949 = vmul.f32 %v2682, 0.5
        %v2950 = vmul.f32 %v2684, 0.5
        %v2951 = vmul.f32 %v2843, 0.5
        %v2952 = vmul.f32 %v2845, 0.5
        %v2953 = vmul.f32 %v2686, 0.5
        %v2954 = vmul.f32 %v2688, 0.5
        %v2955 = vmul.f32 %v2847, 0.5
        %v2956 = vmul.f32 %v2849, 0.5
        %v2957 = vmul.f32 %v2692, 0.5
        %v2958 = vmul.f32 %v2694, 0.5
        %v2959 = vmul.f32 %v2853, 0.5
        %v2960 = vmul.f32 %v2855, 0.5
        %v2961 = vmul.f32 %v2696, 0.5
        %v2962 = vmul.f32 %v2698, 0.5
        %v2963 = vmul.f32 %v2857, 0.5
        %v2964 = vmul.f32 %v2859, 0.5
        %v2965 = vmul.f32 %v2702, 0.5
        %v2966 = vmul.f32 %v2704, 0.5
        %v2967 = vmul.f32 %v2863, 0.5
        %v2968 = vmul.f32 %v2865, 0.5
        %v2969 = vmul.f32 %v2582, 0.044715
        %v2970 = vmul.f32 %v2584, 0.044715
        %v2971 = vmul.f32 %v2743, 0.044715
        %v2972 = vmul.f32 %v2745, 0.044715
        %v2973 = vmul.f32 %v2586, 0.044715
        %v2974 = vmul.f32 %v2588, 0.044715
        %v2975 = vmul.f32 %v2747, 0.044715
        %v2976 = vmul.f32 %v2749, 0.044715
        %v2977 = vmul.f32 %v2592, 0.044715
        %v2978 = vmul.f32 %v2594, 0.044715
        %v2979 = vmul.f32 %v2753, 0.044715
        %v2980 = vmul.f32 %v2755, 0.044715
        %v2981 = vmul.f32 %v2596, 0.044715
        %v2982 = vmul.f32 %v2598, 0.044715
        %v2983 = vmul.f32 %v2757, 0.044715
        %v2984 = vmul.f32 %v2759, 0.044715
        %v2985 = vmul.f32 %v2602, 0.044715
        %v2986 = vmul.f32 %v2604, 0.044715
        %v2987 = vmul.f32 %v2763, 0.044715
        %v2988 = vmul.f32 %v2765, 0.044715
        %v2989 = vmul.f32 %v2606, 0.044715
        %v2990 = vmul.f32 %v2608, 0.044715
        %v2991 = vmul.f32 %v2767, 0.044715
        %v2992 = vmul.f32 %v2769, 0.044715
        %v2993 = vmul.f32 %v2612, 0.044715
        %v2994 = vmul.f32 %v2614, 0.044715
        %v2995 = vmul.f32 %v2773, 0.044715
        %v2996 = vmul.f32 %v2775, 0.044715
        %v2997 = vmul.f32 %v2616, 0.044715
        %v2998 = vmul.f32 %v2618, 0.044715
        %v2999 = vmul.f32 %v2777, 0.044715
        %v3000 = vmul.f32 %v2779, 0.044715
        %v3001 = vmul.f32 %v2622, 0.044715
        %v3002 = vmul.f32 %v2624, 0.044715
        %v3003 = vmul.f32 %v2783, 0.044715
        %v3004 = vmul.f32 %v2785, 0.044715
        %v3005 = vmul.f32 %v2626, 0.044715
        %v3006 = vmul.f32 %v2628, 0.044715
        %v3007 = vmul.f32 %v2787, 0.044715
        %v3008 = vmul.f32 %v2789, 0.044715
        %v3009 = vmul.f32 %v2632, 0.044715
        %v3010 = vmul.f32 %v2634, 0.044715
        %v3011 = vmul.f32 %v2793, 0.044715
        %v3012 = vmul.f32 %v2795, 0.044715
        %v3013 = vmul.f32 %v2636, 0.044715
        %v3014 = vmul.f32 %v2638, 0.044715
        %v3015 = vmul.f32 %v2797, 0.044715
        %v3016 = vmul.f32 %v2799, 0.044715
        %v3017 = vmul.f32 %v2642, 0.044715
        %v3018 = vmul.f32 %v2644, 0.044715
        %v3019 = vmul.f32 %v2803, 0.044715
        %v3020 = vmul.f32 %v2805, 0.044715
        %v3021 = vmul.f32 %v2646, 0.044715
        %v3022 = vmul.f32 %v2648, 0.044715
        %v3023 = vmul.f32 %v2807, 0.044715
        %v3024 = vmul.f32 %v2809, 0.044715
        %v3025 = vmul.f32 %v2652, 0.044715
        %v3026 = vmul.f32 %v2654, 0.044715
        %v3027 = vmul.f32 %v2813, 0.044715
        %v3028 = vmul.f32 %v2815, 0.044715
        %v3029 = vmul.f32 %v2656, 0.044715
        %v3030 = vmul.f32 %v2658, 0.044715
        %v3031 = vmul.f32 %v2817, 0.044715
        %v3032 = vmul.f32 %v2819, 0.044715
        %v3033 = vmul.f32 %v2662, 0.044715
        %v3034 = vmul.f32 %v2664, 0.044715
        %v3035 = vmul.f32 %v2823, 0.044715
        %v3036 = vmul.f32 %v2825, 0.044715
        %v3037 = vmul.f32 %v2666, 0.044715
        %v3038 = vmul.f32 %v2668, 0.044715
        %v3039 = vmul.f32 %v2827, 0.044715
        %v3040 = vmul.f32 %v2829, 0.044715
        %v3041 = vmul.f32 %v2672, 0.044715
        %v3042 = vmul.f32 %v2674, 0.044715
        %v3043 = vmul.f32 %v2833, 0.044715
        %v3044 = vmul.f32 %v2835, 0.044715
        %v3045 = vmul.f32 %v2676, 0.044715
        %v3046 = vmul.f32 %v2678, 0.044715
        %v3047 = vmul.f32 %v2837, 0.044715
        %v3048 = vmul.f32 %v2839, 0.044715
        %v3049 = vmul.f32 %v2682, 0.044715
        %v3050 = vmul.f32 %v2684, 0.044715
        %v3051 = vmul.f32 %v2843, 0.044715
        %v3052 = vmul.f32 %v2845, 0.044715
        %v3053 = vmul.f32 %v2686, 0.044715
        %v3054 = vmul.f32 %v2688, 0.044715
        %v3055 = vmul.f32 %v2847, 0.044715
        %v3056 = vmul.f32 %v2849, 0.044715
        %v3057 = vmul.f32 %v2692, 0.044715
        %v3058 = vmul.f32 %v2694, 0.044715
        %v3059 = vmul.f32 %v2853, 0.044715
        %v3060 = vmul.f32 %v2855, 0.044715
        %v3061 = vmul.f32 %v2696, 0.044715
        %v3062 = vmul.f32 %v2698, 0.044715
        %v3063 = vmul.f32 %v2857, 0.044715
        %v3064 = vmul.f32 %v2859, 0.044715
        %v3065 = vmul.f32 %v2702, 0.044715
        %v3066 = vmul.f32 %v2704, 0.044715
        %v3067 = vmul.f32 %v2863, 0.044715
        %v3068 = vmul.f32 %v2865, 0.044715
        %v3069 = vmul.f32 %v2969, %v2582
        %v3070 = vmul.f32 %v2970, %v2584
        %v3071 = vmul.f32 %v2971, %v2743
        %v3072 = vmul.f32 %v2972, %v2745
        %v3073 = vmul.f32 %v2973, %v2586
        %v3074 = vmul.f32 %v2974, %v2588
        %v3075 = vmul.f32 %v2975, %v2747
        %v3076 = vmul.f32 %v2976, %v2749
        %v3077 = vmul.f32 %v2977, %v2592
        %v3078 = vmul.f32 %v2978, %v2594
        %v3079 = vmul.f32 %v2979, %v2753
        %v3080 = vmul.f32 %v2980, %v2755
        %v3081 = vmul.f32 %v2981, %v2596
        %v3082 = vmul.f32 %v2982, %v2598
        %v3083 = vmul.f32 %v2983, %v2757
        %v3084 = vmul.f32 %v2984, %v2759
        %v3085 = vmul.f32 %v2985, %v2602
        %v3086 = vmul.f32 %v2986, %v2604
        %v3087 = vmul.f32 %v2987, %v2763
        %v3088 = vmul.f32 %v2988, %v2765
        %v3089 = vmul.f32 %v2989, %v2606
        %v3090 = vmul.f32 %v2990, %v2608
        %v3091 = vmul.f32 %v2991, %v2767
        %v3092 = vmul.f32 %v2992, %v2769
        %v3093 = vmul.f32 %v2993, %v2612
        %v3094 = vmul.f32 %v2994, %v2614
        %v3095 = vmul.f32 %v2995, %v2773
        %v3096 = vmul.f32 %v2996, %v2775
        %v3097 = vmul.f32 %v2997, %v2616
        %v3098 = vmul.f32 %v2998, %v2618
        %v3099 = vmul.f32 %v2999, %v2777
        %v3100 = vmul.f32 %v3000, %v2779
        %v3101 = vmul.f32 %v3001, %v2622
        %v3102 = vmul.f32 %v3002, %v2624
        %v3103 = vmul.f32 %v3003, %v2783
        %v3104 = vmul.f32 %v3004, %v2785
        %v3105 = vmul.f32 %v3005, %v2626
        %v3106 = vmul.f32 %v3006, %v2628
        %v3107 = vmul.f32 %v3007, %v2787
        %v3108 = vmul.f32 %v3008, %v2789
        %v3109 = vmul.f32 %v3009, %v2632
        %v3110 = vmul.f32 %v3010, %v2634
        %v3111 = vmul.f32 %v3011, %v2793
        %v3112 = vmul.f32 %v3012, %v2795
        %v3113 = vmul.f32 %v3013, %v2636
        %v3114 = vmul.f32 %v3014, %v2638
        %v3115 = vmul.f32 %v3015, %v2797
        %v3116 = vmul.f32 %v3016, %v2799
        %v3117 = vmul.f32 %v3017, %v2642
        %v3118 = vmul.f32 %v3018, %v2644
        %v3119 = vmul.f32 %v3019, %v2803
        %v3120 = vmul.f32 %v3020, %v2805
        %v3121 = vmul.f32 %v3021, %v2646
        %v3122 = vmul.f32 %v3022, %v2648
        %v3123 = vmul.f32 %v3023, %v2807
        %v3124 = vmul.f32 %v3024, %v2809
        %v3125 = vmul.f32 %v3025, %v2652
        %v3126 = vmul.f32 %v3026, %v2654
        %v3127 = vmul.f32 %v3027, %v2813
        %v3128 = vmul.f32 %v3028, %v2815
        %v3129 = vmul.f32 %v3029, %v2656
        %v3130 = vmul.f32 %v3030, %v2658
        %v3131 = vmul.f32 %v3031, %v2817
        %v3132 = vmul.f32 %v3032, %v2819
        %v3133 = vmul.f32 %v3033, %v2662
        %v3134 = vmul.f32 %v3034, %v2664
        %v3135 = vmul.f32 %v3035, %v2823
        %v3136 = vmul.f32 %v3036, %v2825
        %v3137 = vmul.f32 %v3037, %v2666
        %v3138 = vmul.f32 %v3038, %v2668
        %v3139 = vmul.f32 %v3039, %v2827
        %v3140 = vmul.f32 %v3040, %v2829
        %v3141 = vmul.f32 %v3041, %v2672
        %v3142 = vmul.f32 %v3042, %v2674
        %v3143 = vmul.f32 %v3043, %v2833
        %v3144 = vmul.f32 %v3044, %v2835
        %v3145 = vmul.f32 %v3045, %v2676
        %v3146 = vmul.f32 %v3046, %v2678
        %v3147 = vmul.f32 %v3047, %v2837
        %v3148 = vmul.f32 %v3048, %v2839
        %v3149 = vmul.f32 %v3049, %v2682
        %v3150 = vmul.f32 %v3050, %v2684
        %v3151 = vmul.f32 %v3051, %v2843
        %v3152 = vmul.f32 %v3052, %v2845
        %v3153 = vmul.f32 %v3053, %v2686
        %v3154 = vmul.f32 %v3054, %v2688
        %v3155 = vmul.f32 %v3055, %v2847
        %v3156 = vmul.f32 %v3056, %v2849
        %v3157 = vmul.f32 %v3057, %v2692
        %v3158 = vmul.f32 %v3058, %v2694
        %v3159 = vmul.f32 %v3059, %v2853
        %v3160 = vmul.f32 %v3060, %v2855
        %v3161 = vmul.f32 %v3061, %v2696
        %v3162 = vmul.f32 %v3062, %v2698
        %v3163 = vmul.f32 %v3063, %v2857
        %v3164 = vmul.f32 %v3064, %v2859
        %v3165 = vmul.f32 %v3065, %v2702
        %v3166 = vmul.f32 %v3066, %v2704
        %v3167 = vmul.f32 %v3067, %v2863
        %v3168 = vmul.f32 %v3068, %v2865
        %v3169 = vmul.f32 %v3069, %v2582
        %v3170 = vmul.f32 %v3070, %v2584
        %v3171 = vmul.f32 %v3071, %v2743
        %v3172 = vmul.f32 %v3072, %v2745
        %v3173 = vmul.f32 %v3073, %v2586
        %v3174 = vmul.f32 %v3074, %v2588
        %v3175 = vmul.f32 %v3075, %v2747
        %v3176 = vmul.f32 %v3076, %v2749
        %v3177 = vmul.f32 %v3077, %v2592
        %v3178 = vmul.f32 %v3078, %v2594
        %v3179 = vmul.f32 %v3079, %v2753
        %v3180 = vmul.f32 %v3080, %v2755
        %v3181 = vmul.f32 %v3081, %v2596
        %v3182 = vmul.f32 %v3082, %v2598
        %v3183 = vmul.f32 %v3083, %v2757
        %v3184 = vmul.f32 %v3084, %v2759
        %v3185 = vmul.f32 %v3085, %v2602
        %v3186 = vmul.f32 %v3086, %v2604
        %v3187 = vmul.f32 %v3087, %v2763
        %v3188 = vmul.f32 %v3088, %v2765
        %v3189 = vmul.f32 %v3089, %v2606
        %v3190 = vmul.f32 %v3090, %v2608
        %v3191 = vmul.f32 %v3091, %v2767
        %v3192 = vmul.f32 %v3092, %v2769
        %v3193 = vmul.f32 %v3093, %v2612
        %v3194 = vmul.f32 %v3094, %v2614
        %v3195 = vmul.f32 %v3095, %v2773
        %v3196 = vmul.f32 %v3096, %v2775
        %v3197 = vmul.f32 %v3097, %v2616
        %v3198 = vmul.f32 %v3098, %v2618
        %v3199 = vmul.f32 %v3099, %v2777
        %v3200 = vmul.f32 %v3100, %v2779
        %v3201 = vmul.f32 %v3101, %v2622
        %v3202 = vmul.f32 %v3102, %v2624
        %v3203 = vmul.f32 %v3103, %v2783
        %v3204 = vmul.f32 %v3104, %v2785
        %v3205 = vmul.f32 %v3105, %v2626
        %v3206 = vmul.f32 %v3106, %v2628
        %v3207 = vmul.f32 %v3107, %v2787
        %v3208 = vmul.f32 %v3108, %v2789
        %v3209 = vmul.f32 %v3109, %v2632
        %v3210 = vmul.f32 %v3110, %v2634
        %v3211 = vmul.f32 %v3111, %v2793
        %v3212 = vmul.f32 %v3112, %v2795
        %v3213 = vmul.f32 %v3113, %v2636
        %v3214 = vmul.f32 %v3114, %v2638
        %v3215 = vmul.f32 %v3115, %v2797
        %v3216 = vmul.f32 %v3116, %v2799
        %v3217 = vmul.f32 %v3117, %v2642
        %v3218 = vmul.f32 %v3118, %v2644
        %v3219 = vmul.f32 %v3119, %v2803
        %v3220 = vmul.f32 %v3120, %v2805
        %v3221 = vmul.f32 %v3121, %v2646
        %v3222 = vmul.f32 %v3122, %v2648
        %v3223 = vmul.f32 %v3123, %v2807
        %v3224 = vmul.f32 %v3124, %v2809
        %v3225 = vmul.f32 %v3125, %v2652
        %v3226 = vmul.f32 %v3126, %v2654
        %v3227 = vmul.f32 %v3127, %v2813
        %v3228 = vmul.f32 %v3128, %v2815
        %v3229 = vmul.f32 %v3129, %v2656
        %v3230 = vmul.f32 %v3130, %v2658
        %v3231 = vmul.f32 %v3131, %v2817
        %v3232 = vmul.f32 %v3132, %v2819
        %v3233 = vmul.f32 %v3133, %v2662
        %v3234 = vmul.f32 %v3134, %v2664
        %v3235 = vmul.f32 %v3135, %v2823
        %v3236 = vmul.f32 %v3136, %v2825
        %v3237 = vmul.f32 %v3137, %v2666
        %v3238 = vmul.f32 %v3138, %v2668
        %v3239 = vmul.f32 %v3139, %v2827
        %v3240 = vmul.f32 %v3140, %v2829
        %v3241 = vmul.f32 %v3141, %v2672
        %v3242 = vmul.f32 %v3142, %v2674
        %v3243 = vmul.f32 %v3143, %v2833
        %v3244 = vmul.f32 %v3144, %v2835
        %v3245 = vmul.f32 %v3145, %v2676
        %v3246 = vmul.f32 %v3146, %v2678
        %v3247 = vmul.f32 %v3147, %v2837
        %v3248 = vmul.f32 %v3148, %v2839
        %v3249 = vmul.f32 %v3149, %v2682
        %v3250 = vmul.f32 %v3150, %v2684
        %v3251 = vmul.f32 %v3151, %v2843
        %v3252 = vmul.f32 %v3152, %v2845
        %v3253 = vmul.f32 %v3153, %v2686
        %v3254 = vmul.f32 %v3154, %v2688
        %v3255 = vmul.f32 %v3155, %v2847
        %v3256 = vmul.f32 %v3156, %v2849
        %v3257 = vmul.f32 %v3157, %v2692
        %v3258 = vmul.f32 %v3158, %v2694
        %v3259 = vmul.f32 %v3159, %v2853
        %v3260 = vmul.f32 %v3160, %v2855
        %v3261 = vmul.f32 %v3161, %v2696
        %v3262 = vmul.f32 %v3162, %v2698
        %v3263 = vmul.f32 %v3163, %v2857
        %v3264 = vmul.f32 %v3164, %v2859
        %v3265 = vmul.f32 %v3165, %v2702
        %v3266 = vmul.f32 %v3166, %v2704
        %v3267 = vmul.f32 %v3167, %v2863
        %v3268 = vmul.f32 %v3168, %v2865
        %v3269 = vadd.f32 %v2582, %v3169
        %v3270 = vadd.f32 %v2584, %v3170
        %v3271 = vadd.f32 %v2743, %v3171
        %v3272 = vadd.f32 %v2745, %v3172
        %v3273 = vadd.f32 %v2586, %v3173
        %v3274 = vadd.f32 %v2588, %v3174
        %v3275 = vadd.f32 %v2747, %v3175
        %v3276 = vadd.f32 %v2749, %v3176
        %v3277 = vadd.f32 %v2592, %v3177
        %v3278 = vadd.f32 %v2594, %v3178
        %v3279 = vadd.f32 %v2753, %v3179
        %v3280 = vadd.f32 %v2755, %v3180
        %v3281 = vadd.f32 %v2596, %v3181
        %v3282 = vadd.f32 %v2598, %v3182
        %v3283 = vadd.f32 %v2757, %v3183
        %v3284 = vadd.f32 %v2759, %v3184
        %v3285 = vadd.f32 %v2602, %v3185
        %v3286 = vadd.f32 %v2604, %v3186
        %v3287 = vadd.f32 %v2763, %v3187
        %v3288 = vadd.f32 %v2765, %v3188
        %v3289 = vadd.f32 %v2606, %v3189
        %v3290 = vadd.f32 %v2608, %v3190
        %v3291 = vadd.f32 %v2767, %v3191
        %v3292 = vadd.f32 %v2769, %v3192
        %v3293 = vadd.f32 %v2612, %v3193
        %v3294 = vadd.f32 %v2614, %v3194
        %v3295 = vadd.f32 %v2773, %v3195
        %v3296 = vadd.f32 %v2775, %v3196
        %v3297 = vadd.f32 %v2616, %v3197
        %v3298 = vadd.f32 %v2618, %v3198
        %v3299 = vadd.f32 %v2777, %v3199
        %v3300 = vadd.f32 %v2779, %v3200
        %v3301 = vadd.f32 %v2622, %v3201
        %v3302 = vadd.f32 %v2624, %v3202
        %v3303 = vadd.f32 %v2783, %v3203
        %v3304 = vadd.f32 %v2785, %v3204
        %v3305 = vadd.f32 %v2626, %v3205
        %v3306 = vadd.f32 %v2628, %v3206
        %v3307 = vadd.f32 %v2787, %v3207
        %v3308 = vadd.f32 %v2789, %v3208
        %v3309 = vadd.f32 %v2632, %v3209
        %v3310 = vadd.f32 %v2634, %v3210
        %v3311 = vadd.f32 %v2793, %v3211
        %v3312 = vadd.f32 %v2795, %v3212
        %v3313 = vadd.f32 %v2636, %v3213
        %v3314 = vadd.f32 %v2638, %v3214
        %v3315 = vadd.f32 %v2797, %v3215
        %v3316 = vadd.f32 %v2799, %v3216
        %v3317 = vadd.f32 %v2642, %v3217
        %v3318 = vadd.f32 %v2644, %v3218
        %v3319 = vadd.f32 %v2803, %v3219
        %v3320 = vadd.f32 %v2805, %v3220
        %v3321 = vadd.f32 %v2646, %v3221
        %v3322 = vadd.f32 %v2648, %v3222
        %v3323 = vadd.f32 %v2807, %v3223
        %v3324 = vadd.f32 %v2809, %v3224
        %v3325 = vadd.f32 %v2652, %v3225
        %v3326 = vadd.f32 %v2654, %v3226
        %v3327 = vadd.f32 %v2813, %v3227
        %v3328 = vadd.f32 %v2815, %v3228
        %v3329 = vadd.f32 %v2656, %v3229
        %v3330 = vadd.f32 %v2658, %v3230
        %v3331 = vadd.f32 %v2817, %v3231
        %v3332 = vadd.f32 %v2819, %v3232
        %v3333 = vadd.f32 %v2662, %v3233
        %v3334 = vadd.f32 %v2664, %v3234
        %v3335 = vadd.f32 %v2823, %v3235
        %v3336 = vadd.f32 %v2825, %v3236
        %v3337 = vadd.f32 %v2666, %v3237
        %v3338 = vadd.f32 %v2668, %v3238
        %v3339 = vadd.f32 %v2827, %v3239
        %v3340 = vadd.f32 %v2829, %v3240
        %v3341 = vadd.f32 %v2672, %v3241
        %v3342 = vadd.f32 %v2674, %v3242
        %v3343 = vadd.f32 %v2833, %v3243
        %v3344 = vadd.f32 %v2835, %v3244
        %v3345 = vadd.f32 %v2676, %v3245
        %v3346 = vadd.f32 %v2678, %v3246
        %v3347 = vadd.f32 %v2837, %v3247
        %v3348 = vadd.f32 %v2839, %v3248
        %v3349 = vadd.f32 %v2682, %v3249
        %v3350 = vadd.f32 %v2684, %v3250
        %v3351 = vadd.f32 %v2843, %v3251
        %v3352 = vadd.f32 %v2845, %v3252
        %v3353 = vadd.f32 %v2686, %v3253
        %v3354 = vadd.f32 %v2688, %v3254
        %v3355 = vadd.f32 %v2847, %v3255
        %v3356 = vadd.f32 %v2849, %v3256
        %v3357 = vadd.f32 %v2692, %v3257
        %v3358 = vadd.f32 %v2694, %v3258
        %v3359 = vadd.f32 %v2853, %v3259
        %v3360 = vadd.f32 %v2855, %v3260
        %v3361 = vadd.f32 %v2696, %v3261
        %v3362 = vadd.f32 %v2698, %v3262
        %v3363 = vadd.f32 %v2857, %v3263
        %v3364 = vadd.f32 %v2859, %v3264
        %v3365 = vadd.f32 %v2702, %v3265
        %v3366 = vadd.f32 %v2704, %v3266
        %v3367 = vadd.f32 %v2863, %v3267
        %v3368 = vadd.f32 %v2865, %v3268
        %v3369 = vmul.f32 %v3269, 0.7978846
        %v3370 = vmul.f32 %v3270, 0.7978846
        %v3371 = vmul.f32 %v3271, 0.7978846
        %v3372 = vmul.f32 %v3272, 0.7978846
        %v3373 = vmul.f32 %v3273, 0.7978846
        %v3374 = vmul.f32 %v3274, 0.7978846
        %v3375 = vmul.f32 %v3275, 0.7978846
        %v3376 = vmul.f32 %v3276, 0.7978846
        %v3377 = vmul.f32 %v3277, 0.7978846
        %v3378 = vmul.f32 %v3278, 0.7978846
        %v3379 = vmul.f32 %v3279, 0.7978846
        %v3380 = vmul.f32 %v3280, 0.7978846
        %v3381 = vmul.f32 %v3281, 0.7978846
        %v3382 = vmul.f32 %v3282, 0.7978846
        %v3383 = vmul.f32 %v3283, 0.7978846
        %v3384 = vmul.f32 %v3284, 0.7978846
        %v3385 = vmul.f32 %v3285, 0.7978846
        %v3386 = vmul.f32 %v3286, 0.7978846
        %v3387 = vmul.f32 %v3287, 0.7978846
        %v3388 = vmul.f32 %v3288, 0.7978846
        %v3389 = vmul.f32 %v3289, 0.7978846
        %v3390 = vmul.f32 %v3290, 0.7978846
        %v3391 = vmul.f32 %v3291, 0.7978846
        %v3392 = vmul.f32 %v3292, 0.7978846
        %v3393 = vmul.f32 %v3293, 0.7978846
        %v3394 = vmul.f32 %v3294, 0.7978846
        %v3395 = vmul.f32 %v3295, 0.7978846
        %v3396 = vmul.f32 %v3296, 0.7978846
        %v3397 = vmul.f32 %v3297, 0.7978846
        %v3398 = vmul.f32 %v3298, 0.7978846
        %v3399 = vmul.f32 %v3299, 0.7978846
        %v3400 = vmul.f32 %v3300, 0.7978846
        %v3401 = vmul.f32 %v3301, 0.7978846
        %v3402 = vmul.f32 %v3302, 0.7978846
        %v3403 = vmul.f32 %v3303, 0.7978846
        %v3404 = vmul.f32 %v3304, 0.7978846
        %v3405 = vmul.f32 %v3305, 0.7978846
        %v3406 = vmul.f32 %v3306, 0.7978846
        %v3407 = vmul.f32 %v3307, 0.7978846
        %v3408 = vmul.f32 %v3308, 0.7978846
        %v3409 = vmul.f32 %v3309, 0.7978846
        %v3410 = vmul.f32 %v3310, 0.7978846
        %v3411 = vmul.f32 %v3311, 0.7978846
        %v3412 = vmul.f32 %v3312, 0.7978846
        %v3413 = vmul.f32 %v3313, 0.7978846
        %v3414 = vmul.f32 %v3314, 0.7978846
        %v3415 = vmul.f32 %v3315, 0.7978846
        %v3416 = vmul.f32 %v3316, 0.7978846
        %v3417 = vmul.f32 %v3317, 0.7978846
        %v3418 = vmul.f32 %v3318, 0.7978846
        %v3419 = vmul.f32 %v3319, 0.7978846
        %v3420 = vmul.f32 %v3320, 0.7978846
        %v3421 = vmul.f32 %v3321, 0.7978846
        %v3422 = vmul.f32 %v3322, 0.7978846
        %v3423 = vmul.f32 %v3323, 0.7978846
        %v3424 = vmul.f32 %v3324, 0.7978846
        %v3425 = vmul.f32 %v3325, 0.7978846
        %v3426 = vmul.f32 %v3326, 0.7978846
        %v3427 = vmul.f32 %v3327, 0.7978846
        %v3428 = vmul.f32 %v3328, 0.7978846
        %v3429 = vmul.f32 %v3329, 0.7978846
        %v3430 = vmul.f32 %v3330, 0.7978846
        %v3431 = vmul.f32 %v3331, 0.7978846
        %v3432 = vmul.f32 %v3332, 0.7978846
        %v3433 = vmul.f32 %v3333, 0.7978846
        %v3434 = vmul.f32 %v3334, 0.7978846
        %v3435 = vmul.f32 %v3335, 0.7978846
        %v3436 = vmul.f32 %v3336, 0.7978846
        %v3437 = vmul.f32 %v3337, 0.7978846
        %v3438 = vmul.f32 %v3338, 0.7978846
        %v3439 = vmul.f32 %v3339, 0.7978846
        %v3440 = vmul.f32 %v3340, 0.7978846
        %v3441 = vmul.f32 %v3341, 0.7978846
        %v3442 = vmul.f32 %v3342, 0.7978846
        %v3443 = vmul.f32 %v3343, 0.7978846
        %v3444 = vmul.f32 %v3344, 0.7978846
        %v3445 = vmul.f32 %v3345, 0.7978846
        %v3446 = vmul.f32 %v3346, 0.7978846
        %v3447 = vmul.f32 %v3347, 0.7978846
        %v3448 = vmul.f32 %v3348, 0.7978846
        %v3449 = vmul.f32 %v3349, 0.7978846
        %v3450 = vmul.f32 %v3350, 0.7978846
        %v3451 = vmul.f32 %v3351, 0.7978846
        %v3452 = vmul.f32 %v3352, 0.7978846
        %v3453 = vmul.f32 %v3353, 0.7978846
        %v3454 = vmul.f32 %v3354, 0.7978846
        %v3455 = vmul.f32 %v3355, 0.7978846
        %v3456 = vmul.f32 %v3356, 0.7978846
        %v3457 = vmul.f32 %v3357, 0.7978846
        %v3458 = vmul.f32 %v3358, 0.7978846
        %v3459 = vmul.f32 %v3359, 0.7978846
        %v3460 = vmul.f32 %v3360, 0.7978846
        %v3461 = vmul.f32 %v3361, 0.7978846
        %v3462 = vmul.f32 %v3362, 0.7978846
        %v3463 = vmul.f32 %v3363, 0.7978846
        %v3464 = vmul.f32 %v3364, 0.7978846
        %v3465 = vmul.f32 %v3365, 0.7978846
        %v3466 = vmul.f32 %v3366, 0.7978846
        %v3467 = vmul.f32 %v3367, 0.7978846
        %v3468 = vmul.f32 %v3368, 0.7978846
        %v3469 = vtanh.pop %v3369
        %v3470 = vtanh.pop %v3370
        %v3471 = vtanh.pop %v3371
        %v3472 = vtanh.pop %v3372
        %v3473 = vtanh.pop %v3373
        %v3474 = vtanh.pop %v3374
        %v3475 = vtanh.pop %v3375
        %v3476 = vtanh.pop %v3376
        %v3477 = vtanh.pop %v3377
        %v3478 = vtanh.pop %v3378
        %v3479 = vtanh.pop %v3379
        %v3480 = vtanh.pop %v3380
        %v3481 = vtanh.pop %v3381
        %v3482 = vtanh.pop %v3382
        %v3483 = vtanh.pop %v3383
        %v3484 = vtanh.pop %v3384
        %v3485 = vtanh.pop %v3385
        %v3486 = vtanh.pop %v3386
        %v3487 = vtanh.pop %v3387
        %v3488 = vtanh.pop %v3388
        %v3489 = vtanh.pop %v3389
        %v3490 = vtanh.pop %v3390
        %v3491 = vtanh.pop %v3391
        %v3492 = vtanh.pop %v3392
        %v3493 = vtanh.pop %v3393
        %v3494 = vtanh.pop %v3394
        %v3495 = vtanh.pop %v3395
        %v3496 = vtanh.pop %v3396
        %v3497 = vtanh.pop %v3397
        %v3498 = vtanh.pop %v3398
        %v3499 = vtanh.pop %v3399
        %v3500 = vtanh.pop %v3400
        %v3501 = vtanh.pop %v3401
        %v3502 = vtanh.pop %v3402
        %v3503 = vtanh.pop %v3403
        %v3504 = vtanh.pop %v3404
        %v3505 = vtanh.pop %v3405
        %v3506 = vtanh.pop %v3406
        %v3507 = vtanh.pop %v3407
        %v3508 = vtanh.pop %v3408
        %v3509 = vtanh.pop %v3409
        %v3510 = vtanh.pop %v3410
        %v3511 = vtanh.pop %v3411
        %v3512 = vtanh.pop %v3412
        %v3513 = vtanh.pop %v3413
        %v3514 = vtanh.pop %v3414
        %v3515 = vtanh.pop %v3415
        %v3516 = vtanh.pop %v3416
        %v3517 = vtanh.pop %v3417
        %v3518 = vtanh.pop %v3418
        %v3519 = vtanh.pop %v3419
        %v3520 = vtanh.pop %v3420
        %v3521 = vtanh.pop %v3421
        %v3522 = vtanh.pop %v3422
        %v3523 = vtanh.pop %v3423
        %v3524 = vtanh.pop %v3424
        %v3525 = vtanh.pop %v3425
        %v3526 = vtanh.pop %v3426
        %v3527 = vtanh.pop %v3427
        %v3528 = vtanh.pop %v3428
        %v3529 = vtanh.pop %v3429
        %v3530 = vtanh.pop %v3430
        %v3531 = vtanh.pop %v3431
        %v3532 = vtanh.pop %v3432
        %v3533 = vtanh.pop %v3433
        %v3534 = vtanh.pop %v3434
        %v3535 = vtanh.pop %v3435
        %v3536 = vtanh.pop %v3436
        %v3537 = vtanh.pop %v3437
        %v3538 = vtanh.pop %v3438
        %v3539 = vtanh.pop %v3439
        %v3540 = vtanh.pop %v3440
        %v3541 = vtanh.pop %v3441
        %v3542 = vtanh.pop %v3442
        %v3543 = vtanh.pop %v3443
        %v3544 = vtanh.pop %v3444
        %v3545 = vtanh.pop %v3445
        %v3546 = vtanh.pop %v3446
        %v3547 = vtanh.pop %v3447
        %v3548 = vtanh.pop %v3448
        %v3549 = vtanh.pop %v3449
        %v3550 = vtanh.pop %v3450
        %v3551 = vtanh.pop %v3451
        %v3552 = vtanh.pop %v3452
        %v3553 = vtanh.pop %v3453
        %v3554 = vtanh.pop %v3454
        %v3555 = vtanh.pop %v3455
        %v3556 = vtanh.pop %v3456
        %v3557 = vtanh.pop %v3457
        %v3558 = vtanh.pop %v3458
        %v3559 = vtanh.pop %v3459
        %v3560 = vtanh.pop %v3460
        %v3561 = vtanh.pop %v3461
        %v3562 = vtanh.pop %v3462
        %v3563 = vtanh.pop %v3463
        %v3564 = vtanh.pop %v3464
        %v3565 = vtanh.pop %v3465
        %v3566 = vtanh.pop %v3466
        %v3567 = vtanh.pop %v3467
        %v3568 = vtanh.pop %v3468
        %v3569 = vadd.f32 %v3469, 1.0
        %v3570 = vadd.f32 %v3470, 1.0
        %v3571 = vadd.f32 %v3471, 1.0
        %v3572 = vadd.f32 %v3472, 1.0
        %v3573 = vadd.f32 %v3473, 1.0
        %v3574 = vadd.f32 %v3474, 1.0
        %v3575 = vadd.f32 %v3475, 1.0
        %v3576 = vadd.f32 %v3476, 1.0
        %v3577 = vadd.f32 %v3477, 1.0
        %v3578 = vadd.f32 %v3478, 1.0
        %v3579 = vadd.f32 %v3479, 1.0
        %v3580 = vadd.f32 %v3480, 1.0
        %v3581 = vadd.f32 %v3481, 1.0
        %v3582 = vadd.f32 %v3482, 1.0
        %v3583 = vadd.f32 %v3483, 1.0
        %v3584 = vadd.f32 %v3484, 1.0
        %v3585 = vadd.f32 %v3485, 1.0
        %v3586 = vadd.f32 %v3486, 1.0
        %v3587 = vadd.f32 %v3487, 1.0
        %v3588 = vadd.f32 %v3488, 1.0
        %v3589 = vadd.f32 %v3489, 1.0
        %v3590 = vadd.f32 %v3490, 1.0
        %v3591 = vadd.f32 %v3491, 1.0
        %v3592 = vadd.f32 %v3492, 1.0
        %v3593 = vadd.f32 %v3493, 1.0
        %v3594 = vadd.f32 %v3494, 1.0
        %v3595 = vadd.f32 %v3495, 1.0
        %v3596 = vadd.f32 %v3496, 1.0
        %v3597 = vadd.f32 %v3497, 1.0
        %v3598 = vadd.f32 %v3498, 1.0
        %v3599 = vadd.f32 %v3499, 1.0
        %v3600 = vadd.f32 %v3500, 1.0
        %v3601 = vadd.f32 %v3501, 1.0
        %v3602 = vadd.f32 %v3502, 1.0
        %v3603 = vadd.f32 %v3503, 1.0
        %v3604 = vadd.f32 %v3504, 1.0
        %v3605 = vadd.f32 %v3505, 1.0
        %v3606 = vadd.f32 %v3506, 1.0
        %v3607 = vadd.f32 %v3507, 1.0
        %v3608 = vadd.f32 %v3508, 1.0
        %v3609 = vadd.f32 %v3509, 1.0
        %v3610 = vadd.f32 %v3510, 1.0
        %v3611 = vadd.f32 %v3511, 1.0
        %v3612 = vadd.f32 %v3512, 1.0
        %v3613 = vadd.f32 %v3513, 1.0
        %v3614 = vadd.f32 %v3514, 1.0
        %v3615 = vadd.f32 %v3515, 1.0
        %v3616 = vadd.f32 %v3516, 1.0
        %v3617 = vadd.f32 %v3517, 1.0
        %v3618 = vadd.f32 %v3518, 1.0
        %v3619 = vadd.f32 %v3519, 1.0
        %v3620 = vadd.f32 %v3520, 1.0
        %v3621 = vadd.f32 %v3521, 1.0
        %v3622 = vadd.f32 %v3522, 1.0
        %v3623 = vadd.f32 %v3523, 1.0
        %v3624 = vadd.f32 %v3524, 1.0
        %v3625 = vadd.f32 %v3525, 1.0
        %v3626 = vadd.f32 %v3526, 1.0
        %v3627 = vadd.f32 %v3527, 1.0
        %v3628 = vadd.f32 %v3528, 1.0
        %v3629 = vadd.f32 %v3529, 1.0
        %v3630 = vadd.f32 %v3530, 1.0
        %v3631 = vadd.f32 %v3531, 1.0
        %v3632 = vadd.f32 %v3532, 1.0
        %v3633 = vadd.f32 %v3533, 1.0
        %v3634 = vadd.f32 %v3534, 1.0
        %v3635 = vadd.f32 %v3535, 1.0
        %v3636 = vadd.f32 %v3536, 1.0
        %v3637 = vadd.f32 %v3537, 1.0
        %v3638 = vadd.f32 %v3538, 1.0
        %v3639 = vadd.f32 %v3539, 1.0
        %v3640 = vadd.f32 %v3540, 1.0
        %v3641 = vadd.f32 %v3541, 1.0
        %v3642 = vadd.f32 %v3542, 1.0
        %v3643 = vadd.f32 %v3543, 1.0
        %v3644 = vadd.f32 %v3544, 1.0
        %v3645 = vadd.f32 %v3545, 1.0
        %v3646 = vadd.f32 %v3546, 1.0
        %v3647 = vadd.f32 %v3547, 1.0
        %v3648 = vadd.f32 %v3548, 1.0
        %v3649 = vadd.f32 %v3549, 1.0
        %v3650 = vadd.f32 %v3550, 1.0
        %v3651 = vadd.f32 %v3551, 1.0
        %v3652 = vadd.f32 %v3552, 1.0
        %v3653 = vadd.f32 %v3553, 1.0
        %v3654 = vadd.f32 %v3554, 1.0
        %v3655 = vadd.f32 %v3555, 1.0
        %v3656 = vadd.f32 %v3556, 1.0
        %v3657 = vadd.f32 %v3557, 1.0
        %v3658 = vadd.f32 %v3558, 1.0
        %v3659 = vadd.f32 %v3559, 1.0
        %v3660 = vadd.f32 %v3560, 1.0
        %v3661 = vadd.f32 %v3561, 1.0
        %v3662 = vadd.f32 %v3562, 1.0
        %v3663 = vadd.f32 %v3563, 1.0
        %v3664 = vadd.f32 %v3564, 1.0
        %v3665 = vadd.f32 %v3565, 1.0
        %v3666 = vadd.f32 %v3566, 1.0
        %v3667 = vadd.f32 %v3567, 1.0
        %v3668 = vadd.f32 %v3568, 1.0
        %v3669 = vmul.f32 %v2869, %v3569
        %v3670 = vmul.f32 %v2870, %v3570
        %v3671 = vmul.f32 %v2871, %v3571
        %v3672 = vmul.f32 %v2872, %v3572
        %v3673 = vmul.f32 %v2873, %v3573
        %v3674 = vmul.f32 %v2874, %v3574
        %v3675 = vmul.f32 %v2875, %v3575
        %v3676 = vmul.f32 %v2876, %v3576
        %v3677 = vmul.f32 %v2877, %v3577
        %v3678 = vmul.f32 %v2878, %v3578
        %v3679 = vmul.f32 %v2879, %v3579
        %v3680 = vmul.f32 %v2880, %v3580
        %v3681 = vmul.f32 %v2881, %v3581
        %v3682 = vmul.f32 %v2882, %v3582
        %v3683 = vmul.f32 %v2883, %v3583
        %v3684 = vmul.f32 %v2884, %v3584
        %v3685 = vmul.f32 %v2885, %v3585
        %v3686 = vmul.f32 %v2886, %v3586
        %v3687 = vmul.f32 %v2887, %v3587
        %v3688 = vmul.f32 %v2888, %v3588
        %v3689 = vmul.f32 %v2889, %v3589
        %v3690 = vmul.f32 %v2890, %v3590
        %v3691 = vmul.f32 %v2891, %v3591
        %v3692 = vmul.f32 %v2892, %v3592
        %v3693 = vmul.f32 %v2893, %v3593
        %v3694 = vmul.f32 %v2894, %v3594
        %v3695 = vmul.f32 %v2895, %v3595
        %v3696 = vmul.f32 %v2896, %v3596
        %v3697 = vmul.f32 %v2897, %v3597
        %v3698 = vmul.f32 %v2898, %v3598
        %v3699 = vmul.f32 %v2899, %v3599
        %v3700 = vmul.f32 %v2900, %v3600
        %v3701 = vmul.f32 %v2901, %v3601
        %v3702 = vmul.f32 %v2902, %v3602
        %v3703 = vmul.f32 %v2903, %v3603
        %v3704 = vmul.f32 %v2904, %v3604
        %v3705 = vmul.f32 %v2905, %v3605
        %v3706 = vmul.f32 %v2906, %v3606
        %v3707 = vmul.f32 %v2907, %v3607
        %v3708 = vmul.f32 %v2908, %v3608
        %v3709 = vmul.f32 %v2909, %v3609
        %v3710 = vmul.f32 %v2910, %v3610
        %v3711 = vmul.f32 %v2911, %v3611
        %v3712 = vmul.f32 %v2912, %v3612
        %v3713 = vmul.f32 %v2913, %v3613
        %v3714 = vmul.f32 %v2914, %v3614
        %v3715 = vmul.f32 %v2915, %v3615
        %v3716 = vmul.f32 %v2916, %v3616
        %v3717 = vmul.f32 %v2917, %v3617
        %v3718 = vmul.f32 %v2918, %v3618
        %v3719 = vmul.f32 %v2919, %v3619
        %v3720 = vmul.f32 %v2920, %v3620
        %v3721 = vmul.f32 %v2921, %v3621
        %v3722 = vmul.f32 %v2922, %v3622
        %v3723 = vmul.f32 %v2923, %v3623
        %v3724 = vmul.f32 %v2924, %v3624
        %v3725 = vmul.f32 %v2925, %v3625
        %v3726 = vmul.f32 %v2926, %v3626
        %v3727 = vmul.f32 %v2927, %v3627
        %v3728 = vmul.f32 %v2928, %v3628
        %v3729 = vmul.f32 %v2929, %v3629
        %v3730 = vmul.f32 %v2930, %v3630
        %v3731 = vmul.f32 %v2931, %v3631
        %v3732 = vmul.f32 %v2932, %v3632
        %v3733 = vmul.f32 %v2933, %v3633
        %v3734 = vmul.f32 %v2934, %v3634
        %v3735 = vmul.f32 %v2935, %v3635
        %v3736 = vmul.f32 %v2936, %v3636
        %v3737 = vmul.f32 %v2937, %v3637
        %v3738 = vmul.f32 %v2938, %v3638
        %v3739 = vmul.f32 %v2939, %v3639
        %v3740 = vmul.f32 %v2940, %v3640
        %v3741 = vmul.f32 %v2941, %v3641
        %v3742 = vmul.f32 %v2942, %v3642
        %v3743 = vmul.f32 %v2943, %v3643
        %v3744 = vmul.f32 %v2944, %v3644
        %v3745 = vmul.f32 %v2945, %v3645
        %v3746 = vmul.f32 %v2946, %v3646
        %v3747 = vmul.f32 %v2947, %v3647
        %v3748 = vmul.f32 %v2948, %v3648
        %v3749 = vmul.f32 %v2949, %v3649
        %v3750 = vmul.f32 %v2950, %v3650
        %v3751 = vmul.f32 %v2951, %v3651
        %v3752 = vmul.f32 %v2952, %v3652
        %v3753 = vmul.f32 %v2953, %v3653
        %v3754 = vmul.f32 %v2954, %v3654
        %v3755 = vmul.f32 %v2955, %v3655
        %v3756 = vmul.f32 %v2956, %v3656
        %v3757 = vmul.f32 %v2957, %v3657
        %v3758 = vmul.f32 %v2958, %v3658
        %v3759 = vmul.f32 %v2959, %v3659
        %v3760 = vmul.f32 %v2960, %v3660
        %v3761 = vmul.f32 %v2961, %v3661
        %v3762 = vmul.f32 %v2962, %v3662
        %v3763 = vmul.f32 %v2963, %v3663
        %v3764 = vmul.f32 %v2964, %v3664
        %v3765 = vmul.f32 %v2965, %v3665
        %v3766 = vmul.f32 %v2966, %v3666
        %v3767 = vmul.f32 %v2967, %v3667
        %v3768 = vmul.f32 %v2968, %v3668
        %v3769 = vpack.c.bf16 %v3673, %v3669
        %v3770 = vpack.c.bf16 %v3674, %v3670
        %v3771 = vpack.c.bf16 %v3675, %v3671
        %v3772 = vpack.c.bf16 %v3676, %v3672
        %v3773 = vpack.c.bf16 %v3681, %v3677
        %v3774 = vpack.c.bf16 %v3682, %v3678
        %v3775 = vpack.c.bf16 %v3683, %v3679
        %v3776 = vpack.c.bf16 %v3684, %v3680
        %v3777 = vpack.c.bf16 %v3689, %v3685
        %v3778 = vpack.c.bf16 %v3690, %v3686
        %v3779 = vpack.c.bf16 %v3691, %v3687
        %v3780 = vpack.c.bf16 %v3692, %v3688
        %v3781 = vpack.c.bf16 %v3697, %v3693
        %v3782 = vpack.c.bf16 %v3698, %v3694
        %v3783 = vpack.c.bf16 %v3699, %v3695
        %v3784 = vpack.c.bf16 %v3700, %v3696
        %v3785 = vpack.c.bf16 %v3705, %v3701
        %v3786 = vpack.c.bf16 %v3706, %v3702
        %v3787 = vpack.c.bf16 %v3707, %v3703
        %v3788 = vpack.c.bf16 %v3708, %v3704
        %v3789 = vpack.c.bf16 %v3713, %v3709
        %v3790 = vpack.c.bf16 %v3714, %v3710
        %v3791 = vpack.c.bf16 %v3715, %v3711
        %v3792 = vpack.c.bf16 %v3716, %v3712
        %v3793 = vpack.c.bf16 %v3721, %v3717
        %v3794 = vpack.c.bf16 %v3722, %v3718
        %v3795 = vpack.c.bf16 %v3723, %v3719
        %v3796 = vpack.c.bf16 %v3724, %v3720
        %v3797 = vpack.c.bf16 %v3729, %v3725
        %v3798 = vpack.c.bf16 %v3730, %v3726
        %v3799 = vpack.c.bf16 %v3731, %v3727
        %v3800 = vpack.c.bf16 %v3732, %v3728
        %v3801 = vpack.c.bf16 %v3737, %v3733
        %v3802 = vpack.c.bf16 %v3738, %v3734
        %v3803 = vpack.c.bf16 %v3739, %v3735
        %v3804 = vpack.c.bf16 %v3740, %v3736
        %v3805 = vpack.c.bf16 %v3745, %v3741
        %v3806 = vpack.c.bf16 %v3746, %v3742
        %v3807 = vpack.c.bf16 %v3747, %v3743
        %v3808 = vpack.c.bf16 %v3748, %v3744
        %v3809 = vpack.c.bf16 %v3753, %v3749
        %v3810 = vpack.c.bf16 %v3754, %v3750
        %v3811 = vpack.c.bf16 %v3755, %v3751
        %v3812 = vpack.c.bf16 %v3756, %v3752
        %v3813 = vpack.c.bf16 %v3761, %v3757
        %v3814 = vpack.c.bf16 %v3762, %v3758
        %v3815 = vpack.c.bf16 %v3763, %v3759
        %v3816 = vpack.c.bf16 %v3764, %v3760
        %v3817 = vpack.c.bf16 %v3765, %v3765
        %v3818 = vpack.c.bf16 %v3766, %v3766
        %v3819 = vpack.c.bf16 %v3767, %v3767
        %v3820 = vpack.c.bf16 %v3768, %v3768
        %v3821 = vld [vmem:[%s12] sm:$0xf]
        %v3822 = vld [vmem:[%s12 + $0x4] sm:$0xf]
        %v3823 = vld [vmem:[%s12 + $0x8] sm:$0xf]
        %v3824 = vld [vmem:[%s12 + $0xc] sm:$0xf]
        %v3825 = vld [vmem:[%s12 + $0x10] sm:$0xf]
        %v3826 = vld [vmem:[%s12 + $0x14] sm:$0xf]
        %v3827 = vld [vmem:[%s12 + $0x18] sm:$0xf]
        %v3828 = vld [vmem:[%s12 + $0x1c] sm:$0xf]
        %v3829 = vld [vmem:[%s12 + $0x20] sm:$0xf]
        %v3830 = vld [vmem:[%s12 + $0x24] sm:$0xf]
        %v3831 = vld [vmem:[%s12 + $0x28] sm:$0xf]
        %v3832 = vld [vmem:[%s12 + $0x2c] sm:$0xf]
        %v3833 = vld [vmem:[%s12 + $0x30] sm:$0xf]
        %v3834 = vld [vmem:[%s12 + $0x34] sm:$0xf]
        %v3835 = vld [vmem:[%s12 + $0x38] sm:$0xf]
        %v3836 = vld [vmem:[%s12 + $0x3c] sm:$0xf]
        %v3837 = vld [vmem:[%s12 + $0x40] sm:$0xf]
        %v3838 = vld [vmem:[%s12 + $0x44] sm:$0xf]
        %v3839 = vld [vmem:[%s12 + $0x48] sm:$0xf]
        %v3840 = vld [vmem:[%s12 + $0x4c] sm:$0xf]
        %v3841 = vld [vmem:[%s12 + $0x50] sm:$0xf]
        %v3842 = vld [vmem:[%s12 + $0x54] sm:$0xf]
        %v3843 = vld [vmem:[%s12 + $0x58] sm:$0xf]
        %v3844 = vld [vmem:[%s12 + $0x5c] sm:$0xf]
        %v3845 = vld [vmem:[%s12 + $0x60] sm:$0xf]
        %v3846 = vld [vmem:[%s12 + $0x64] sm:$0xf]
        %v3847 = vld [vmem:[%s12 + $0x68] sm:$0xf]
        %v3848 = vld [vmem:[%s12 + $0x6c] sm:$0xf]
        %v3849 = vld [vmem:[%s12 + $0x70] sm:$0xf]
        %v3850 = vld [vmem:[%s12 + $0x74] sm:$0xf]
        %v3851 = vld [vmem:[%s12 + $0x78] sm:$0xf]
        %v3852 = vld [vmem:[%s12 + $0x7c] sm:$0xf]
        %v3853 = vld [vmem:[%s12 + $0x80] sm:$0xf]
        %v3854 = vld [vmem:[%s12 + $0x84] sm:$0xf]
        %v3855 = vld [vmem:[%s12 + $0x88] sm:$0xf]
        %v3856 = vld [vmem:[%s12 + $0x8c] sm:$0xf]
        %v3857 = vld [vmem:[%s12 + $0x90] sm:$0xf]
        %v3858 = vld [vmem:[%s12 + $0x94] sm:$0xf]
        %v3859 = vld [vmem:[%s12 + $0x98] sm:$0xf]
        %v3860 = vld [vmem:[%s12 + $0x9c] sm:$0xf]
        %v3861 = vld [vmem:[%s12 + $0xa0] sm:$0xf]
        %v3862 = vld [vmem:[%s12 + $0xa4] sm:$0xf]
        %v3863 = vld [vmem:[%s12 + $0xa8] sm:$0xf]
        %v3864 = vld [vmem:[%s12 + $0xac] sm:$0xf]
        %v3865 = vld [vmem:[%s12 + $0xb0] sm:$0xf]
        %v3866 = vld [vmem:[%s12 + $0xb4] sm:$0xf]
        %v3867 = vld [vmem:[%s12 + $0xb8] sm:$0xf]
        %v3868 = vld [vmem:[%s12 + $0xbc] sm:$0xf]
        %v3869 = vld [vmem:[%s12 + $0xc0] sm:$0xf]
        %v3870 = vld [vmem:[%s12 + $0xc4] sm:$0xf]
        %v3871 = vld [vmem:[%s12 + $0xc8] sm:$0xf]
        %v3872 = vld [vmem:[%s12 + $0xcc] sm:$0xf]
        %v3873 = vld [vmem:[%s12 + $0xd0] sm:$0xf]
        %v3874 = vld [vmem:[%s12 + $0xd4] sm:$0xf]
        %v3875 = vld [vmem:[%s12 + $0xd8] sm:$0xf]
        %v3876 = vld [vmem:[%s12 + $0xdc] sm:$0xf]
        %v3877 = vld [vmem:[%s12 + $0xe0] sm:$0xf]
        %v3878 = vld [vmem:[%s12 + $0xe4] sm:$0xf]
        %v3879 = vld [vmem:[%s12 + $0xe8] sm:$0xf]
        %v3880 = vld [vmem:[%s12 + $0xec] sm:$0xf]
        %v3881 = vld [vmem:[%s12 + $0xf0] sm:$0xf]
        %v3882 = vld [vmem:[%s12 + $0xf4] sm:$0xf]
        %v3883 = vld [vmem:[%s12 + $0xf8] sm:$0xf]
        %v3884 = vld [vmem:[%s12 + $0xfc] sm:$0xf]
        %v3885 = vld [vmem:[%s13] sm:$0x1]
        %v3887 = vlaneseq
        %v3888 = vshrl.u32 %v3887, 7
        %v3889 = vsub.s32 0, %v3888
        %v3890 = vrot.slane %v3885, %v3889
        %v3956 = vunpack.c.l.b16 %v3821
        %v3957 = vunpack.c.l.b16 %v3822
        %v3958 = vunpack.c.l.b16 %v3823
        %v3959 = vunpack.c.l.b16 %v3824
        %v3960 = vunpack.c.l.b16 %v3825
        %v3961 = vunpack.c.l.b16 %v3826
        %v3962 = vunpack.c.l.b16 %v3827
        %v3963 = vunpack.c.l.b16 %v3828
        %v3964 = vunpack.c.l.b16 %v3829
        %v3965 = vunpack.c.l.b16 %v3830
        %v3966 = vunpack.c.l.b16 %v3831
        %v3967 = vunpack.c.l.b16 %v3832
        %v3968 = vunpack.c.l.b16 %v3833
        %v3969 = vunpack.c.l.b16 %v3834
        %v3970 = vunpack.c.l.b16 %v3835
        %v3971 = vunpack.c.l.b16 %v3836
        %v3972 = vunpack.c.l.b16 %v3837
        %v3973 = vunpack.c.l.b16 %v3838
        %v3974 = vunpack.c.l.b16 %v3839
        %v3975 = vunpack.c.l.b16 %v3840
        %v3976 = vunpack.c.l.b16 %v3841
        %v3977 = vunpack.c.l.b16 %v3842
        %v3978 = vunpack.c.l.b16 %v3843
        %v3979 = vunpack.c.l.b16 %v3844
        %v3980 = vunpack.c.l.b16 %v3845
        %v3981 = vunpack.c.l.b16 %v3846
        %v3982 = vunpack.c.l.b16 %v3847
        %v3983 = vunpack.c.l.b16 %v3848
        %v3984 = vunpack.c.l.b16 %v3849
        %v3985 = vunpack.c.l.b16 %v3850
        %v3986 = vunpack.c.l.b16 %v3851
        %v3987 = vunpack.c.l.b16 %v3852
        %v3988 = vunpack.c.l.b16 %v3853
        %v3989 = vunpack.c.l.b16 %v3854
        %v3990 = vunpack.c.l.b16 %v3855
        %v3991 = vunpack.c.l.b16 %v3856
        %v3992 = vunpack.c.l.b16 %v3857
        %v3993 = vunpack.c.l.b16 %v3858
        %v3994 = vunpack.c.l.b16 %v3859
        %v3995 = vunpack.c.l.b16 %v3860
        %v3996 = vunpack.c.l.b16 %v3861
        %v3997 = vunpack.c.l.b16 %v3862
        %v3998 = vunpack.c.l.b16 %v3863
        %v3999 = vunpack.c.l.b16 %v3864
        %v4000 = vunpack.c.l.b16 %v3865
        %v4001 = vunpack.c.l.b16 %v3866
        %v4002 = vunpack.c.l.b16 %v3867
        %v4003 = vunpack.c.l.b16 %v3868
        %v4004 = vunpack.c.l.b16 %v3869
        %v4005 = vunpack.c.l.b16 %v3870
        %v4006 = vunpack.c.l.b16 %v3871
        %v4007 = vunpack.c.l.b16 %v3872
        %v4008 = vunpack.c.l.b16 %v3873
        %v4009 = vunpack.c.l.b16 %v3874
        %v4010 = vunpack.c.l.b16 %v3875
        %v4011 = vunpack.c.l.b16 %v3876
        %v4012 = vunpack.c.l.b16 %v3877
        %v4013 = vunpack.c.l.b16 %v3878
        %v4014 = vunpack.c.l.b16 %v3879
        %v4015 = vunpack.c.l.b16 %v3880
        %v4016 = vunpack.c.l.b16 %v3881
        %v4017 = vunpack.c.l.b16 %v3882
        %v4018 = vunpack.c.l.b16 %v3883
        %v4019 = vunpack.c.l.b16 %v3884
        %v4020 = vpack.c.b16 %v3957, %v3956
        %v4021 = vpack.c.b16 %v3959, %v3958
        %v4022 = vpack.c.b16 %v3961, %v3960
        %v4023 = vpack.c.b16 %v3963, %v3962
        %v4024 = vpack.c.b16 %v3965, %v3964
        %v4025 = vpack.c.b16 %v3967, %v3966
        %v4026 = vpack.c.b16 %v3969, %v3968
        %v4027 = vpack.c.b16 %v3971, %v3970
        %v4028 = vpack.c.b16 %v3973, %v3972
        %v4029 = vpack.c.b16 %v3975, %v3974
        %v4030 = vpack.c.b16 %v3977, %v3976
        %v4031 = vpack.c.b16 %v3979, %v3978
        %v4032 = vpack.c.b16 %v3981, %v3980
        %v4033 = vpack.c.b16 %v3983, %v3982
        %v4034 = vpack.c.b16 %v3985, %v3984
        %v4035 = vpack.c.b16 %v3987, %v3986
        %v4036 = vpack.c.b16 %v3989, %v3988
        %v4037 = vpack.c.b16 %v3991, %v3990
        %v4038 = vpack.c.b16 %v3993, %v3992
        %v4039 = vpack.c.b16 %v3995, %v3994
        %v4040 = vpack.c.b16 %v3997, %v3996
        %v4041 = vpack.c.b16 %v3999, %v3998
        %v4042 = vpack.c.b16 %v4001, %v4000
        %v4043 = vpack.c.b16 %v4003, %v4002
        %v4044 = vpack.c.b16 %v4005, %v4004
        %v4045 = vpack.c.b16 %v4007, %v4006
        %v4046 = vpack.c.b16 %v4009, %v4008
        %v4047 = vpack.c.b16 %v4011, %v4010
        %v4048 = vpack.c.b16 %v4013, %v4012
        %v4049 = vpack.c.b16 %v4015, %v4014
        %v4050 = vpack.c.b16 %v4017, %v4016
        %v4051 = vpack.c.b16 %v4019, %v4018
        %4084 = vmatprep.subr.bf16.mxu0 0
        %4085 = vmatpush1.bf16.msra.mxu0 %v4027
        %4086 = vmatprep.subr.bf16.mxu0 0
        %4087 = vmatpush1.bf16.msra.mxu0 %v4026
        %4088 = vmatprep.subr.bf16.mxu0 0
        %4089 = vmatpush1.bf16.msra.mxu0 %v4025
        %4090 = vmatprep.subr.bf16.mxu0 0
        %4091 = vmatpush1.bf16.msra.mxu0 %v4024
        %4092 = vmatprep.subr.bf16.mxu0 0
        %4093 = vmatpush1.bf16.msra.mxu0 %v4023
        %4094 = vmatprep.subr.bf16.mxu0 0
        %4095 = vmatpush1.bf16.msra.mxu0 %v4022
        %4096 = vmatprep.subr.bf16.mxu0 0
        %4097 = vmatpush1.bf16.msra.mxu0 %v4021
        %4098 = vmatprep.subr.bf16.mxu0 0
        %4099 = vmatpush1.bf16.msra.mxu0 %v4020
        %4100 = vmatprep.subr.bf16.mxu0 0
        %4101 = vmatpush2.bf16.msra.mxu0 %v4035
        %4102 = vmatprep.subr.bf16.mxu0 0
        %4103 = vmatpush2.bf16.msra.mxu0 %v4034
        %4104 = vmatprep.subr.bf16.mxu0 0
        %4105 = vmatpush2.bf16.msra.mxu0 %v4033
        %4106 = vmatprep.subr.bf16.mxu0 0
        %4107 = vmatpush2.bf16.msra.mxu0 %v4032
        %4108 = vmatprep.subr.bf16.mxu0 0
        %4109 = vmatpush2.bf16.msra.mxu0 %v4031
        %4110 = vmatprep.subr.bf16.mxu0 0
        %4111 = vmatpush2.bf16.msra.mxu0 %v4030
        %4112 = vmatprep.subr.bf16.mxu0 0
        %4113 = vmatpush2.bf16.msra.mxu0 %v4029
        %4114 = vmatprep.subr.bf16.mxu0 0
        %4115 = vmatpush2.bf16.msra.mxu0 %v4028
        %4116 = vmatprep.mubr.bf16.mxu0 %v3770
        %4117 = vmatmul.mubr.bf16.gmra.mxu0 %v3769
        %v4118 = vpop.f32.mrf.mxu0
        %v4119 = vadd.f32 %v3890, %v4118
        %v4120 = vpop.f32.mrf.mxu0
        %v4121 = vpop.f32.mrf.mxu0
        %v4122 = vadd.f32 %v3890, %v4121
        %v4123 = vpop.f32.mrf.mxu0
        %4124 = vmatprep.mubr.bf16.mxu0 %v3774
        %4125 = vmatmul.mubr.bf16.gmra.mxu0 %v3773
        %v4126 = vpop.f32.mrf.mxu0
        %v4127 = vadd.f32 %v3890, %v4126
        %v4128 = vpop.f32.mrf.mxu0
        %v4129 = vpop.f32.mrf.mxu0
        %v4130 = vadd.f32 %v3890, %v4129
        %v4131 = vpop.f32.mrf.mxu0
        %4132 = vmatprep.mubr.bf16.mxu0 %v3778
        %4133 = vmatmul.mubr.bf16.gmra.mxu0 %v3777
        %v4134 = vpop.f32.mrf.mxu0
        %v4135 = vadd.f32 %v3890, %v4134
        %v4136 = vpop.f32.mrf.mxu0
        %v4137 = vpop.f32.mrf.mxu0
        %v4138 = vadd.f32 %v3890, %v4137
        %v4139 = vpop.f32.mrf.mxu0
        %4140 = vmatprep.mubr.bf16.mxu0 %v3782
        %4141 = vmatmul.mubr.bf16.gmra.mxu0 %v3781
        %v4142 = vpop.f32.mrf.mxu0
        %v4143 = vadd.f32 %v3890, %v4142
        %v4144 = vpop.f32.mrf.mxu0
        %v4145 = vpop.f32.mrf.mxu0
        %v4146 = vadd.f32 %v3890, %v4145
        %v4147 = vpop.f32.mrf.mxu0
        %4148 = vmatprep.mubr.bf16.mxu0 %v3786
        %4149 = vmatmul.mubr.bf16.gmra.mxu0 %v3785
        %v4150 = vpop.f32.mrf.mxu0
        %v4151 = vadd.f32 %v3890, %v4150
        %v4152 = vpop.f32.mrf.mxu0
        %v4153 = vpop.f32.mrf.mxu0
        %v4154 = vadd.f32 %v3890, %v4153
        %v4155 = vpop.f32.mrf.mxu0
        %4156 = vmatprep.mubr.bf16.mxu0 %v3790
        %4157 = vmatmul.mubr.bf16.gmra.mxu0 %v3789
        %v4158 = vpop.f32.mrf.mxu0
        %v4159 = vadd.f32 %v3890, %v4158
        %v4160 = vpop.f32.mrf.mxu0
        %v4161 = vpop.f32.mrf.mxu0
        %v4162 = vadd.f32 %v3890, %v4161
        %v4163 = vpop.f32.mrf.mxu0
        %4164 = vmatprep.mubr.bf16.mxu0 %v3794
        %4165 = vmatmul.mubr.bf16.gmra.mxu0 %v3793
        %v4166 = vpop.f32.mrf.mxu0
        %v4167 = vadd.f32 %v3890, %v4166
        %v4168 = vpop.f32.mrf.mxu0
        %v4169 = vpop.f32.mrf.mxu0
        %v4170 = vadd.f32 %v3890, %v4169
        %v4171 = vpop.f32.mrf.mxu0
        %4172 = vmatprep.mubr.bf16.mxu0 %v3798
        %4173 = vmatmul.mubr.bf16.gmra.mxu0 %v3797
        %v4174 = vpop.f32.mrf.mxu0
        %v4175 = vadd.f32 %v3890, %v4174
        %v4176 = vpop.f32.mrf.mxu0
        %v4177 = vpop.f32.mrf.mxu0
        %v4178 = vadd.f32 %v3890, %v4177
        %v4179 = vpop.f32.mrf.mxu0
        %4180 = vmatprep.mubr.bf16.mxu0 %v3802
        %4181 = vmatmul.mubr.bf16.gmra.mxu0 %v3801
        %v4182 = vpop.f32.mrf.mxu0
        %v4183 = vadd.f32 %v3890, %v4182
        %v4184 = vpop.f32.mrf.mxu0
        %v4185 = vpop.f32.mrf.mxu0
        %v4186 = vadd.f32 %v3890, %v4185
        %v4187 = vpop.f32.mrf.mxu0
        %4188 = vmatprep.mubr.bf16.mxu0 %v3806
        %4189 = vmatmul.mubr.bf16.gmra.mxu0 %v3805
        %v4190 = vpop.f32.mrf.mxu0
        %v4191 = vadd.f32 %v3890, %v4190
        %v4192 = vpop.f32.mrf.mxu0
        %v4193 = vpop.f32.mrf.mxu0
        %v4194 = vadd.f32 %v3890, %v4193
        %v4195 = vpop.f32.mrf.mxu0
        %4196 = vmatprep.mubr.bf16.mxu0 %v3810
        %4197 = vmatmul.mubr.bf16.gmra.mxu0 %v3809
        %v4198 = vpop.f32.mrf.mxu0
        %v4199 = vadd.f32 %v3890, %v4198
        %v4200 = vpop.f32.mrf.mxu0
        %v4201 = vpop.f32.mrf.mxu0
        %v4202 = vadd.f32 %v3890, %v4201
        %v4203 = vpop.f32.mrf.mxu0
        %4204 = vmatprep.mubr.bf16.mxu0 %v3814
        %4205 = vmatmul.mubr.bf16.gmra.mxu0 %v3813
        %v4206 = vpop.f32.mrf.mxu0
        %v4207 = vadd.f32 %v3890, %v4206
        %v4208 = vpop.f32.mrf.mxu0
        %v4209 = vpop.f32.mrf.mxu0
        %v4210 = vadd.f32 %v3890, %v4209
        %v4211 = vpop.f32.mrf.mxu0
        %4212 = vmatprep.mubr.bf16.mxu0 %v3818
        %4213 = vmatmul.mubr.bf16.gmra.mxu0 %v3817
        %v4214 = vpop.f32.mrf.mxu0
        %v4215 = vadd.f32 %v3890, %v4214
        %v4216 = vpop.f32.mrf.mxu0
        %v4217 = vpop.f32.mrf.mxu0
        %v4218 = vpop.f32.mrf.mxu0
        %4219 = vdwg.mxu0
        %4220 = vmatprep.subr.bf16.mxu0 0
        %4221 = vmatpush1.bf16.msra.mxu0 %v4043
        %4222 = vmatprep.subr.bf16.mxu0 0
        %4223 = vmatpush1.bf16.msra.mxu0 %v4042
        %4224 = vmatprep.subr.bf16.mxu0 0
        %4225 = vmatpush1.bf16.msra.mxu0 %v4041
        %4226 = vmatprep.subr.bf16.mxu0 0
        %4227 = vmatpush1.bf16.msra.mxu0 %v4040
        %4228 = vmatprep.subr.bf16.mxu0 0
        %4229 = vmatpush1.bf16.msra.mxu0 %v4039
        %4230 = vmatprep.subr.bf16.mxu0 0
        %4231 = vmatpush1.bf16.msra.mxu0 %v4038
        %4232 = vmatprep.subr.bf16.mxu0 0
        %4233 = vmatpush1.bf16.msra.mxu0 %v4037
        %4234 = vmatprep.subr.bf16.mxu0 0
        %4235 = vmatpush1.bf16.msra.mxu0 %v4036
        %4236 = vmatprep.subr.bf16.mxu0 0
        %4237 = vmatpush2.bf16.msra.mxu0 %v4051
        %4238 = vmatprep.subr.bf16.mxu0 0
        %4239 = vmatpush2.bf16.msra.mxu0 %v4050
        %4240 = vmatprep.subr.bf16.mxu0 0
        %4241 = vmatpush2.bf16.msra.mxu0 %v4049
        %4242 = vmatprep.subr.bf16.mxu0 0
        %4243 = vmatpush2.bf16.msra.mxu0 %v4048
        %4244 = vmatprep.subr.bf16.mxu0 0
        %4245 = vmatpush2.bf16.msra.mxu0 %v4047
        %4246 = vmatprep.subr.bf16.mxu0 0
        %4247 = vmatpush2.bf16.msra.mxu0 %v4046
        %4248 = vmatprep.subr.bf16.mxu0 0
        %4249 = vmatpush2.bf16.msra.mxu0 %v4045
        %4250 = vmatprep.subr.bf16.mxu0 0
        %4251 = vmatpush2.bf16.msra.mxu0 %v4044
        %4252 = vmatprep.mubr.bf16.mxu0 %v3772
        %4253 = vmatmul.mubr.bf16.gmra.mxu0 %v3771
        %v4254 = vpop.f32.mrf.mxu0
        %v4255 = vadd.f32 %v4119, %v4254
        %v4256 = vpop.f32.mrf.mxu0
        %v4257 = vpop.f32.mrf.mxu0
        %v4258 = vadd.f32 %v4122, %v4257
        %v4259 = vpop.f32.mrf.mxu0
        %4260 = vmatprep.mubr.bf16.mxu0 %v3776
        %4261 = vmatmul.mubr.bf16.gmra.mxu0 %v3775
        %v4262 = vpop.f32.mrf.mxu0
        %v4263 = vadd.f32 %v4127, %v4262
        %v4264 = vpop.f32.mrf.mxu0
        %v4265 = vpop.f32.mrf.mxu0
        %v4266 = vadd.f32 %v4130, %v4265
        %v4267 = vpop.f32.mrf.mxu0
        %4268 = vmatprep.mubr.bf16.mxu0 %v3780
        %4269 = vmatmul.mubr.bf16.gmra.mxu0 %v3779
        %v4270 = vpop.f32.mrf.mxu0
        %v4271 = vadd.f32 %v4135, %v4270
        %v4272 = vpop.f32.mrf.mxu0
        %v4273 = vpop.f32.mrf.mxu0
        %v4274 = vadd.f32 %v4138, %v4273
        %v4275 = vpop.f32.mrf.mxu0
        %4276 = vmatprep.mubr.bf16.mxu0 %v3784
        %4277 = vmatmul.mubr.bf16.gmra.mxu0 %v3783
        %v4278 = vpop.f32.mrf.mxu0
        %v4279 = vadd.f32 %v4143, %v4278
        %v4280 = vpop.f32.mrf.mxu0
        %v4281 = vpop.f32.mrf.mxu0
        %v4282 = vadd.f32 %v4146, %v4281
        %v4283 = vpop.f32.mrf.mxu0
        %4284 = vmatprep.mubr.bf16.mxu0 %v3788
        %4285 = vmatmul.mubr.bf16.gmra.mxu0 %v3787
        %v4286 = vpop.f32.mrf.mxu0
        %v4287 = vadd.f32 %v4151, %v4286
        %v4288 = vpop.f32.mrf.mxu0
        %v4289 = vpop.f32.mrf.mxu0
        %v4290 = vadd.f32 %v4154, %v4289
        %v4291 = vpop.f32.mrf.mxu0
        %4292 = vmatprep.mubr.bf16.mxu0 %v3792
        %4293 = vmatmul.mubr.bf16.gmra.mxu0 %v3791
        %v4294 = vpop.f32.mrf.mxu0
        %v4295 = vadd.f32 %v4159, %v4294
        %v4296 = vpop.f32.mrf.mxu0
        %v4297 = vpop.f32.mrf.mxu0
        %v4298 = vadd.f32 %v4162, %v4297
        %v4299 = vpop.f32.mrf.mxu0
        %4300 = vmatprep.mubr.bf16.mxu0 %v3796
        %4301 = vmatmul.mubr.bf16.gmra.mxu0 %v3795
        %v4302 = vpop.f32.mrf.mxu0
        %v4303 = vadd.f32 %v4167, %v4302
        %v4304 = vpop.f32.mrf.mxu0
        %v4305 = vpop.f32.mrf.mxu0
        %v4306 = vadd.f32 %v4170, %v4305
        %v4307 = vpop.f32.mrf.mxu0
        %4308 = vmatprep.mubr.bf16.mxu0 %v3800
        %4309 = vmatmul.mubr.bf16.gmra.mxu0 %v3799
        %v4310 = vpop.f32.mrf.mxu0
        %v4311 = vadd.f32 %v4175, %v4310
        %v4312 = vpop.f32.mrf.mxu0
        %v4313 = vpop.f32.mrf.mxu0
        %v4314 = vadd.f32 %v4178, %v4313
        %v4315 = vpop.f32.mrf.mxu0
        %4316 = vmatprep.mubr.bf16.mxu0 %v3804
        %4317 = vmatmul.mubr.bf16.gmra.mxu0 %v3803
        %v4318 = vpop.f32.mrf.mxu0
        %v4319 = vadd.f32 %v4183, %v4318
        %v4320 = vpop.f32.mrf.mxu0
        %v4321 = vpop.f32.mrf.mxu0
        %v4322 = vadd.f32 %v4186, %v4321
        %v4323 = vpop.f32.mrf.mxu0
        %4324 = vmatprep.mubr.bf16.mxu0 %v3808
        %4325 = vmatmul.mubr.bf16.gmra.mxu0 %v3807
        %v4326 = vpop.f32.mrf.mxu0
        %v4327 = vadd.f32 %v4191, %v4326
        %v4328 = vpop.f32.mrf.mxu0
        %v4329 = vpop.f32.mrf.mxu0
        %v4330 = vadd.f32 %v4194, %v4329
        %v4331 = vpop.f32.mrf.mxu0
        %4332 = vmatprep.mubr.bf16.mxu0 %v3812
        %4333 = vmatmul.mubr.bf16.gmra.mxu0 %v3811
        %v4334 = vpop.f32.mrf.mxu0
        %v4335 = vadd.f32 %v4199, %v4334
        %v4336 = vpop.f32.mrf.mxu0
        %v4337 = vpop.f32.mrf.mxu0
        %v4338 = vadd.f32 %v4202, %v4337
        %v4339 = vpop.f32.mrf.mxu0
        %4340 = vmatprep.mubr.bf16.mxu0 %v3816
        %4341 = vmatmul.mubr.bf16.gmra.mxu0 %v3815
        %v4342 = vpop.f32.mrf.mxu0
        %v4343 = vadd.f32 %v4207, %v4342
        %v4344 = vpop.f32.mrf.mxu0
        %v4345 = vpop.f32.mrf.mxu0
        %v4346 = vadd.f32 %v4210, %v4345
        %v4347 = vpop.f32.mrf.mxu0
        %4348 = vmatprep.mubr.bf16.mxu0 %v3820
        %4349 = vmatmul.mubr.bf16.gmra.mxu0 %v3819
        %v4350 = vpop.f32.mrf.mxu0
        %v4351 = vadd.f32 %v4215, %v4350
        %v4352 = vpop.f32.mrf.mxu0
        %v4353 = vpop.f32.mrf.mxu0
        %v4354 = vpop.f32.mrf.mxu0
        %4355 = vdwg.mxu0
        %v4356 = vadd.f32 %v527, %v4255
        %v4357 = vadd.f32 %v528, %v4258
        %v4358 = vadd.f32 %v529, %v4263
        %v4359 = vadd.f32 %v530, %v4266
        %v4360 = vadd.f32 %v531, %v4271
        %v4361 = vadd.f32 %v532, %v4274
        %v4362 = vadd.f32 %v533, %v4279
        %v4363 = vadd.f32 %v534, %v4282
        %v4364 = vadd.f32 %v535, %v4287
        %v4365 = vadd.f32 %v536, %v4290
        %v4366 = vadd.f32 %v537, %v4295
        %v4367 = vadd.f32 %v538, %v4298
        %v4368 = vadd.f32 %v539, %v4303
        %v4369 = vadd.f32 %v540, %v4306
        %v4370 = vadd.f32 %v541, %v4311
        %v4371 = vadd.f32 %v542, %v4314
        %v4372 = vadd.f32 %v543, %v4319
        %v4373 = vadd.f32 %v544, %v4322
        %v4374 = vadd.f32 %v545, %v4327
        %v4375 = vadd.f32 %v546, %v4330
        %v4376 = vadd.f32 %v547, %v4335
        %v4377 = vadd.f32 %v548, %v4338
        %v4378 = vadd.f32 %v549, %v4343
        %v4379 = vadd.f32 %v550, %v4346
        %v4380 = vadd.f32 %v551, %v4351
        %4381 = vst [vmem:[%s497] sm:$0xff] %v4356
        %4382 = vst [vmem:[%s497 + $0x8] sm:$0xff] %v4357
        %4383 = vst [vmem:[%s497 + $0x10] sm:$0xff] %v4358
        %4384 = vst [vmem:[%s497 + $0x18] sm:$0xff] %v4359
        %4385 = vst [vmem:[%s497 + $0x20] sm:$0xff] %v4360
        %4386 = vst [vmem:[%s497 + $0x28] sm:$0xff] %v4361
        %4387 = vst [vmem:[%s497 + $0x30] sm:$0xff] %v4362
        %4388 = vst [vmem:[%s497 + $0x38] sm:$0xff] %v4363
        %4389 = vst [vmem:[%s497 + $0x40] sm:$0xff] %v4364
        %4390 = vst [vmem:[%s497 + $0x48] sm:$0xff] %v4365
        %4391 = vst [vmem:[%s497 + $0x50] sm:$0xff] %v4366
        %4392 = vst [vmem:[%s497 + $0x58] sm:$0xff] %v4367
        %4393 = vst [vmem:[%s497 + $0x60] sm:$0xff] %v4368
        %4394 = vst [vmem:[%s497 + $0x68] sm:$0xff] %v4369
        %4395 = vst [vmem:[%s497 + $0x70] sm:$0xff] %v4370
        %4396 = vst [vmem:[%s497 + $0x78] sm:$0xff] %v4371
        %4397 = vst [vmem:[%s497 + $0x80] sm:$0xff] %v4372
        %4398 = vst [vmem:[%s497 + $0x88] sm:$0xff] %v4373
        %4399 = vst [vmem:[%s497 + $0x90] sm:$0xff] %v4374
        %4400 = vst [vmem:[%s497 + $0x98] sm:$0xff] %v4375
        %4401 = vst [vmem:[%s497 + $0xa0] sm:$0xff] %v4376
        %4402 = vst [vmem:[%s497 + $0xa8] sm:$0xff] %v4377
        %4403 = vst [vmem:[%s497 + $0xb0] sm:$0xff] %v4378
        %4404 = vst [vmem:[%s497 + $0xb8] sm:$0xff] %v4379
        %4405 = vst [vmem:[%s497 + $0xc0] sm:$0xf] %v4380
        %p4406 = scmp.lt.s32.totalorder %s27, 1
        %s4407 = scalar_select %p4406, %s27, 1
        %s4408 = smul.addr %s4407, 25
        %s4409 = smul.addr %s4408, 8
        %s4410 = scalar_lea.vmem %s14, %s4409
        // Predicated region
        $region85: #{tpu_custom_call.1} parent=75 // pred_check
          %p4411 = pneg %p344
        $region86: #{tpu_custom_call.1} parent=75 // pred_check_branch
          %4413 = sbr.rel (%p4411) target = $region88
        $region87: #{tpu_custom_call.1} parent=75 // pred_region
          _
        $region88: #{tpu_custom_call.1} parent=75 // pred_fallthru
          _
      $region76: #{tpu_custom_call.1} parent=5 // pred_fallthru
        _
      %p4414 = scmp.le.s32.totalorder 2, %s22
      // Predicated region
      $region89: #{tpu_custom_call.1} parent=5 // pred_check
        %p4415 = pneg %p4414
      $region90: #{tpu_custom_call.1} parent=5 // pred_check_branch
        %4417 = sbr.rel (%p4415) target = $region92
      $region91: #{tpu_custom_call.1} parent=5 // pred_region
        %s4418 = ssub.s32 %s22, 2
        // Predicated region
        $region93: #{tpu_custom_call.1} parent=91 // pred_check
          %p4419 = pneg %p350
        $region94: #{tpu_custom_call.1} parent=91 // pred_check_branch
          %4421 = sbr.rel (%p4419) target = $region96
        $region95: #{tpu_custom_call.1} parent=91 // pred_region
          %p4422 = scmp.lt.s32.totalorder %s28, 1
          %s4423 = scalar_select %p4422, %s28, 1
          %s4424 = smul.addr %s4423, 25
          %s4425 = smul.addr %s4424, 8
          %s4426 = scalar_lea.vmem %s14, %s4425
        $region96: #{tpu_custom_call.1} parent=91 // pred_fallthru
          _
      $region92: #{tpu_custom_call.1} parent=5 // pred_fallthru
        _
    $region6: #{tpu_custom_call.1} parent=1 // loop_footer
      %s26 = sadd.s32 1, %s22
    $region7: #{tpu_custom_call.1} parent=1 // loop_footer_branch
      %21 = sbr.rel target = $region3
    $region8: #{tpu_custom_call.1} parent=1 // loop_exit
      _
    %4427 = vsyncpa [#allocation3], 1
    %s4428 = scalar_lea.sflag [#allocation3], 1
    %4429 = vsyncpa %s4428, 1
    %4430 = vsyncpa [#allocation5], 1

</llo_original>
